<compile_context>
chip_gen: v7x
topology: tpu7x:2x2x1
jax: 0.10.0
libtpu: 0.0.40
codegen_flags: <defaults>
</compile_context>

<pallas_src>
import math

import jax
import jax.numpy as jnp
from jax import lax
from jax.experimental import pallas as pl
from jax.experimental.pallas import tpu as pltpu

# ----------------------------- model config ---------------------------------
BATCH      = 4
SEQ        = 8
EMBED_DIM  = 32
NUM_HEADS  = 4
HEAD_DIM   = EMBED_DIM // NUM_HEADS
FF_DIM     = 64
NUM_LAYERS = 2
LN_EPS     = 1e-5

LANE = 128                    # lane-dense padded width for all blocks
BIAS_ROWS_PER_LAYER = 16      # 10 used rows + 6 zero rows -> 8-sublane aligned per layer
NEG_INF = -1e9


# ------------------------------- kernel --------------------------------------
def _make_kernel(num_layers, num_heads, head_dim, embed_dim, eps, batch, seq):
    inv_scale = 1.0 / math.sqrt(head_dim)
    inv_e = 1.0 / embed_dim
    rows = batch * seq
    hk = num_heads * rows      # packed key axis: (head, batch*seq) = 128 lanes

    def kernel(x_ref, wqkv_ref, wmisc_ref, bias_ref, out_ref):
        # activations: (rows, 128) f32, true data in lanes [0:embed_dim], pad lanes zero
        h = x_ref[...]

        # ---- static masks, built once per call (hoisted out of the layer loop) ----
        lane = lax.broadcasted_iota(jnp.int32, (1, LANE), 1)
        ln_mask = (lane < embed_dim).astype(jnp.float32)
        # per-head lane masks via comparisons (no integer division)
        head_masks = [
            ((lane >= hh * head_dim) & (lane < (hh + 1) * head_dim)).astype(jnp.float32)
            for hh in range(num_heads)
        ]

        # additive score mask (rows, hk): 0 where the query's batch matches the key's
        # batch inside each head block, -1e9 elsewhere (cross-batch keys).
        qi = lax.broadcasted_iota(jnp.int32, (rows, hk), 0)
        kj = lax.broadcasted_iota(jnp.int32, (rows, hk), 1)
        valid = jnp.zeros((rows, hk), jnp.bool_)
        for b in range(batch):
            q_in_b = (qi >= b * seq) & (qi < (b + 1) * seq)
            k_in_b = jnp.zeros((rows, hk), jnp.bool_)
            for hh in range(num_heads):
                lo = hh * rows + b * seq
                k_in_b = k_in_b | ((kj >= lo) & (kj < lo + seq))
            valid = valid | (q_in_b & k_in_b)
        score_bias = jnp.where(valid, 0.0, NEG_INF)                 # (rows, hk) f32

        # head-indicator matrix (hk, LANE): D[kc, d] = 1 iff output lane d belongs to
        # kc's head block (pad lanes d >= embed_dim are 1 for every kc so the
        # denominator stays finite there; the numerator is exactly 0 in pad lanes).
        di = lax.broadcasted_iota(jnp.int32, (hk, LANE), 0)
        dj = lax.broadcasted_iota(jnp.int32, (hk, LANE), 1)
        dsel = dj >= embed_dim
        for hh in range(num_heads):
            in_blk = (di >= hh * rows) & (di < (hh + 1) * rows)
            in_head = (dj >= hh * head_dim) & (dj < (hh + 1) * head_dim)
            dsel = dsel | (in_blk & in_head)
        denom_mat = dsel.astype(jnp.float32)                        # (hk, LANE)

        def layer_norm(x, gamma, beta):
            # pad lanes are zero; masked mean / variance over the true embed_dim lanes
            mu = jnp.sum(x * ln_mask, axis=-1, keepdims=True) * inv_e
            d = (x - mu) * ln_mask
            var = jnp.sum(d * d, axis=-1, keepdims=True) * inv_e
            return d * lax.rsqrt(var + eps) * gamma + beta   # gamma/beta zero in pad lanes

        for l in range(num_layers):
            wqkv = wqkv_ref[l * LANE:(l + 1) * LANE, :]                    # (128, 384)
            wo = wmisc_ref[(3 * l + 0) * LANE:(3 * l + 1) * LANE, :]       # (128, 128)
            w1 = wmisc_ref[(3 * l + 1) * LANE:(3 * l + 2) * LANE, :]       # (128, 128)
            w2 = wmisc_ref[(3 * l + 2) * LANE:(3 * l + 3) * LANE, :]       # (128, 128)
            r0 = BIAS_ROWS_PER_LAYER * l                                   # 8-aligned
            bq  = bias_ref[r0 + 0:r0 + 1, :]
            bk  = bias_ref[r0 + 1:r0 + 2, :]
            bv  = bias_ref[r0 + 2:r0 + 3, :]
            bo  = bias_ref[r0 + 3:r0 + 4, :]
            b1  = bias_ref[r0 + 4:r0 + 5, :]
            b2  = bias_ref[r0 + 5:r0 + 6, :]
            g1  = bias_ref[r0 + 6:r0 + 7, :]
            be1 = bias_ref[r0 + 7:r0 + 8, :]
            g2  = bias_ref[r0 + 8:r0 + 9, :]
            be2 = bias_ref[r0 + 9:r0 + 10, :]

            # ---- fused q/k/v projection: one (rows,128) x (128,384) matmul ----
            qkv = jnp.dot(h, wqkv, preferred_element_type=jnp.float32)     # (rows, 384)
            q = qkv[:, 0 * LANE:1 * LANE] + bq                             # (rows, 128)
            k = qkv[:, 1 * LANE:2 * LANE] + bk
            v = qkv[:, 2 * LANE:3 * LANE] + bv

            # ---- pack per-head masked K / V into (hk, 128) operands ----
            kp = jnp.concatenate([k * hm for hm in head_masks], axis=0)    # (128, 128)
            vp = jnp.concatenate([v * hm for hm in head_masks], axis=0)    # (128, 128)

            # ---- scores: ONE full-width matmul; key lanes = (head, batch*seq) ----
            s = jnp.einsum('qd,kd->qk', q, kp,
                           preferred_element_type=jnp.float32) * inv_scale  # (rows, hk)
            s = s + score_bias                       # additive -1e9 block-diagonal mask
            s = s - jnp.max(s, axis=-1, keepdims=True)
            p = jnp.exp(s)                           # masked entries -> exactly 0

            # ---- merged attention + per-(row, head) denominator: two matmuls ----
            num = jnp.dot(p, vp, preferred_element_type=jnp.float32)        # (rows, 128)
            den = jnp.dot(p, denom_mat, preferred_element_type=jnp.float32) # (rows, 128)
            attn = num * pl.reciprocal(den, approx=True)   # EUP reciprocal, no VPU divide

            attn = jnp.dot(attn, wo, preferred_element_type=jnp.float32) + bo

            # residual + LayerNorm 1
            h = layer_norm(h + attn, g1, be1)

            # ---- feed-forward ----
            ff = jnp.dot(h, w1, preferred_element_type=jnp.float32) + b1
            ff = jnp.maximum(ff, 0.0)
            ff = jnp.dot(ff, w2, preferred_element_type=jnp.float32) + b2

            # residual + LayerNorm 2
            h = layer_norm(h + ff, g2, be2)

        # lane-dense (rows, 128) store; true output sliced out host-side
        out_ref[...] = h

    return kernel


# ------------------------------- wrapper --------------------------------------
def transformer_encoder_forward(x, packed):
    w_qkv, w_misc, biases = packed
    B, S, E = x.shape
    rows = B * S
    # lane-pad the input to 128 (layout plumbing, done host-side)
    x_pad = jnp.zeros((rows, LANE), jnp.float32).at[:, :E].set(x.reshape(rows, E))

    kernel = _make_kernel(NUM_LAYERS, NUM_HEADS, HEAD_DIM, EMBED_DIM, LN_EPS, B, S)
    vmem = pl.BlockSpec(memory_space=pltpu.MemorySpace.VMEM)
    out = pl.pallas_call(
        kernel,
        out_shape=jax.ShapeDtypeStruct((rows, LANE), jnp.float32),
        in_specs=[vmem, vmem, vmem, vmem],
        out_specs=vmem,
    )(x_pad, w_qkv, w_misc, biases)
    return out[:, :E].reshape(B, S, E)


# --------------------------- parameter creation -------------------------------
def make_raw_params(key):
    keys = iter(jax.random.split(key, 16 * NUM_LAYERS + 4))

    def linear(din, dout):
        w = jax.random.normal(next(keys), (din, dout), jnp.float32) * 0.05
        b = jax.random.normal(next(keys), (dout,), jnp.float32) * 0.05
        return w, b

    layers = []
    for _ in range(NUM_LAYERS):
        wq, bq = linear(EMBED_DIM, EMBED_DIM)
        wk, bk = linear(EMBED_DIM, EMBED_DIM)
        wv, bv = linear(EMBED_DIM, EMBED_DIM)
        wo, bo = linear(EMBED_DIM, EMBED_DIM)
        g1  = 1.0 + 0.1 * jax.random.normal(next(keys), (EMBED_DIM,), jnp.float32)
        be1 = 0.1 * jax.random.normal(next(keys), (EMBED_DIM,), jnp.float32)
        w1, b1 = linear(EMBED_DIM, FF_DIM)
        w2, b2 = linear(FF_DIM, EMBED_DIM)
        g2  = 1.0 + 0.1 * jax.random.normal(next(keys), (EMBED_DIM,), jnp.float32)
        be2 = 0.1 * jax.random.normal(next(keys), (EMBED_DIM,), jnp.float32)
        layers.append((wq, bq, wk, bk, wv, bv, wo, bo,
                       g1, be1, w1, b1, w2, b2, g2, be2))
    return {"layers": layers}


def pack_params(raw):
    """Pack everything into three lane-dense f32 slabs."""
    def pad_w(w):
        out = jnp.zeros((LANE, LANE), jnp.float32)
        return out.at[:w.shape[0], :w.shape[1]].set(w)

    def pad_row(b):
        out = jnp.zeros((1, LANE), jnp.float32)
        return out.at[:, :b.shape[-1]].set(b.reshape(1, -1))

    wqkv_blocks, wmisc_blocks, bias_rows = [], [], []
    for l in range(NUM_LAYERS):
        (wq, bq, wk, bk, wv, bv, wo, bo,
         g1, be1, w1, b1, w2, b2, g2, be2) = raw["layers"][l]
        wqkv_blocks.append(jnp.concatenate([pad_w(wq), pad_w(wk), pad_w(wv)], axis=1))
        wmisc_blocks += [pad_w(wo), pad_w(w1), pad_w(w2)]
        layer_rows = [pad_row(t) for t in (bq, bk, bv, bo, b1, b2, g1, be1, g2, be2)]
        # pad each layer's bias block to a sublane-aligned row count
        layer_rows += [jnp.zeros((1, LANE), jnp.float32)] * (BIAS_ROWS_PER_LAYER - 10)
        bias_rows += layer_rows

    w_qkv = jnp.concatenate(wqkv_blocks, axis=0)          # (L*128, 384)
    w_misc = jnp.concatenate(wmisc_blocks, axis=0)        # (L*3*128, 128)
    biases = jnp.concatenate(bias_rows, axis=0)           # (L*16, 128)
    pad_rows = (-biases.shape[0]) % 8
    if pad_rows:
        biases = jnp.concatenate(
            [biases, jnp.zeros((pad_rows, LANE), jnp.float32)], axis=0)
    return w_qkv, w_misc, biases


# ------------------------------ pure-JAX reference ----------------------------
def _layer_norm_ref(x, gamma, beta, eps=LN_EPS):
    mu = jnp.mean(x, axis=-1, keepdims=True)
    var = jnp.mean(jnp.square(x - mu), axis=-1, keepdims=True)
    return (x - mu) * lax.rsqrt(var + eps) * gamma + beta


def reference_forward(x, raw):
    B, S, E = x.shape
    h = x
    scale = math.sqrt(HEAD_DIM)
    for l in range(NUM_LAYERS):
        (wq, bq, wk, bk, wv, bv, wo, bo,
         g1, be1, w1, b1, w2, b2, g2, be2) = raw["layers"][l]
        q = h @ wq + bq
        k = h @ wk + bk
        v = h @ wv + bv
        qh = q.reshape(B, S, NUM_HEADS, HEAD_DIM).transpose(0, 2, 1, 3)
        kh = k.reshape(B, S, NUM_HEADS, HEAD_DIM).transpose(0, 2, 1, 3)
        vh = v.reshape(B, S, NUM_HEADS, HEAD_DIM).transpose(0, 2, 1, 3)
        scores = jnp.einsum('bhqd,bhkd->bhqk', qh, kh) / scale
        w = jax.nn.softmax(scores, axis=-1)
        attn = jnp.einsum('bhqk,bhkd->bhqd', w, vh)
        attn = attn.transpose(0, 2, 1, 3).reshape(B, S, E)
        attn = attn @ wo + bo
        h = _layer_norm_ref(h + attn, g1, be1)
        ff = jnp.maximum(h @ w1 + b1, 0.0) @ w2 + b2
        h = _layer_norm_ref(h + ff, g2, be2)
    return h


# ---------------------------------- main --------------------------------------
if __name__ == "__main__":
    key = jax.random.PRNGKey(0)
    k_x, k_p = jax.random.split(key)
    x = jax.random.normal(k_x, (BATCH, SEQ, EMBED_DIM), jnp.float32)
    raw = make_raw_params(k_p)
    packed = pack_params(raw)

    # Kernel runs at DEFAULT matmul precision (f32 accumulation via preferred_element_type).
    out = transformer_encoder_forward(x, packed)
    out = jax.block_until_ready(out)

    # Gold-standard reference at highest precision.
    with jax.default_matmul_precision("highest"):
        ref = jax.block_until_ready(reference_forward(x, raw))

    assert out.shape == (BATCH, SEQ, EMBED_DIM)
    max_err = float(jnp.max(jnp.abs(out - ref)))
    assert jnp.allclose(out, ref, atol=2e-2, rtol=2e-2), f"max abs err {max_err}"

    print("KERNEL_OK")
</pallas_src>

<mosaic_0001>
module attributes {stable_mosaic.version = 11 : i64} {
  func.func @kernel(%arg0: memref<32x128xf32, #tpu.memory_space<vmem>>, %arg1: memref<256x384xf32, #tpu.memory_space<vmem>>, %arg2: memref<768x128xf32, #tpu.memory_space<vmem>>, %arg3: memref<32x128xf32, #tpu.memory_space<vmem>>, %arg4: memref<32x128xf32, #tpu.memory_space<vmem>>) attributes {dimension_semantics = [], scalar_prefetch = 0 : i64, scratch_operands = 0 : i64, tpu.core_type = #tpu.core_type<tc>} {
    %c0 = arith.constant 0 : index
    %c0_0 = arith.constant 0 : index
    %0 = vector.load %arg0[%c0, %c0_0] : memref<32x128xf32, #tpu.memory_space<vmem>>, vector<32x128xf32>
    %1 = tpu.iota {dimensions = array<i32: 1>} : vector<1x128xi32>
    %c32_i32 = arith.constant 32 : i32
    %2 = vector.broadcast %c32_i32 : i32 to vector<1x128xi32>
    %3 = arith.cmpi slt, %1, %2 : vector<1x128xi32>
    %4 = arith.extui %3 : vector<1x128xi1> to vector<1x128xi32>
    %5 = arith.sitofp %4 : vector<1x128xi32> to vector<1x128xf32>
    %c0_i32 = arith.constant 0 : i32
    %6 = vector.broadcast %c0_i32 : i32 to vector<1x128xi32>
    %7 = arith.cmpi sge, %1, %6 : vector<1x128xi32>
    %c8_i32 = arith.constant 8 : i32
    %8 = vector.broadcast %c8_i32 : i32 to vector<1x128xi32>
    %9 = arith.cmpi slt, %1, %8 : vector<1x128xi32>
    %10 = arith.andi %7, %9 : vector<1x128xi1>
    %11 = arith.extui %10 : vector<1x128xi1> to vector<1x128xi32>
    %12 = arith.sitofp %11 : vector<1x128xi32> to vector<1x128xf32>
    %c8_i32_1 = arith.constant 8 : i32
    %13 = vector.broadcast %c8_i32_1 : i32 to vector<1x128xi32>
    %14 = arith.cmpi sge, %1, %13 : vector<1x128xi32>
    %c16_i32 = arith.constant 16 : i32
    %15 = vector.broadcast %c16_i32 : i32 to vector<1x128xi32>
    %16 = arith.cmpi slt, %1, %15 : vector<1x128xi32>
    %17 = arith.andi %14, %16 : vector<1x128xi1>
    %18 = arith.extui %17 : vector<1x128xi1> to vector<1x128xi32>
    %19 = arith.sitofp %18 : vector<1x128xi32> to vector<1x128xf32>
    %c16_i32_2 = arith.constant 16 : i32
    %20 = vector.broadcast %c16_i32_2 : i32 to vector<1x128xi32>
    %21 = arith.cmpi sge, %1, %20 : vector<1x128xi32>
    %c24_i32 = arith.constant 24 : i32
    %22 = vector.broadcast %c24_i32 : i32 to vector<1x128xi32>
    %23 = arith.cmpi slt, %1, %22 : vector<1x128xi32>
    %24 = arith.andi %21, %23 : vector<1x128xi1>
    %25 = arith.extui %24 : vector<1x128xi1> to vector<1x128xi32>
    %26 = arith.sitofp %25 : vector<1x128xi32> to vector<1x128xf32>
    %c24_i32_3 = arith.constant 24 : i32
    %27 = vector.broadcast %c24_i32_3 : i32 to vector<1x128xi32>
    %28 = arith.cmpi sge, %1, %27 : vector<1x128xi32>
    %c32_i32_4 = arith.constant 32 : i32
    %29 = vector.broadcast %c32_i32_4 : i32 to vector<1x128xi32>
    %30 = arith.cmpi slt, %1, %29 : vector<1x128xi32>
    %31 = arith.andi %28, %30 : vector<1x128xi1>
    %32 = arith.extui %31 : vector<1x128xi1> to vector<1x128xi32>
    %33 = arith.sitofp %32 : vector<1x128xi32> to vector<1x128xf32>
    %34 = tpu.iota {dimensions = array<i32: 0>} : vector<32x128xi32>
    %35 = tpu.iota {dimensions = array<i32: 1>} : vector<32x128xi32>
    %false = arith.constant false
    %36 = vector.broadcast %false : i1 to vector<32x128xi1>
    %c0_i32_5 = arith.constant 0 : i32
    %37 = vector.broadcast %c0_i32_5 : i32 to vector<32x128xi32>
    %38 = arith.cmpi sge, %34, %37 : vector<32x128xi32>
    %c8_i32_6 = arith.constant 8 : i32
    %39 = vector.broadcast %c8_i32_6 : i32 to vector<32x128xi32>
    %40 = arith.cmpi slt, %34, %39 : vector<32x128xi32>
    %41 = arith.andi %38, %40 : vector<32x128xi1>
    %false_7 = arith.constant false
    %42 = vector.broadcast %false_7 : i1 to vector<32x128xi1>
    %c0_i32_8 = arith.constant 0 : i32
    %43 = vector.broadcast %c0_i32_8 : i32 to vector<32x128xi32>
    %44 = arith.cmpi sge, %35, %43 : vector<32x128xi32>
    %c8_i32_9 = arith.constant 8 : i32
    %45 = vector.broadcast %c8_i32_9 : i32 to vector<32x128xi32>
    %46 = arith.cmpi slt, %35, %45 : vector<32x128xi32>
    %47 = arith.andi %44, %46 : vector<32x128xi1>
    %48 = arith.ori %42, %47 : vector<32x128xi1>
    %c32_i32_10 = arith.constant 32 : i32
    %49 = vector.broadcast %c32_i32_10 : i32 to vector<32x128xi32>
    %50 = arith.cmpi sge, %35, %49 : vector<32x128xi32>
    %c40_i32 = arith.constant 40 : i32
    %51 = vector.broadcast %c40_i32 : i32 to vector<32x128xi32>
    %52 = arith.cmpi slt, %35, %51 : vector<32x128xi32>
    %53 = arith.andi %50, %52 : vector<32x128xi1>
    %54 = arith.ori %48, %53 : vector<32x128xi1>
    %c64_i32 = arith.constant 64 : i32
    %55 = vector.broadcast %c64_i32 : i32 to vector<32x128xi32>
    %56 = arith.cmpi sge, %35, %55 : vector<32x128xi32>
    %c72_i32 = arith.constant 72 : i32
    %57 = vector.broadcast %c72_i32 : i32 to vector<32x128xi32>
    %58 = arith.cmpi slt, %35, %57 : vector<32x128xi32>
    %59 = arith.andi %56, %58 : vector<32x128xi1>
    %60 = arith.ori %54, %59 : vector<32x128xi1>
    %c96_i32 = arith.constant 96 : i32
    %61 = vector.broadcast %c96_i32 : i32 to vector<32x128xi32>
    %62 = arith.cmpi sge, %35, %61 : vector<32x128xi32>
    %c104_i32 = arith.constant 104 : i32
    %63 = vector.broadcast %c104_i32 : i32 to vector<32x128xi32>
    %64 = arith.cmpi slt, %35, %63 : vector<32x128xi32>
    %65 = arith.andi %62, %64 : vector<32x128xi1>
    %66 = arith.ori %60, %65 : vector<32x128xi1>
    %67 = arith.andi %41, %66 : vector<32x128xi1>
    %68 = arith.ori %36, %67 : vector<32x128xi1>
    %c8_i32_11 = arith.constant 8 : i32
    %69 = vector.broadcast %c8_i32_11 : i32 to vector<32x128xi32>
    %70 = arith.cmpi sge, %34, %69 : vector<32x128xi32>
    %c16_i32_12 = arith.constant 16 : i32
    %71 = vector.broadcast %c16_i32_12 : i32 to vector<32x128xi32>
    %72 = arith.cmpi slt, %34, %71 : vector<32x128xi32>
    %73 = arith.andi %70, %72 : vector<32x128xi1>
    %false_13 = arith.constant false
    %74 = vector.broadcast %false_13 : i1 to vector<32x128xi1>
    %c8_i32_14 = arith.constant 8 : i32
    %75 = vector.broadcast %c8_i32_14 : i32 to vector<32x128xi32>
    %76 = arith.cmpi sge, %35, %75 : vector<32x128xi32>
    %c16_i32_15 = arith.constant 16 : i32
    %77 = vector.broadcast %c16_i32_15 : i32 to vector<32x128xi32>
    %78 = arith.cmpi slt, %35, %77 : vector<32x128xi32>
    %79 = arith.andi %76, %78 : vector<32x128xi1>
    %80 = arith.ori %74, %79 : vector<32x128xi1>
    %c40_i32_16 = arith.constant 40 : i32
    %81 = vector.broadcast %c40_i32_16 : i32 to vector<32x128xi32>
    %82 = arith.cmpi sge, %35, %81 : vector<32x128xi32>
    %c48_i32 = arith.constant 48 : i32
    %83 = vector.broadcast %c48_i32 : i32 to vector<32x128xi32>
    %84 = arith.cmpi slt, %35, %83 : vector<32x128xi32>
    %85 = arith.andi %82, %84 : vector<32x128xi1>
    %86 = arith.ori %80, %85 : vector<32x128xi1>
    %c72_i32_17 = arith.constant 72 : i32
    %87 = vector.broadcast %c72_i32_17 : i32 to vector<32x128xi32>
    %88 = arith.cmpi sge, %35, %87 : vector<32x128xi32>
    %c80_i32 = arith.constant 80 : i32
    %89 = vector.broadcast %c80_i32 : i32 to vector<32x128xi32>
    %90 = arith.cmpi slt, %35, %89 : vector<32x128xi32>
    %91 = arith.andi %88, %90 : vector<32x128xi1>
    %92 = arith.ori %86, %91 : vector<32x128xi1>
    %c104_i32_18 = arith.constant 104 : i32
    %93 = vector.broadcast %c104_i32_18 : i32 to vector<32x128xi32>
    %94 = arith.cmpi sge, %35, %93 : vector<32x128xi32>
    %c112_i32 = arith.constant 112 : i32
    %95 = vector.broadcast %c112_i32 : i32 to vector<32x128xi32>
    %96 = arith.cmpi slt, %35, %95 : vector<32x128xi32>
    %97 = arith.andi %94, %96 : vector<32x128xi1>
    %98 = arith.ori %92, %97 : vector<32x128xi1>
    %99 = arith.andi %73, %98 : vector<32x128xi1>
    %100 = arith.ori %68, %99 : vector<32x128xi1>
    %c16_i32_19 = arith.constant 16 : i32
    %101 = vector.broadcast %c16_i32_19 : i32 to vector<32x128xi32>
    %102 = arith.cmpi sge, %34, %101 : vector<32x128xi32>
    %c24_i32_20 = arith.constant 24 : i32
    %103 = vector.broadcast %c24_i32_20 : i32 to vector<32x128xi32>
    %104 = arith.cmpi slt, %34, %103 : vector<32x128xi32>
    %105 = arith.andi %102, %104 : vector<32x128xi1>
    %false_21 = arith.constant false
    %106 = vector.broadcast %false_21 : i1 to vector<32x128xi1>
    %c16_i32_22 = arith.constant 16 : i32
    %107 = vector.broadcast %c16_i32_22 : i32 to vector<32x128xi32>
    %108 = arith.cmpi sge, %35, %107 : vector<32x128xi32>
    %c24_i32_23 = arith.constant 24 : i32
    %109 = vector.broadcast %c24_i32_23 : i32 to vector<32x128xi32>
    %110 = arith.cmpi slt, %35, %109 : vector<32x128xi32>
    %111 = arith.andi %108, %110 : vector<32x128xi1>
    %112 = arith.ori %106, %111 : vector<32x128xi1>
    %c48_i32_24 = arith.constant 48 : i32
    %113 = vector.broadcast %c48_i32_24 : i32 to vector<32x128xi32>
    %114 = arith.cmpi sge, %35, %113 : vector<32x128xi32>
    %c56_i32 = arith.constant 56 : i32
    %115 = vector.broadcast %c56_i32 : i32 to vector<32x128xi32>
    %116 = arith.cmpi slt, %35, %115 : vector<32x128xi32>
    %117 = arith.andi %114, %116 : vector<32x128xi1>
    %118 = arith.ori %112, %117 : vector<32x128xi1>
    %c80_i32_25 = arith.constant 80 : i32
    %119 = vector.broadcast %c80_i32_25 : i32 to vector<32x128xi32>
    %120 = arith.cmpi sge, %35, %119 : vector<32x128xi32>
    %c88_i32 = arith.constant 88 : i32
    %121 = vector.broadcast %c88_i32 : i32 to vector<32x128xi32>
    %122 = arith.cmpi slt, %35, %121 : vector<32x128xi32>
    %123 = arith.andi %120, %122 : vector<32x128xi1>
    %124 = arith.ori %118, %123 : vector<32x128xi1>
    %c112_i32_26 = arith.constant 112 : i32
    %125 = vector.broadcast %c112_i32_26 : i32 to vector<32x128xi32>
    %126 = arith.cmpi sge, %35, %125 : vector<32x128xi32>
    %c120_i32 = arith.constant 120 : i32
    %127 = vector.broadcast %c120_i32 : i32 to vector<32x128xi32>
    %128 = arith.cmpi slt, %35, %127 : vector<32x128xi32>
    %129 = arith.andi %126, %128 : vector<32x128xi1>
    %130 = arith.ori %124, %129 : vector<32x128xi1>
    %131 = arith.andi %105, %130 : vector<32x128xi1>
    %132 = arith.ori %100, %131 : vector<32x128xi1>
    %c24_i32_27 = arith.constant 24 : i32
    %133 = vector.broadcast %c24_i32_27 : i32 to vector<32x128xi32>
    %134 = arith.cmpi sge, %34, %133 : vector<32x128xi32>
    %c32_i32_28 = arith.constant 32 : i32
    %135 = vector.broadcast %c32_i32_28 : i32 to vector<32x128xi32>
    %136 = arith.cmpi slt, %34, %135 : vector<32x128xi32>
    %137 = arith.andi %134, %136 : vector<32x128xi1>
    %false_29 = arith.constant false
    %138 = vector.broadcast %false_29 : i1 to vector<32x128xi1>
    %c24_i32_30 = arith.constant 24 : i32
    %139 = vector.broadcast %c24_i32_30 : i32 to vector<32x128xi32>
    %140 = arith.cmpi sge, %35, %139 : vector<32x128xi32>
    %c32_i32_31 = arith.constant 32 : i32
    %141 = vector.broadcast %c32_i32_31 : i32 to vector<32x128xi32>
    %142 = arith.cmpi slt, %35, %141 : vector<32x128xi32>
    %143 = arith.andi %140, %142 : vector<32x128xi1>
    %144 = arith.ori %138, %143 : vector<32x128xi1>
    %c56_i32_32 = arith.constant 56 : i32
    %145 = vector.broadcast %c56_i32_32 : i32 to vector<32x128xi32>
    %146 = arith.cmpi sge, %35, %145 : vector<32x128xi32>
    %c64_i32_33 = arith.constant 64 : i32
    %147 = vector.broadcast %c64_i32_33 : i32 to vector<32x128xi32>
    %148 = arith.cmpi slt, %35, %147 : vector<32x128xi32>
    %149 = arith.andi %146, %148 : vector<32x128xi1>
    %150 = arith.ori %144, %149 : vector<32x128xi1>
    %c88_i32_34 = arith.constant 88 : i32
    %151 = vector.broadcast %c88_i32_34 : i32 to vector<32x128xi32>
    %152 = arith.cmpi sge, %35, %151 : vector<32x128xi32>
    %c96_i32_35 = arith.constant 96 : i32
    %153 = vector.broadcast %c96_i32_35 : i32 to vector<32x128xi32>
    %154 = arith.cmpi slt, %35, %153 : vector<32x128xi32>
    %155 = arith.andi %152, %154 : vector<32x128xi1>
    %156 = arith.ori %150, %155 : vector<32x128xi1>
    %c120_i32_36 = arith.constant 120 : i32
    %157 = vector.broadcast %c120_i32_36 : i32 to vector<32x128xi32>
    %158 = arith.cmpi sge, %35, %157 : vector<32x128xi32>
    %c128_i32 = arith.constant 128 : i32
    %159 = vector.broadcast %c128_i32 : i32 to vector<32x128xi32>
    %160 = arith.cmpi slt, %35, %159 : vector<32x128xi32>
    %161 = arith.andi %158, %160 : vector<32x128xi1>
    %162 = arith.ori %156, %161 : vector<32x128xi1>
    %163 = arith.andi %137, %162 : vector<32x128xi1>
    %164 = arith.ori %132, %163 : vector<32x128xi1>
    %cst = arith.constant 0.000000e+00 : f32
    %cst_37 = arith.constant -1.000000e+09 : f32
    %165 = vector.broadcast %cst : f32 to vector<32x128xf32>
    %166 = vector.broadcast %cst_37 : f32 to vector<32x128xf32>
    %167 = arith.select %164, %165, %166 : vector<32x128xi1>, vector<32x128xf32>
    %168 = tpu.iota {dimensions = array<i32: 0>} : vector<128x128xi32>
    %169 = tpu.iota {dimensions = array<i32: 1>} : vector<128x128xi32>
    %c32_i32_38 = arith.constant 32 : i32
    %170 = vector.broadcast %c32_i32_38 : i32 to vector<128x128xi32>
    %171 = arith.cmpi sge, %169, %170 : vector<128x128xi32>
    %c0_i32_39 = arith.constant 0 : i32
    %172 = vector.broadcast %c0_i32_39 : i32 to vector<128x128xi32>
    %173 = arith.cmpi sge, %168, %172 : vector<128x128xi32>
    %c32_i32_40 = arith.constant 32 : i32
    %174 = vector.broadcast %c32_i32_40 : i32 to vector<128x128xi32>
    %175 = arith.cmpi slt, %168, %174 : vector<128x128xi32>
    %176 = arith.andi %173, %175 : vector<128x128xi1>
    %c0_i32_41 = arith.constant 0 : i32
    %177 = vector.broadcast %c0_i32_41 : i32 to vector<128x128xi32>
    %178 = arith.cmpi sge, %169, %177 : vector<128x128xi32>
    %c8_i32_42 = arith.constant 8 : i32
    %179 = vector.broadcast %c8_i32_42 : i32 to vector<128x128xi32>
    %180 = arith.cmpi slt, %169, %179 : vector<128x128xi32>
    %181 = arith.andi %178, %180 : vector<128x128xi1>
    %182 = arith.andi %176, %181 : vector<128x128xi1>
    %183 = arith.ori %171, %182 : vector<128x128xi1>
    %c32_i32_43 = arith.constant 32 : i32
    %184 = vector.broadcast %c32_i32_43 : i32 to vector<128x128xi32>
    %185 = arith.cmpi sge, %168, %184 : vector<128x128xi32>
    %c64_i32_44 = arith.constant 64 : i32
    %186 = vector.broadcast %c64_i32_44 : i32 to vector<128x128xi32>
    %187 = arith.cmpi slt, %168, %186 : vector<128x128xi32>
    %188 = arith.andi %185, %187 : vector<128x128xi1>
    %c8_i32_45 = arith.constant 8 : i32
    %189 = vector.broadcast %c8_i32_45 : i32 to vector<128x128xi32>
    %190 = arith.cmpi sge, %169, %189 : vector<128x128xi32>
    %c16_i32_46 = arith.constant 16 : i32
    %191 = vector.broadcast %c16_i32_46 : i32 to vector<128x128xi32>
    %192 = arith.cmpi slt, %169, %191 : vector<128x128xi32>
    %193 = arith.andi %190, %192 : vector<128x128xi1>
    %194 = arith.andi %188, %193 : vector<128x128xi1>
    %195 = arith.ori %183, %194 : vector<128x128xi1>
    %c64_i32_47 = arith.constant 64 : i32
    %196 = vector.broadcast %c64_i32_47 : i32 to vector<128x128xi32>
    %197 = arith.cmpi sge, %168, %196 : vector<128x128xi32>
    %c96_i32_48 = arith.constant 96 : i32
    %198 = vector.broadcast %c96_i32_48 : i32 to vector<128x128xi32>
    %199 = arith.cmpi slt, %168, %198 : vector<128x128xi32>
    %200 = arith.andi %197, %199 : vector<128x128xi1>
    %c16_i32_49 = arith.constant 16 : i32
    %201 = vector.broadcast %c16_i32_49 : i32 to vector<128x128xi32>
    %202 = arith.cmpi sge, %169, %201 : vector<128x128xi32>
    %c24_i32_50 = arith.constant 24 : i32
    %203 = vector.broadcast %c24_i32_50 : i32 to vector<128x128xi32>
    %204 = arith.cmpi slt, %169, %203 : vector<128x128xi32>
    %205 = arith.andi %202, %204 : vector<128x128xi1>
    %206 = arith.andi %200, %205 : vector<128x128xi1>
    %207 = arith.ori %195, %206 : vector<128x128xi1>
    %c96_i32_51 = arith.constant 96 : i32
    %208 = vector.broadcast %c96_i32_51 : i32 to vector<128x128xi32>
    %209 = arith.cmpi sge, %168, %208 : vector<128x128xi32>
    %c128_i32_52 = arith.constant 128 : i32
    %210 = vector.broadcast %c128_i32_52 : i32 to vector<128x128xi32>
    %211 = arith.cmpi slt, %168, %210 : vector<128x128xi32>
    %212 = arith.andi %209, %211 : vector<128x128xi1>
    %c24_i32_53 = arith.constant 24 : i32
    %213 = vector.broadcast %c24_i32_53 : i32 to vector<128x128xi32>
    %214 = arith.cmpi sge, %169, %213 : vector<128x128xi32>
    %c32_i32_54 = arith.constant 32 : i32
    %215 = vector.broadcast %c32_i32_54 : i32 to vector<128x128xi32>
    %216 = arith.cmpi slt, %169, %215 : vector<128x128xi32>
    %217 = arith.andi %214, %216 : vector<128x128xi1>
    %218 = arith.andi %212, %217 : vector<128x128xi1>
    %219 = arith.ori %207, %218 : vector<128x128xi1>
    %220 = arith.extui %219 : vector<128x128xi1> to vector<128x128xi32>
    %221 = arith.sitofp %220 : vector<128x128xi32> to vector<128x128xf32>
    %c0_55 = arith.constant 0 : index
    %c0_56 = arith.constant 0 : index
    %222 = vector.load %arg1[%c0_55, %c0_56] : memref<256x384xf32, #tpu.memory_space<vmem>>, vector<128x384xf32>
    %c0_57 = arith.constant 0 : index
    %c0_58 = arith.constant 0 : index
    %223 = vector.load %arg2[%c0_57, %c0_58] : memref<768x128xf32, #tpu.memory_space<vmem>>, vector<128x128xf32>
    %c128 = arith.constant 128 : index
    %c0_59 = arith.constant 0 : index
    %224 = vector.load %arg2[%c128, %c0_59] : memref<768x128xf32, #tpu.memory_space<vmem>>, vector<128x128xf32>
    %c256 = arith.constant 256 : index
    %c0_60 = arith.constant 0 : index
    %225 = vector.load %arg2[%c256, %c0_60] : memref<768x128xf32, #tpu.memory_space<vmem>>, vector<128x128xf32>
    %c0_61 = arith.constant 0 : index
    %c0_62 = arith.constant 0 : index
    %226 = vector.load %arg3[%c0_61, %c0_62] : memref<32x128xf32, #tpu.memory_space<vmem>>, vector<1x128xf32>
    %c1 = arith.constant 1 : index
    %c0_63 = arith.constant 0 : index
    %227 = vector.load %arg3[%c1, %c0_63] : memref<32x128xf32, #tpu.memory_space<vmem>>, vector<1x128xf32>
    %c2 = arith.constant 2 : index
    %c0_64 = arith.constant 0 : index
    %228 = vector.load %arg3[%c2, %c0_64] : memref<32x128xf32, #tpu.memory_space<vmem>>, vector<1x128xf32>
    %c3 = arith.constant 3 : index
    %c0_65 = arith.constant 0 : index
    %229 = vector.load %arg3[%c3, %c0_65] : memref<32x128xf32, #tpu.memory_space<vmem>>, vector<1x128xf32>
    %c4 = arith.constant 4 : index
    %c0_66 = arith.constant 0 : index
    %230 = vector.load %arg3[%c4, %c0_66] : memref<32x128xf32, #tpu.memory_space<vmem>>, vector<1x128xf32>
    %c5 = arith.constant 5 : index
    %c0_67 = arith.constant 0 : index
    %231 = vector.load %arg3[%c5, %c0_67] : memref<32x128xf32, #tpu.memory_space<vmem>>, vector<1x128xf32>
    %c6 = arith.constant 6 : index
    %c0_68 = arith.constant 0 : index
    %232 = vector.load %arg3[%c6, %c0_68] : memref<32x128xf32, #tpu.memory_space<vmem>>, vector<1x128xf32>
    %c7 = arith.constant 7 : index
    %c0_69 = arith.constant 0 : index
    %233 = vector.load %arg3[%c7, %c0_69] : memref<32x128xf32, #tpu.memory_space<vmem>>, vector<1x128xf32>
    %c8 = arith.constant 8 : index
    %c0_70 = arith.constant 0 : index
    %234 = vector.load %arg3[%c8, %c0_70] : memref<32x128xf32, #tpu.memory_space<vmem>>, vector<1x128xf32>
    %c9 = arith.constant 9 : index
    %c0_71 = arith.constant 0 : index
    %235 = vector.load %arg3[%c9, %c0_71] : memref<32x128xf32, #tpu.memory_space<vmem>>, vector<1x128xf32>
    %cst_72 = arith.constant dense<0.000000e+00> : vector<32x384xf32>
    %236 = tpu.matmul %0, %222, %cst_72 {dimension_numbers = #tpu.dot_dimension_numbers<[1], [0], [0], [1], [0, 0, 1, 1], [], []>} : vector<32x128xf32>, vector<128x384xf32>, vector<32x384xf32> -> vector<32x384xf32>
    %237 = vector.extract_strided_slice %236 {offsets = [0, 0], sizes = [32, 128], strides = [1, 1]} : vector<32x384xf32> to vector<32x128xf32>
    %238 = vector.broadcast %226 : vector<1x128xf32> to vector<32x128xf32>
    %239 = arith.addf %237, %238 : vector<32x128xf32>
    %240 = vector.extract_strided_slice %236 {offsets = [0, 128], sizes = [32, 128], strides = [1, 1]} : vector<32x384xf32> to vector<32x128xf32>
    %241 = vector.broadcast %227 : vector<1x128xf32> to vector<32x128xf32>
    %242 = arith.addf %240, %241 : vector<32x128xf32>
    %243 = vector.extract_strided_slice %236 {offsets = [0, 256], sizes = [32, 128], strides = [1, 1]} : vector<32x384xf32> to vector<32x128xf32>
    %244 = vector.broadcast %228 : vector<1x128xf32> to vector<32x128xf32>
    %245 = arith.addf %243, %244 : vector<32x128xf32>
    %246 = vector.broadcast %12 : vector<1x128xf32> to vector<32x128xf32>
    %247 = arith.mulf %242, %246 : vector<32x128xf32>
    %248 = vector.broadcast %19 : vector<1x128xf32> to vector<32x128xf32>
    %249 = arith.mulf %242, %248 : vector<32x128xf32>
    %250 = vector.broadcast %26 : vector<1x128xf32> to vector<32x128xf32>
    %251 = arith.mulf %242, %250 : vector<32x128xf32>
    %252 = vector.broadcast %33 : vector<1x128xf32> to vector<32x128xf32>
    %253 = arith.mulf %242, %252 : vector<32x128xf32>
    %254 = tpu.concatenate %247, %249, %251, %253 in 0 : vector<32x128xf32>, vector<32x128xf32>, vector<32x128xf32>, vector<32x128xf32> -> vector<128x128xf32>
    %255 = vector.broadcast %12 : vector<1x128xf32> to vector<32x128xf32>
    %256 = arith.mulf %245, %255 : vector<32x128xf32>
    %257 = vector.broadcast %19 : vector<1x128xf32> to vector<32x128xf32>
    %258 = arith.mulf %245, %257 : vector<32x128xf32>
    %259 = vector.broadcast %26 : vector<1x128xf32> to vector<32x128xf32>
    %260 = arith.mulf %245, %259 : vector<32x128xf32>
    %261 = vector.broadcast %33 : vector<1x128xf32> to vector<32x128xf32>
    %262 = arith.mulf %245, %261 : vector<32x128xf32>
    %263 = tpu.concatenate %256, %258, %260, %262 in 0 : vector<32x128xf32>, vector<32x128xf32>, vector<32x128xf32>, vector<32x128xf32> -> vector<128x128xf32>
    "tpu.trace_start"() <{level = 10 : i32, message = "qd,kd->qk"}> : () -> ()
    %cst_73 = arith.constant dense<0.000000e+00> : vector<32x128xf32>
    %264 = tpu.matmul %239, %254, %cst_73 {dimension_numbers = #tpu.dot_dimension_numbers<[1], [1], [0], [0], [0, 0, 1, 0], [], []>} : vector<32x128xf32>, vector<128x128xf32>, vector<32x128xf32> -> vector<32x128xf32>
    "tpu.trace_stop"() : () -> ()
    %cst_74 = arith.constant 0.353553385 : f32
    %265 = vector.broadcast %cst_74 : f32 to vector<32x128xf32>
    %266 = arith.mulf %264, %265 : vector<32x128xf32>
    %267 = arith.addf %266, %167 : vector<32x128xf32>
    %cst_75 = arith.constant dense<0xFF800000> : vector<32xf32>
    %268 = vector.multi_reduction <maximumf>, %267, %cst_75 [1] : vector<32x128xf32> to vector<32xf32>
    %269 = vector.shape_cast %268 : vector<32xf32> to vector<32x1xf32>
    %270 = vector.broadcast %269 : vector<32x1xf32> to vector<32x128xf32>
    %271 = arith.subf %267, %270 : vector<32x128xf32>
    %272 = math.exp %271 : vector<32x128xf32>
    %cst_76 = arith.constant dense<0.000000e+00> : vector<32x128xf32>
    %273 = tpu.matmul %272, %263, %cst_76 {dimension_numbers = #tpu.dot_dimension_numbers<[1], [0], [0], [1], [0, 0, 1, 1], [], []>} : vector<32x128xf32>, vector<128x128xf32>, vector<32x128xf32> -> vector<32x128xf32>
    %cst_77 = arith.constant dense<0.000000e+00> : vector<32x128xf32>
    %274 = tpu.matmul %272, %221, %cst_77 {dimension_numbers = #tpu.dot_dimension_numbers<[1], [0], [0], [1], [0, 0, 1, 1], [], []>} : vector<32x128xf32>, vector<128x128xf32>, vector<32x128xf32> -> vector<32x128xf32>
    %275 = tpu.reciprocal %274 {approx = true} : vector<32x128xf32> -> vector<32x128xf32>
    %276 = arith.mulf %273, %275 : vector<32x128xf32>
    %cst_78 = arith.constant dense<0.000000e+00> : vector<32x128xf32>
    %277 = tpu.matmul %276, %223, %cst_78 {dimension_numbers = #tpu.dot_dimension_numbers<[1], [0], [0], [1], [0, 0, 1, 1], [], []>} : vector<32x128xf32>, vector<128x128xf32>, vector<32x128xf32> -> vector<32x128xf32>
    %278 = vector.broadcast %229 : vector<1x128xf32> to vector<32x128xf32>
    %279 = arith.addf %277, %278 : vector<32x128xf32>
    %280 = arith.addf %0, %279 : vector<32x128xf32>
    %281 = vector.broadcast %5 : vector<1x128xf32> to vector<32x128xf32>
    %282 = arith.mulf %280, %281 : vector<32x128xf32>
    %cst_79 = arith.constant dense<0.000000e+00> : vector<32xf32>
    %283 = vector.multi_reduction <add>, %282, %cst_79 [1] : vector<32x128xf32> to vector<32xf32>
    %284 = vector.shape_cast %283 : vector<32xf32> to vector<32x1xf32>
    %cst_80 = arith.constant 3.125000e-02 : f32
    %285 = vector.broadcast %cst_80 : f32 to vector<32x1xf32>
    %286 = arith.mulf %284, %285 : vector<32x1xf32>
    %287 = vector.broadcast %286 : vector<32x1xf32> to vector<32x128xf32>
    %288 = arith.subf %280, %287 : vector<32x128xf32>
    %289 = vector.broadcast %5 : vector<1x128xf32> to vector<32x128xf32>
    %290 = arith.mulf %288, %289 : vector<32x128xf32>
    %291 = arith.mulf %290, %290 : vector<32x128xf32>
    %cst_81 = arith.constant dense<0.000000e+00> : vector<32xf32>
    %292 = vector.multi_reduction <add>, %291, %cst_81 [1] : vector<32x128xf32> to vector<32xf32>
    %293 = vector.shape_cast %292 : vector<32xf32> to vector<32x1xf32>
    %cst_82 = arith.constant 3.125000e-02 : f32
    %294 = vector.broadcast %cst_82 : f32 to vector<32x1xf32>
    %295 = arith.mulf %293, %294 : vector<32x1xf32>
    %cst_83 = arith.constant 9.99999974E-6 : f32
    %296 = vector.broadcast %cst_83 : f32 to vector<32x1xf32>
    %297 = arith.addf %295, %296 : vector<32x1xf32>
    %298 = math.rsqrt %297 : vector<32x1xf32>
    %299 = vector.broadcast %298 : vector<32x1xf32> to vector<32x128xf32>
    %300 = arith.mulf %290, %299 : vector<32x128xf32>
    %301 = vector.broadcast %232 : vector<1x128xf32> to vector<32x128xf32>
    %302 = arith.mulf %300, %301 : vector<32x128xf32>
    %303 = vector.broadcast %233 : vector<1x128xf32> to vector<32x128xf32>
    %304 = arith.addf %302, %303 : vector<32x128xf32>
    %cst_84 = arith.constant dense<0.000000e+00> : vector<32x128xf32>
    %305 = tpu.matmul %304, %224, %cst_84 {dimension_numbers = #tpu.dot_dimension_numbers<[1], [0], [0], [1], [0, 0, 1, 1], [], []>} : vector<32x128xf32>, vector<128x128xf32>, vector<32x128xf32> -> vector<32x128xf32>
    %306 = vector.broadcast %230 : vector<1x128xf32> to vector<32x128xf32>
    %307 = arith.addf %305, %306 : vector<32x128xf32>
    %cst_85 = arith.constant 0.000000e+00 : f32
    %308 = vector.broadcast %cst_85 : f32 to vector<32x128xf32>
    %309 = arith.maximumf %307, %308 : vector<32x128xf32>
    %cst_86 = arith.constant dense<0.000000e+00> : vector<32x128xf32>
    %310 = tpu.matmul %309, %225, %cst_86 {dimension_numbers = #tpu.dot_dimension_numbers<[1], [0], [0], [1], [0, 0, 1, 1], [], []>} : vector<32x128xf32>, vector<128x128xf32>, vector<32x128xf32> -> vector<32x128xf32>
    %311 = vector.broadcast %231 : vector<1x128xf32> to vector<32x128xf32>
    %312 = arith.addf %310, %311 : vector<32x128xf32>
    %313 = arith.addf %304, %312 : vector<32x128xf32>
    %314 = vector.broadcast %5 : vector<1x128xf32> to vector<32x128xf32>
    %315 = arith.mulf %313, %314 : vector<32x128xf32>
    %cst_87 = arith.constant dense<0.000000e+00> : vector<32xf32>
    %316 = vector.multi_reduction <add>, %315, %cst_87 [1] : vector<32x128xf32> to vector<32xf32>
    %317 = vector.shape_cast %316 : vector<32xf32> to vector<32x1xf32>
    %cst_88 = arith.constant 3.125000e-02 : f32
    %318 = vector.broadcast %cst_88 : f32 to vector<32x1xf32>
    %319 = arith.mulf %317, %318 : vector<32x1xf32>
    %320 = vector.broadcast %319 : vector<32x1xf32> to vector<32x128xf32>
    %321 = arith.subf %313, %320 : vector<32x128xf32>
    %322 = vector.broadcast %5 : vector<1x128xf32> to vector<32x128xf32>
    %323 = arith.mulf %321, %322 : vector<32x128xf32>
    %324 = arith.mulf %323, %323 : vector<32x128xf32>
    %cst_89 = arith.constant dense<0.000000e+00> : vector<32xf32>
    %325 = vector.multi_reduction <add>, %324, %cst_89 [1] : vector<32x128xf32> to vector<32xf32>
    %326 = vector.shape_cast %325 : vector<32xf32> to vector<32x1xf32>
    %cst_90 = arith.constant 3.125000e-02 : f32
    %327 = vector.broadcast %cst_90 : f32 to vector<32x1xf32>
    %328 = arith.mulf %326, %327 : vector<32x1xf32>
    %cst_91 = arith.constant 9.99999974E-6 : f32
    %329 = vector.broadcast %cst_91 : f32 to vector<32x1xf32>
    %330 = arith.addf %328, %329 : vector<32x1xf32>
    %331 = math.rsqrt %330 : vector<32x1xf32>
    %332 = vector.broadcast %331 : vector<32x1xf32> to vector<32x128xf32>
    %333 = arith.mulf %323, %332 : vector<32x128xf32>
    %334 = vector.broadcast %234 : vector<1x128xf32> to vector<32x128xf32>
    %335 = arith.mulf %333, %334 : vector<32x128xf32>
    %336 = vector.broadcast %235 : vector<1x128xf32> to vector<32x128xf32>
    %337 = arith.addf %335, %336 : vector<32x128xf32>
    %c128_92 = arith.constant 128 : index
    %c0_93 = arith.constant 0 : index
    %338 = vector.load %arg1[%c128_92, %c0_93] : memref<256x384xf32, #tpu.memory_space<vmem>>, vector<128x384xf32>
    %c384 = arith.constant 384 : index
    %c0_94 = arith.constant 0 : index
    %339 = vector.load %arg2[%c384, %c0_94] : memref<768x128xf32, #tpu.memory_space<vmem>>, vector<128x128xf32>
    %c512 = arith.constant 512 : index
    %c0_95 = arith.constant 0 : index
    %340 = vector.load %arg2[%c512, %c0_95] : memref<768x128xf32, #tpu.memory_space<vmem>>, vector<128x128xf32>
    %c640 = arith.constant 640 : index
    %c0_96 = arith.constant 0 : index
    %341 = vector.load %arg2[%c640, %c0_96] : memref<768x128xf32, #tpu.memory_space<vmem>>, vector<128x128xf32>
    %c16 = arith.constant 16 : index
    %c0_97 = arith.constant 0 : index
    %342 = vector.load %arg3[%c16, %c0_97] : memref<32x128xf32, #tpu.memory_space<vmem>>, vector<1x128xf32>
    %c17 = arith.constant 17 : index
    %c0_98 = arith.constant 0 : index
    %343 = vector.load %arg3[%c17, %c0_98] : memref<32x128xf32, #tpu.memory_space<vmem>>, vector<1x128xf32>
    %c18 = arith.constant 18 : index
    %c0_99 = arith.constant 0 : index
    %344 = vector.load %arg3[%c18, %c0_99] : memref<32x128xf32, #tpu.memory_space<vmem>>, vector<1x128xf32>
    %c19 = arith.constant 19 : index
    %c0_100 = arith.constant 0 : index
    %345 = vector.load %arg3[%c19, %c0_100] : memref<32x128xf32, #tpu.memory_space<vmem>>, vector<1x128xf32>
    %c20 = arith.constant 20 : index
    %c0_101 = arith.constant 0 : index
    %346 = vector.load %arg3[%c20, %c0_101] : memref<32x128xf32, #tpu.memory_space<vmem>>, vector<1x128xf32>
    %c21 = arith.constant 21 : index
    %c0_102 = arith.constant 0 : index
    %347 = vector.load %arg3[%c21, %c0_102] : memref<32x128xf32, #tpu.memory_space<vmem>>, vector<1x128xf32>
    %c22 = arith.constant 22 : index
    %c0_103 = arith.constant 0 : index
    %348 = vector.load %arg3[%c22, %c0_103] : memref<32x128xf32, #tpu.memory_space<vmem>>, vector<1x128xf32>
    %c23 = arith.constant 23 : index
    %c0_104 = arith.constant 0 : index
    %349 = vector.load %arg3[%c23, %c0_104] : memref<32x128xf32, #tpu.memory_space<vmem>>, vector<1x128xf32>
    %c24 = arith.constant 24 : index
    %c0_105 = arith.constant 0 : index
    %350 = vector.load %arg3[%c24, %c0_105] : memref<32x128xf32, #tpu.memory_space<vmem>>, vector<1x128xf32>
    %c25 = arith.constant 25 : index
    %c0_106 = arith.constant 0 : index
    %351 = vector.load %arg3[%c25, %c0_106] : memref<32x128xf32, #tpu.memory_space<vmem>>, vector<1x128xf32>
    %cst_107 = arith.constant dense<0.000000e+00> : vector<32x384xf32>
    %352 = tpu.matmul %337, %338, %cst_107 {dimension_numbers = #tpu.dot_dimension_numbers<[1], [0], [0], [1], [0, 0, 1, 1], [], []>} : vector<32x128xf32>, vector<128x384xf32>, vector<32x384xf32> -> vector<32x384xf32>
    %353 = vector.extract_strided_slice %352 {offsets = [0, 0], sizes = [32, 128], strides = [1, 1]} : vector<32x384xf32> to vector<32x128xf32>
    %354 = vector.broadcast %342 : vector<1x128xf32> to vector<32x128xf32>
    %355 = arith.addf %353, %354 : vector<32x128xf32>
    %356 = vector.extract_strided_slice %352 {offsets = [0, 128], sizes = [32, 128], strides = [1, 1]} : vector<32x384xf32> to vector<32x128xf32>
    %357 = vector.broadcast %343 : vector<1x128xf32> to vector<32x128xf32>
    %358 = arith.addf %356, %357 : vector<32x128xf32>
    %359 = vector.extract_strided_slice %352 {offsets = [0, 256], sizes = [32, 128], strides = [1, 1]} : vector<32x384xf32> to vector<32x128xf32>
    %360 = vector.broadcast %344 : vector<1x128xf32> to vector<32x128xf32>
    %361 = arith.addf %359, %360 : vector<32x128xf32>
    %362 = vector.broadcast %12 : vector<1x128xf32> to vector<32x128xf32>
    %363 = arith.mulf %358, %362 : vector<32x128xf32>
    %364 = vector.broadcast %19 : vector<1x128xf32> to vector<32x128xf32>
    %365 = arith.mulf %358, %364 : vector<32x128xf32>
    %366 = vector.broadcast %26 : vector<1x128xf32> to vector<32x128xf32>
    %367 = arith.mulf %358, %366 : vector<32x128xf32>
    %368 = vector.broadcast %33 : vector<1x128xf32> to vector<32x128xf32>
    %369 = arith.mulf %358, %368 : vector<32x128xf32>
    %370 = tpu.concatenate %363, %365, %367, %369 in 0 : vector<32x128xf32>, vector<32x128xf32>, vector<32x128xf32>, vector<32x128xf32> -> vector<128x128xf32>
    %371 = vector.broadcast %12 : vector<1x128xf32> to vector<32x128xf32>
    %372 = arith.mulf %361, %371 : vector<32x128xf32>
    %373 = vector.broadcast %19 : vector<1x128xf32> to vector<32x128xf32>
    %374 = arith.mulf %361, %373 : vector<32x128xf32>
    %375 = vector.broadcast %26 : vector<1x128xf32> to vector<32x128xf32>
    %376 = arith.mulf %361, %375 : vector<32x128xf32>
    %377 = vector.broadcast %33 : vector<1x128xf32> to vector<32x128xf32>
    %378 = arith.mulf %361, %377 : vector<32x128xf32>
    %379 = tpu.concatenate %372, %374, %376, %378 in 0 : vector<32x128xf32>, vector<32x128xf32>, vector<32x128xf32>, vector<32x128xf32> -> vector<128x128xf32>
    "tpu.trace_start"() <{level = 10 : i32, message = "qd,kd->qk"}> : () -> ()
    %cst_108 = arith.constant dense<0.000000e+00> : vector<32x128xf32>
    %380 = tpu.matmul %355, %370, %cst_108 {dimension_numbers = #tpu.dot_dimension_numbers<[1], [1], [0], [0], [0, 0, 1, 0], [], []>} : vector<32x128xf32>, vector<128x128xf32>, vector<32x128xf32> -> vector<32x128xf32>
    "tpu.trace_stop"() : () -> ()
    %cst_109 = arith.constant 0.353553385 : f32
    %381 = vector.broadcast %cst_109 : f32 to vector<32x128xf32>
    %382 = arith.mulf %380, %381 : vector<32x128xf32>
    %383 = arith.addf %382, %167 : vector<32x128xf32>
    %cst_110 = arith.constant dense<0xFF800000> : vector<32xf32>
    %384 = vector.multi_reduction <maximumf>, %383, %cst_110 [1] : vector<32x128xf32> to vector<32xf32>
    %385 = vector.shape_cast %384 : vector<32xf32> to vector<32x1xf32>
    %386 = vector.broadcast %385 : vector<32x1xf32> to vector<32x128xf32>
    %387 = arith.subf %383, %386 : vector<32x128xf32>
    %388 = math.exp %387 : vector<32x128xf32>
    %cst_111 = arith.constant dense<0.000000e+00> : vector<32x128xf32>
    %389 = tpu.matmul %388, %379, %cst_111 {dimension_numbers = #tpu.dot_dimension_numbers<[1], [0], [0], [1], [0, 0, 1, 1], [], []>} : vector<32x128xf32>, vector<128x128xf32>, vector<32x128xf32> -> vector<32x128xf32>
    %cst_112 = arith.constant dense<0.000000e+00> : vector<32x128xf32>
    %390 = tpu.matmul %388, %221, %cst_112 {dimension_numbers = #tpu.dot_dimension_numbers<[1], [0], [0], [1], [0, 0, 1, 1], [], []>} : vector<32x128xf32>, vector<128x128xf32>, vector<32x128xf32> -> vector<32x128xf32>
    %391 = tpu.reciprocal %390 {approx = true} : vector<32x128xf32> -> vector<32x128xf32>
    %392 = arith.mulf %389, %391 : vector<32x128xf32>
    %cst_113 = arith.constant dense<0.000000e+00> : vector<32x128xf32>
    %393 = tpu.matmul %392, %339, %cst_113 {dimension_numbers = #tpu.dot_dimension_numbers<[1], [0], [0], [1], [0, 0, 1, 1], [], []>} : vector<32x128xf32>, vector<128x128xf32>, vector<32x128xf32> -> vector<32x128xf32>
    %394 = vector.broadcast %345 : vector<1x128xf32> to vector<32x128xf32>
    %395 = arith.addf %393, %394 : vector<32x128xf32>
    %396 = arith.addf %337, %395 : vector<32x128xf32>
    %397 = vector.broadcast %5 : vector<1x128xf32> to vector<32x128xf32>
    %398 = arith.mulf %396, %397 : vector<32x128xf32>
    %cst_114 = arith.constant dense<0.000000e+00> : vector<32xf32>
    %399 = vector.multi_reduction <add>, %398, %cst_114 [1] : vector<32x128xf32> to vector<32xf32>
    %400 = vector.shape_cast %399 : vector<32xf32> to vector<32x1xf32>
    %cst_115 = arith.constant 3.125000e-02 : f32
    %401 = vector.broadcast %cst_115 : f32 to vector<32x1xf32>
    %402 = arith.mulf %400, %401 : vector<32x1xf32>
    %403 = vector.broadcast %402 : vector<32x1xf32> to vector<32x128xf32>
    %404 = arith.subf %396, %403 : vector<32x128xf32>
    %405 = vector.broadcast %5 : vector<1x128xf32> to vector<32x128xf32>
    %406 = arith.mulf %404, %405 : vector<32x128xf32>
    %407 = arith.mulf %406, %406 : vector<32x128xf32>
    %cst_116 = arith.constant dense<0.000000e+00> : vector<32xf32>
    %408 = vector.multi_reduction <add>, %407, %cst_116 [1] : vector<32x128xf32> to vector<32xf32>
    %409 = vector.shape_cast %408 : vector<32xf32> to vector<32x1xf32>
    %cst_117 = arith.constant 3.125000e-02 : f32
    %410 = vector.broadcast %cst_117 : f32 to vector<32x1xf32>
    %411 = arith.mulf %409, %410 : vector<32x1xf32>
    %cst_118 = arith.constant 9.99999974E-6 : f32
    %412 = vector.broadcast %cst_118 : f32 to vector<32x1xf32>
    %413 = arith.addf %411, %412 : vector<32x1xf32>
    %414 = math.rsqrt %413 : vector<32x1xf32>
    %415 = vector.broadcast %414 : vector<32x1xf32> to vector<32x128xf32>
    %416 = arith.mulf %406, %415 : vector<32x128xf32>
    %417 = vector.broadcast %348 : vector<1x128xf32> to vector<32x128xf32>
    %418 = arith.mulf %416, %417 : vector<32x128xf32>
    %419 = vector.broadcast %349 : vector<1x128xf32> to vector<32x128xf32>
    %420 = arith.addf %418, %419 : vector<32x128xf32>
    %cst_119 = arith.constant dense<0.000000e+00> : vector<32x128xf32>
    %421 = tpu.matmul %420, %340, %cst_119 {dimension_numbers = #tpu.dot_dimension_numbers<[1], [0], [0], [1], [0, 0, 1, 1], [], []>} : vector<32x128xf32>, vector<128x128xf32>, vector<32x128xf32> -> vector<32x128xf32>
    %422 = vector.broadcast %346 : vector<1x128xf32> to vector<32x128xf32>
    %423 = arith.addf %421, %422 : vector<32x128xf32>
    %cst_120 = arith.constant 0.000000e+00 : f32
    %424 = vector.broadcast %cst_120 : f32 to vector<32x128xf32>
    %425 = arith.maximumf %423, %424 : vector<32x128xf32>
    %cst_121 = arith.constant dense<0.000000e+00> : vector<32x128xf32>
    %426 = tpu.matmul %425, %341, %cst_121 {dimension_numbers = #tpu.dot_dimension_numbers<[1], [0], [0], [1], [0, 0, 1, 1], [], []>} : vector<32x128xf32>, vector<128x128xf32>, vector<32x128xf32> -> vector<32x128xf32>
    %427 = vector.broadcast %347 : vector<1x128xf32> to vector<32x128xf32>
    %428 = arith.addf %426, %427 : vector<32x128xf32>
    %429 = arith.addf %420, %428 : vector<32x128xf32>
    %430 = vector.broadcast %5 : vector<1x128xf32> to vector<32x128xf32>
    %431 = arith.mulf %429, %430 : vector<32x128xf32>
    %cst_122 = arith.constant dense<0.000000e+00> : vector<32xf32>
    %432 = vector.multi_reduction <add>, %431, %cst_122 [1] : vector<32x128xf32> to vector<32xf32>
    %433 = vector.shape_cast %432 : vector<32xf32> to vector<32x1xf32>
    %cst_123 = arith.constant 3.125000e-02 : f32
    %434 = vector.broadcast %cst_123 : f32 to vector<32x1xf32>
    %435 = arith.mulf %433, %434 : vector<32x1xf32>
    %436 = vector.broadcast %435 : vector<32x1xf32> to vector<32x128xf32>
    %437 = arith.subf %429, %436 : vector<32x128xf32>
    %438 = vector.broadcast %5 : vector<1x128xf32> to vector<32x128xf32>
    %439 = arith.mulf %437, %438 : vector<32x128xf32>
    %440 = arith.mulf %439, %439 : vector<32x128xf32>
    %cst_124 = arith.constant dense<0.000000e+00> : vector<32xf32>
    %441 = vector.multi_reduction <add>, %440, %cst_124 [1] : vector<32x128xf32> to vector<32xf32>
    %442 = vector.shape_cast %441 : vector<32xf32> to vector<32x1xf32>
    %cst_125 = arith.constant 3.125000e-02 : f32
    %443 = vector.broadcast %cst_125 : f32 to vector<32x1xf32>
    %444 = arith.mulf %442, %443 : vector<32x1xf32>
    %cst_126 = arith.constant 9.99999974E-6 : f32
    %445 = vector.broadcast %cst_126 : f32 to vector<32x1xf32>
    %446 = arith.addf %444, %445 : vector<32x1xf32>
    %447 = math.rsqrt %446 : vector<32x1xf32>
    %448 = vector.broadcast %447 : vector<32x1xf32> to vector<32x128xf32>
    %449 = arith.mulf %439, %448 : vector<32x128xf32>
    %450 = vector.broadcast %350 : vector<1x128xf32> to vector<32x128xf32>
    %451 = arith.mulf %449, %450 : vector<32x128xf32>
    %452 = vector.broadcast %351 : vector<1x128xf32> to vector<32x128xf32>
    %453 = arith.addf %451, %452 : vector<32x128xf32>
    %c0_127 = arith.constant 0 : index
    %c0_128 = arith.constant 0 : index
    %454 = vector.load %arg4[%c0_127, %c0_128] : memref<32x128xf32, #tpu.memory_space<vmem>>, vector<32x128xf32>
    tpu.vector_store %arg4[%c0_127, %c0_128], %453 {strides = array<i32>} : memref<32x128xf32, #tpu.memory_space<vmem>>, vector<32x128xf32>,
    return
  }
}

</mosaic_0001>

<llo_original>
// kernel: tpu_custom_call.1
$region0: #{tpu_custom_call.1}
  #allocation0 [shape = 'u32[]', space=smem, size = 0x4, offset = 0x4, fixed_abs, tag = 'smem constant byte address 0x4 - core index']
  #allocation1 [shape = 'u32[144,128]{1,0:T(1,128)}', space=vmem, size = 0x12000, scoped, tag = 'internal scratch']
  %s0 = inlined_call_operand.hbm [shape: f32[32,128], index: 0, kind: input, shape index: {}]
  %s1 = inlined_call_operand.hbm [shape: f32[256,384], index: 1, kind: input, shape index: {}]
  %s2 = inlined_call_operand.hbm [shape: f32[768,128], index: 2, kind: input, shape index: {}]
  %s3 = inlined_call_operand.hbm [shape: f32[32,128], index: 3, kind: input, shape index: {}]
  %s4 = inlined_call_operand.hbm [shape: f32[32,128], index: 4, kind: output, shape index: {}]
  %s5 = sld [smem:[#allocation0]]
  $region42: #{tpu_custom_call.1} parent=0
    _
  %s7 = ssub.s32 1, %s5
  %s8 = scalar_select 0, %s7, %s5
  $region1: #{tpu_custom_call.1} parent=0
    #allocation2 [shape = 'u8[16384]{0}', space=vmem, size = 0x4000, scoped, tag = 'input window, operand 0, single buffered']
    #allocation3 [shape = 's32[1]{0}', space=sflag, size = 0x4, scoped, tag = 'scoped memory for tpu_custom_call.1']
    #allocation4 [shape = 's32[1]{0}', space=sflag, size = 0x4, scoped, tag = 'scoped memory for tpu_custom_call.1']
    #allocation5 [shape = 'u8[393216]{0}', space=vmem, size = 0x60000, scoped, tag = 'input window, operand 1, single buffered']
    #allocation6 [shape = 's32[1]{0}', space=sflag, size = 0x4, scoped, tag = 'scoped memory for tpu_custom_call.1']
    #allocation7 [shape = 'u8[393216]{0}', space=vmem, size = 0x60000, scoped, tag = 'input window, operand 2, single buffered']
    #allocation8 [shape = 'u8[16384]{0}', space=vmem, size = 0x4000, scoped, tag = 'input window, operand 3, single buffered']
    #allocation9 [shape = 's32[1]{0}', space=sflag, size = 0x4, scoped, tag = 'scoped memory for tpu_custom_call.1']
    #allocation10 [shape = 'u8[16384]{0}', space=vmem, size = 0x4000, scoped, tag = 'output window, operand 0, single buffered']
    %9 = vsyncpa [#allocation3], 0
    %10 = vsyncpa [#allocation6], 0
    %11 = vsyncpa [#allocation9], 0
    %12 = vsyncpa [#allocation4], 0
    // Predicated region
    $region2: #{tpu_custom_call.1} parent=1 // pred_check
      _
    $region3: #{tpu_custom_call.1} parent=1 // pred_check_branch
      %14 = sbr.rel (0) target = $region5
    $region4: #{tpu_custom_call.1} parent=1 // pred_region
      %s16 = ssub.s32 512, 512
      %17 = vsyncadd [#allocation3], %s16
      %s18 = sshll.u32 [#allocation2], 4
      %s19 = int_to_ptr.vmem [resolvable:$true] %s18
      %24 = dma.hbm_to_vmem [thread:$0]  %s0, 512, %s19, [#allocation3], 128, 128, 8
    $region5: #{tpu_custom_call.1} parent=1 // pred_fallthru
      _
    // Predicated region
    $region6: #{tpu_custom_call.1} parent=1 // pred_check
      _
    $region7: #{tpu_custom_call.1} parent=1 // pred_check_branch
      %26 = sbr.rel (0) target = $region9
    $region8: #{tpu_custom_call.1} parent=1 // pred_region
      %s28 = ssub.s32 12288, 12288
      %29 = vsyncadd [#allocation6], %s28
      %s30 = sshll.u32 [#allocation5], 4
      %s31 = int_to_ptr.vmem [resolvable:$true] %s30
      %36 = dma.hbm_to_vmem [thread:$0]  %s1, 12288, %s31, [#allocation6], 384, 384, 24
    $region9: #{tpu_custom_call.1} parent=1 // pred_fallthru
      _
    // Predicated region
    $region10: #{tpu_custom_call.1} parent=1 // pred_check
      _
    $region11: #{tpu_custom_call.1} parent=1 // pred_check_branch
      %38 = sbr.rel (0) target = $region13
    $region12: #{tpu_custom_call.1} parent=1 // pred_region
      %s40 = ssub.s32 12288, 12288
      %41 = vsyncadd [#allocation6], %s40
      %s42 = sshll.u32 [#allocation7], 4
      %s43 = int_to_ptr.vmem [resolvable:$true] %s42
      %48 = dma.hbm_to_vmem [thread:$0]  %s2, 12288, %s43, [#allocation6], 128, 128, 8
    $region13: #{tpu_custom_call.1} parent=1 // pred_fallthru
      _
    // Predicated region
    $region14: #{tpu_custom_call.1} parent=1 // pred_check
      _
    $region15: #{tpu_custom_call.1} parent=1 // pred_check_branch
      %50 = sbr.rel (0) target = $region17
    $region16: #{tpu_custom_call.1} parent=1 // pred_region
      %s52 = ssub.s32 512, 512
      %53 = vsyncadd [#allocation9], %s52
      %s54 = sshll.u32 [#allocation8], 4
      %s55 = int_to_ptr.vmem [resolvable:$true] %s54
      %60 = dma.hbm_to_vmem [thread:$0]  %s3, 512, %s55, [#allocation9], 128, 128, 8
    $region17: #{tpu_custom_call.1} parent=1 // pred_fallthru
      _
    // Predicated region
    $region18: #{tpu_custom_call.1} parent=1 // pred_check
      _
    $region19: #{tpu_custom_call.1} parent=1 // pred_check_branch
      %62 = sbr.rel (0) target = $region21
    $region20: #{tpu_custom_call.1} parent=1 // pred_region
      %63 = dma.done [#allocation3], 512
    $region21: #{tpu_custom_call.1} parent=1 // pred_fallthru
      _
    // Predicated region
    $region22: #{tpu_custom_call.1} parent=1 // pred_check
      _
    $region23: #{tpu_custom_call.1} parent=1 // pred_check_branch
      %65 = sbr.rel (0) target = $region25
    $region24: #{tpu_custom_call.1} parent=1 // pred_region
      %66 = dma.done [#allocation6], 12288
    $region25: #{tpu_custom_call.1} parent=1 // pred_fallthru
      _
    // Predicated region
    $region26: #{tpu_custom_call.1} parent=1 // pred_check
      _
    $region27: #{tpu_custom_call.1} parent=1 // pred_check_branch
      %68 = sbr.rel (0) target = $region29
    $region28: #{tpu_custom_call.1} parent=1 // pred_region
      %69 = dma.done [#allocation6], 12288
    $region29: #{tpu_custom_call.1} parent=1 // pred_fallthru
      _
    // Predicated region
    $region30: #{tpu_custom_call.1} parent=1 // pred_check
      _
    $region31: #{tpu_custom_call.1} parent=1 // pred_check_branch
      %71 = sbr.rel (0) target = $region33
    $region32: #{tpu_custom_call.1} parent=1 // pred_region
      %72 = dma.done [#allocation9], 512
    $region33: #{tpu_custom_call.1} parent=1 // pred_fallthru
      _
    %v73 = vld [vmem:[#allocation2] sm:$0xff]
    %v74 = vld [vmem:[#allocation2 + $0x8] sm:$0xff]
    %v75 = vld [vmem:[#allocation2 + $0x10] sm:$0xff]
    %v76 = vld [vmem:[#allocation2 + $0x18] sm:$0xff]
    %v77 = vlaneseq
    %v78 = vand.u32 %v77, 127
    %vm79 = vcmp.lt.s32.totalorder %v78, 32
    %v80 = vsel %vm79, 1, 0
    %v81 = vcvt.s32.f32 %v80
    %vm82 = vcmp.ge.s32.totalorder %v78, 0
    %vm83 = vcmp.lt.s32.totalorder %v78, 8
    %vm84 = vmand %vm82, %vm83
    %v85 = vsel %vm84, 1, 0
    %v86 = vcvt.s32.f32 %v85
    %vm87 = vcmp.ge.s32.totalorder %v78, 8
    %vm88 = vcmp.lt.s32.totalorder %v78, 16
    %vm89 = vmand %vm87, %vm88
    %v90 = vsel %vm89, 1, 0
    %v91 = vcvt.s32.f32 %v90
    %vm92 = vcmp.ge.s32.totalorder %v78, 16
    %vm93 = vcmp.lt.s32.totalorder %v78, 24
    %vm94 = vmand %vm92, %vm93
    %v95 = vsel %vm94, 1, 0
    %v96 = vcvt.s32.f32 %v95
    %vm97 = vcmp.ge.s32.totalorder %v78, 24
    %vm98 = vmand %vm97, %vm79
    %v99 = vsel %vm98, 1, 0
    %v100 = vcvt.s32.f32 %v99
    %v101 = vlaneseq
    %v102 = vshrl.u32 %v101, 7
    %v103 = vadd.s32 %v102, 8
    %v104 = vadd.s32 %v102, 16
    %v105 = vadd.s32 %v102, 24
    %vm106 = vcmp.ge.s32.totalorder %v102, 0
    %vm107 = vcmp.ge.s32.totalorder %v103, 0
    %vm108 = vcmp.ge.s32.totalorder %v104, 0
    %vm109 = vcmp.ge.s32.totalorder %v105, 0
    %vm110 = vcmp.lt.s32.totalorder %v102, 8
    %vm111 = vcmp.lt.s32.totalorder %v103, 8
    %vm112 = vcmp.lt.s32.totalorder %v104, 8
    %vm113 = vcmp.lt.s32.totalorder %v105, 8
    %vm114 = vmand %vm106, %vm110
    %vm115 = vmand %vm107, %vm111
    %vm116 = vmand %vm108, %vm112
    %vm117 = vmand %vm109, %vm113
    %vm118 = vcmp.ge.s32.totalorder %v78, 32
    %vm119 = vcmp.lt.s32.totalorder %v78, 40
    %vm120 = vmand %vm118, %vm119
    %vm121 = vmor %vm84, %vm120
    %vm122 = vcmp.ge.s32.totalorder %v78, 64
    %vm123 = vcmp.lt.s32.totalorder %v78, 72
    %vm124 = vmand %vm122, %vm123
    %vm125 = vmor %vm121, %vm124
    %vm126 = vcmp.ge.s32.totalorder %v78, 96
    %vm127 = vcmp.lt.s32.totalorder %v78, 104
    %vm128 = vmand %vm126, %vm127
    %vm129 = vmor %vm125, %vm128
    %vm130 = vmand %vm114, %vm129
    %vm131 = vmand %vm115, %vm129
    %vm132 = vmand %vm116, %vm129
    %vm133 = vmand %vm117, %vm129
    %vm134 = vcmp.ge.s32.totalorder %v102, 8
    %vm135 = vcmp.ge.s32.totalorder %v103, 8
    %vm136 = vcmp.ge.s32.totalorder %v104, 8
    %vm137 = vcmp.ge.s32.totalorder %v105, 8
    %vm138 = vcmp.lt.s32.totalorder %v102, 16
    %vm139 = vcmp.lt.s32.totalorder %v103, 16
    %vm140 = vcmp.lt.s32.totalorder %v104, 16
    %vm141 = vcmp.lt.s32.totalorder %v105, 16
    %vm142 = vmand %vm134, %vm138
    %vm143 = vmand %vm135, %vm139
    %vm144 = vmand %vm136, %vm140
    %vm145 = vmand %vm137, %vm141
    %vm146 = vcmp.ge.s32.totalorder %v78, 40
    %vm147 = vcmp.lt.s32.totalorder %v78, 48
    %vm148 = vmand %vm146, %vm147
    %vm149 = vmor %vm89, %vm148
    %vm150 = vcmp.ge.s32.totalorder %v78, 72
    %vm151 = vcmp.lt.s32.totalorder %v78, 80
    %vm152 = vmand %vm150, %vm151
    %vm153 = vmor %vm149, %vm152
    %vm154 = vcmp.ge.s32.totalorder %v78, 104
    %vm155 = vcmp.lt.s32.totalorder %v78, 112
    %vm156 = vmand %vm154, %vm155
    %vm157 = vmor %vm153, %vm156
    %vm158 = vmand %vm142, %vm157
    %vm159 = vmand %vm143, %vm157
    %vm160 = vmand %vm144, %vm157
    %vm161 = vmand %vm145, %vm157
    %vm162 = vmor %vm130, %vm158
    %vm163 = vmor %vm131, %vm159
    %vm164 = vmor %vm132, %vm160
    %vm165 = vmor %vm133, %vm161
    %vm166 = vcmp.ge.s32.totalorder %v102, 16
    %vm167 = vcmp.ge.s32.totalorder %v103, 16
    %vm168 = vcmp.ge.s32.totalorder %v104, 16
    %vm169 = vcmp.ge.s32.totalorder %v105, 16
    %vm170 = vcmp.lt.s32.totalorder %v102, 24
    %vm171 = vcmp.lt.s32.totalorder %v103, 24
    %vm172 = vcmp.lt.s32.totalorder %v104, 24
    %vm173 = vcmp.lt.s32.totalorder %v105, 24
    %vm174 = vmand %vm166, %vm170
    %vm175 = vmand %vm167, %vm171
    %vm176 = vmand %vm168, %vm172
    %vm177 = vmand %vm169, %vm173
    %vm178 = vcmp.ge.s32.totalorder %v78, 48
    %vm179 = vcmp.lt.s32.totalorder %v78, 56
    %vm180 = vmand %vm178, %vm179
    %vm181 = vmor %vm94, %vm180
    %vm182 = vcmp.ge.s32.totalorder %v78, 80
    %vm183 = vcmp.lt.s32.totalorder %v78, 88
    %vm184 = vmand %vm182, %vm183
    %vm185 = vmor %vm181, %vm184
    %vm186 = vcmp.ge.s32.totalorder %v78, 112
    %vm187 = vcmp.lt.s32.totalorder %v78, 120
    %vm188 = vmand %vm186, %vm187
    %vm189 = vmor %vm185, %vm188
    %vm190 = vmand %vm174, %vm189
    %vm191 = vmand %vm175, %vm189
    %vm192 = vmand %vm176, %vm189
    %vm193 = vmand %vm177, %vm189
    %vm194 = vmor %vm162, %vm190
    %vm195 = vmor %vm163, %vm191
    %vm196 = vmor %vm164, %vm192
    %vm197 = vmor %vm165, %vm193
    %vm198 = vcmp.ge.s32.totalorder %v102, 24
    %vm199 = vcmp.ge.s32.totalorder %v103, 24
    %vm200 = vcmp.ge.s32.totalorder %v104, 24
    %vm201 = vcmp.ge.s32.totalorder %v105, 24
    %vm202 = vcmp.lt.s32.totalorder %v102, 32
    %vm203 = vcmp.lt.s32.totalorder %v103, 32
    %vm204 = vcmp.lt.s32.totalorder %v104, 32
    %vm205 = vcmp.lt.s32.totalorder %v105, 32
    %vm206 = vmand %vm198, %vm202
    %vm207 = vmand %vm199, %vm203
    %vm208 = vmand %vm200, %vm204
    %vm209 = vmand %vm201, %vm205
    %vm210 = vcmp.ge.s32.totalorder %v78, 56
    %vm211 = vcmp.lt.s32.totalorder %v78, 64
    %vm212 = vmand %vm210, %vm211
    %vm213 = vmor %vm98, %vm212
    %vm214 = vcmp.ge.s32.totalorder %v78, 88
    %vm215 = vcmp.lt.s32.totalorder %v78, 96
    %vm216 = vmand %vm214, %vm215
    %vm217 = vmor %vm213, %vm216
    %vm218 = vcmp.ge.s32.totalorder %v78, 120
    %vm219 = vcmp.lt.s32.totalorder %v78, 128
    %vm220 = vmand %vm218, %vm219
    %vm221 = vmor %vm217, %vm220
    %vm222 = vmand %vm206, %vm221
    %vm223 = vmand %vm207, %vm221
    %vm224 = vmand %vm208, %vm221
    %vm225 = vmand %vm209, %vm221
    %vm226 = vmor %vm194, %vm222
    %vm227 = vmor %vm195, %vm223
    %vm228 = vmor %vm196, %vm224
    %vm229 = vmor %vm197, %vm225
    %v230 = vsel %vm226, 0.0, -1e+09
    %v231 = vsel %vm227, 0.0, -1e+09
    %v232 = vsel %vm228, 0.0, -1e+09
    %v233 = vsel %vm229, 0.0, -1e+09
    %v234 = vadd.s32 %v102, 32
    %v235 = vadd.s32 %v102, 40
    %v236 = vadd.s32 %v102, 48
    %v237 = vadd.s32 %v102, 56
    %v238 = vadd.s32 %v102, 64
    %v239 = vadd.s32 %v102, 72
    %v240 = vadd.s32 %v102, 80
    %v241 = vadd.s32 %v102, 88
    %v242 = vadd.s32 %v102, 96
    %v243 = vadd.s32 %v102, 104
    %v244 = vadd.s32 %v102, 112
    %v245 = vadd.s32 %v102, 120
    %vm246 = vcmp.ge.s32.totalorder %v234, 0
    %vm247 = vcmp.ge.s32.totalorder %v235, 0
    %vm248 = vcmp.ge.s32.totalorder %v236, 0
    %vm249 = vcmp.ge.s32.totalorder %v237, 0
    %vm250 = vcmp.ge.s32.totalorder %v238, 0
    %vm251 = vcmp.ge.s32.totalorder %v239, 0
    %vm252 = vcmp.ge.s32.totalorder %v240, 0
    %vm253 = vcmp.ge.s32.totalorder %v241, 0
    %vm254 = vcmp.ge.s32.totalorder %v242, 0
    %vm255 = vcmp.ge.s32.totalorder %v243, 0
    %vm256 = vcmp.ge.s32.totalorder %v244, 0
    %vm257 = vcmp.ge.s32.totalorder %v245, 0
    %vm258 = vcmp.lt.s32.totalorder %v234, 32
    %vm259 = vcmp.lt.s32.totalorder %v235, 32
    %vm260 = vcmp.lt.s32.totalorder %v236, 32
    %vm261 = vcmp.lt.s32.totalorder %v237, 32
    %vm262 = vcmp.lt.s32.totalorder %v238, 32
    %vm263 = vcmp.lt.s32.totalorder %v239, 32
    %vm264 = vcmp.lt.s32.totalorder %v240, 32
    %vm265 = vcmp.lt.s32.totalorder %v241, 32
    %vm266 = vcmp.lt.s32.totalorder %v242, 32
    %vm267 = vcmp.lt.s32.totalorder %v243, 32
    %vm268 = vcmp.lt.s32.totalorder %v244, 32
    %vm269 = vcmp.lt.s32.totalorder %v245, 32
    %vm270 = vmand %vm106, %vm202
    %vm271 = vmand %vm107, %vm203
    %vm272 = vmand %vm108, %vm204
    %vm273 = vmand %vm109, %vm205
    %vm274 = vmand %vm246, %vm258
    %vm275 = vmand %vm247, %vm259
    %vm276 = vmand %vm248, %vm260
    %vm277 = vmand %vm249, %vm261
    %vm278 = vmand %vm250, %vm262
    %vm279 = vmand %vm251, %vm263
    %vm280 = vmand %vm252, %vm264
    %vm281 = vmand %vm253, %vm265
    %vm282 = vmand %vm254, %vm266
    %vm283 = vmand %vm255, %vm267
    %vm284 = vmand %vm256, %vm268
    %vm285 = vmand %vm257, %vm269
    %vm286 = vmand %vm270, %vm84
    %vm287 = vmand %vm271, %vm84
    %vm288 = vmand %vm272, %vm84
    %vm289 = vmand %vm273, %vm84
    %vm290 = vmand %vm274, %vm84
    %vm291 = vmand %vm275, %vm84
    %vm292 = vmand %vm276, %vm84
    %vm293 = vmand %vm277, %vm84
    %vm294 = vmand %vm278, %vm84
    %vm295 = vmand %vm279, %vm84
    %vm296 = vmand %vm280, %vm84
    %vm297 = vmand %vm281, %vm84
    %vm298 = vmand %vm282, %vm84
    %vm299 = vmand %vm283, %vm84
    %vm300 = vmand %vm284, %vm84
    %vm301 = vmand %vm285, %vm84
    %vm302 = vmor %vm118, %vm286
    %vm303 = vmor %vm118, %vm287
    %vm304 = vmor %vm118, %vm288
    %vm305 = vmor %vm118, %vm289
    %vm306 = vmor %vm118, %vm290
    %vm307 = vmor %vm118, %vm291
    %vm308 = vmor %vm118, %vm292
    %vm309 = vmor %vm118, %vm293
    %vm310 = vmor %vm118, %vm294
    %vm311 = vmor %vm118, %vm295
    %vm312 = vmor %vm118, %vm296
    %vm313 = vmor %vm118, %vm297
    %vm314 = vmor %vm118, %vm298
    %vm315 = vmor %vm118, %vm299
    %vm316 = vmor %vm118, %vm300
    %vm317 = vmor %vm118, %vm301
    %vm318 = vcmp.ge.s32.totalorder %v102, 32
    %vm319 = vcmp.ge.s32.totalorder %v103, 32
    %vm320 = vcmp.ge.s32.totalorder %v104, 32
    %vm321 = vcmp.ge.s32.totalorder %v105, 32
    %vm322 = vcmp.ge.s32.totalorder %v234, 32
    %vm323 = vcmp.ge.s32.totalorder %v235, 32
    %vm324 = vcmp.ge.s32.totalorder %v236, 32
    %vm325 = vcmp.ge.s32.totalorder %v237, 32
    %vm326 = vcmp.ge.s32.totalorder %v238, 32
    %vm327 = vcmp.ge.s32.totalorder %v239, 32
    %vm328 = vcmp.ge.s32.totalorder %v240, 32
    %vm329 = vcmp.ge.s32.totalorder %v241, 32
    %vm330 = vcmp.ge.s32.totalorder %v242, 32
    %vm331 = vcmp.ge.s32.totalorder %v243, 32
    %vm332 = vcmp.ge.s32.totalorder %v244, 32
    %vm333 = vcmp.ge.s32.totalorder %v245, 32
    %vm334 = vcmp.lt.s32.totalorder %v102, 64
    %vm335 = vcmp.lt.s32.totalorder %v103, 64
    %vm336 = vcmp.lt.s32.totalorder %v104, 64
    %vm337 = vcmp.lt.s32.totalorder %v105, 64
    %vm338 = vcmp.lt.s32.totalorder %v234, 64
    %vm339 = vcmp.lt.s32.totalorder %v235, 64
    %vm340 = vcmp.lt.s32.totalorder %v236, 64
    %vm341 = vcmp.lt.s32.totalorder %v237, 64
    %vm342 = vcmp.lt.s32.totalorder %v238, 64
    %vm343 = vcmp.lt.s32.totalorder %v239, 64
    %vm344 = vcmp.lt.s32.totalorder %v240, 64
    %vm345 = vcmp.lt.s32.totalorder %v241, 64
    %vm346 = vcmp.lt.s32.totalorder %v242, 64
    %vm347 = vcmp.lt.s32.totalorder %v243, 64
    %vm348 = vcmp.lt.s32.totalorder %v244, 64
    %vm349 = vcmp.lt.s32.totalorder %v245, 64
    %vm350 = vmand %vm318, %vm334
    %vm351 = vmand %vm319, %vm335
    %vm352 = vmand %vm320, %vm336
    %vm353 = vmand %vm321, %vm337
    %vm354 = vmand %vm322, %vm338
    %vm355 = vmand %vm323, %vm339
    %vm356 = vmand %vm324, %vm340
    %vm357 = vmand %vm325, %vm341
    %vm358 = vmand %vm326, %vm342
    %vm359 = vmand %vm327, %vm343
    %vm360 = vmand %vm328, %vm344
    %vm361 = vmand %vm329, %vm345
    %vm362 = vmand %vm330, %vm346
    %vm363 = vmand %vm331, %vm347
    %vm364 = vmand %vm332, %vm348
    %vm365 = vmand %vm333, %vm349
    %vm366 = vmand %vm350, %vm89
    %vm367 = vmand %vm351, %vm89
    %vm368 = vmand %vm352, %vm89
    %vm369 = vmand %vm353, %vm89
    %vm370 = vmand %vm354, %vm89
    %vm371 = vmand %vm355, %vm89
    %vm372 = vmand %vm356, %vm89
    %vm373 = vmand %vm357, %vm89
    %vm374 = vmand %vm358, %vm89
    %vm375 = vmand %vm359, %vm89
    %vm376 = vmand %vm360, %vm89
    %vm377 = vmand %vm361, %vm89
    %vm378 = vmand %vm362, %vm89
    %vm379 = vmand %vm363, %vm89
    %vm380 = vmand %vm364, %vm89
    %vm381 = vmand %vm365, %vm89
    %vm382 = vmor %vm302, %vm366
    %vm383 = vmor %vm303, %vm367
    %vm384 = vmor %vm304, %vm368
    %vm385 = vmor %vm305, %vm369
    %vm386 = vmor %vm306, %vm370
    %vm387 = vmor %vm307, %vm371
    %vm388 = vmor %vm308, %vm372
    %vm389 = vmor %vm309, %vm373
    %vm390 = vmor %vm310, %vm374
    %vm391 = vmor %vm311, %vm375
    %vm392 = vmor %vm312, %vm376
    %vm393 = vmor %vm313, %vm377
    %vm394 = vmor %vm314, %vm378
    %vm395 = vmor %vm315, %vm379
    %vm396 = vmor %vm316, %vm380
    %vm397 = vmor %vm317, %vm381
    %vm398 = vcmp.ge.s32.totalorder %v102, 64
    %vm399 = vcmp.ge.s32.totalorder %v103, 64
    %vm400 = vcmp.ge.s32.totalorder %v104, 64
    %vm401 = vcmp.ge.s32.totalorder %v105, 64
    %vm402 = vcmp.ge.s32.totalorder %v234, 64
    %vm403 = vcmp.ge.s32.totalorder %v235, 64
    %vm404 = vcmp.ge.s32.totalorder %v236, 64
    %vm405 = vcmp.ge.s32.totalorder %v237, 64
    %vm406 = vcmp.ge.s32.totalorder %v238, 64
    %vm407 = vcmp.ge.s32.totalorder %v239, 64
    %vm408 = vcmp.ge.s32.totalorder %v240, 64
    %vm409 = vcmp.ge.s32.totalorder %v241, 64
    %vm410 = vcmp.ge.s32.totalorder %v242, 64
    %vm411 = vcmp.ge.s32.totalorder %v243, 64
    %vm412 = vcmp.ge.s32.totalorder %v244, 64
    %vm413 = vcmp.ge.s32.totalorder %v245, 64
    %vm414 = vcmp.lt.s32.totalorder %v102, 96
    %vm415 = vcmp.lt.s32.totalorder %v103, 96
    %vm416 = vcmp.lt.s32.totalorder %v104, 96
    %vm417 = vcmp.lt.s32.totalorder %v105, 96
    %vm418 = vcmp.lt.s32.totalorder %v234, 96
    %vm419 = vcmp.lt.s32.totalorder %v235, 96
    %vm420 = vcmp.lt.s32.totalorder %v236, 96
    %vm421 = vcmp.lt.s32.totalorder %v237, 96
    %vm422 = vcmp.lt.s32.totalorder %v238, 96
    %vm423 = vcmp.lt.s32.totalorder %v239, 96
    %vm424 = vcmp.lt.s32.totalorder %v240, 96
    %vm425 = vcmp.lt.s32.totalorder %v241, 96
    %vm426 = vcmp.lt.s32.totalorder %v242, 96
    %vm427 = vcmp.lt.s32.totalorder %v243, 96
    %vm428 = vcmp.lt.s32.totalorder %v244, 96
    %vm429 = vcmp.lt.s32.totalorder %v245, 96
    %vm430 = vmand %vm398, %vm414
    %vm431 = vmand %vm399, %vm415
    %vm432 = vmand %vm400, %vm416
    %vm433 = vmand %vm401, %vm417
    %vm434 = vmand %vm402, %vm418
    %vm435 = vmand %vm403, %vm419
    %vm436 = vmand %vm404, %vm420
    %vm437 = vmand %vm405, %vm421
    %vm438 = vmand %vm406, %vm422
    %vm439 = vmand %vm407, %vm423
    %vm440 = vmand %vm408, %vm424
    %vm441 = vmand %vm409, %vm425
    %vm442 = vmand %vm410, %vm426
    %vm443 = vmand %vm411, %vm427
    %vm444 = vmand %vm412, %vm428
    %vm445 = vmand %vm413, %vm429
    %vm446 = vmand %vm430, %vm94
    %vm447 = vmand %vm431, %vm94
    %vm448 = vmand %vm432, %vm94
    %vm449 = vmand %vm433, %vm94
    %vm450 = vmand %vm434, %vm94
    %vm451 = vmand %vm435, %vm94
    %vm452 = vmand %vm436, %vm94
    %vm453 = vmand %vm437, %vm94
    %vm454 = vmand %vm438, %vm94
    %vm455 = vmand %vm439, %vm94
    %vm456 = vmand %vm440, %vm94
    %vm457 = vmand %vm441, %vm94
    %vm458 = vmand %vm442, %vm94
    %vm459 = vmand %vm443, %vm94
    %vm460 = vmand %vm444, %vm94
    %vm461 = vmand %vm445, %vm94
    %vm462 = vmor %vm382, %vm446
    %vm463 = vmor %vm383, %vm447
    %vm464 = vmor %vm384, %vm448
    %vm465 = vmor %vm385, %vm449
    %vm466 = vmor %vm386, %vm450
    %vm467 = vmor %vm387, %vm451
    %vm468 = vmor %vm388, %vm452
    %vm469 = vmor %vm389, %vm453
    %vm470 = vmor %vm390, %vm454
    %vm471 = vmor %vm391, %vm455
    %vm472 = vmor %vm392, %vm456
    %vm473 = vmor %vm393, %vm457
    %vm474 = vmor %vm394, %vm458
    %vm475 = vmor %vm395, %vm459
    %vm476 = vmor %vm396, %vm460
    %vm477 = vmor %vm397, %vm461
    %vm478 = vcmp.ge.s32.totalorder %v102, 96
    %vm479 = vcmp.ge.s32.totalorder %v103, 96
    %vm480 = vcmp.ge.s32.totalorder %v104, 96
    %vm481 = vcmp.ge.s32.totalorder %v105, 96
    %vm482 = vcmp.ge.s32.totalorder %v234, 96
    %vm483 = vcmp.ge.s32.totalorder %v235, 96
    %vm484 = vcmp.ge.s32.totalorder %v236, 96
    %vm485 = vcmp.ge.s32.totalorder %v237, 96
    %vm486 = vcmp.ge.s32.totalorder %v238, 96
    %vm487 = vcmp.ge.s32.totalorder %v239, 96
    %vm488 = vcmp.ge.s32.totalorder %v240, 96
    %vm489 = vcmp.ge.s32.totalorder %v241, 96
    %vm490 = vcmp.ge.s32.totalorder %v242, 96
    %vm491 = vcmp.ge.s32.totalorder %v243, 96
    %vm492 = vcmp.ge.s32.totalorder %v244, 96
    %vm493 = vcmp.ge.s32.totalorder %v245, 96
    %vm494 = vcmp.lt.s32.totalorder %v102, 128
    %vm495 = vcmp.lt.s32.totalorder %v103, 128
    %vm496 = vcmp.lt.s32.totalorder %v104, 128
    %vm497 = vcmp.lt.s32.totalorder %v105, 128
    %vm498 = vcmp.lt.s32.totalorder %v234, 128
    %vm499 = vcmp.lt.s32.totalorder %v235, 128
    %vm500 = vcmp.lt.s32.totalorder %v236, 128
    %vm501 = vcmp.lt.s32.totalorder %v237, 128
    %vm502 = vcmp.lt.s32.totalorder %v238, 128
    %vm503 = vcmp.lt.s32.totalorder %v239, 128
    %vm504 = vcmp.lt.s32.totalorder %v240, 128
    %vm505 = vcmp.lt.s32.totalorder %v241, 128
    %vm506 = vcmp.lt.s32.totalorder %v242, 128
    %vm507 = vcmp.lt.s32.totalorder %v243, 128
    %vm508 = vcmp.lt.s32.totalorder %v244, 128
    %vm509 = vcmp.lt.s32.totalorder %v245, 128
    %vm510 = vmand %vm478, %vm494
    %vm511 = vmand %vm479, %vm495
    %vm512 = vmand %vm480, %vm496
    %vm513 = vmand %vm481, %vm497
    %vm514 = vmand %vm482, %vm498
    %vm515 = vmand %vm483, %vm499
    %vm516 = vmand %vm484, %vm500
    %vm517 = vmand %vm485, %vm501
    %vm518 = vmand %vm486, %vm502
    %vm519 = vmand %vm487, %vm503
    %vm520 = vmand %vm488, %vm504
    %vm521 = vmand %vm489, %vm505
    %vm522 = vmand %vm490, %vm506
    %vm523 = vmand %vm491, %vm507
    %vm524 = vmand %vm492, %vm508
    %vm525 = vmand %vm493, %vm509
    %vm526 = vmand %vm510, %vm98
    %vm527 = vmand %vm511, %vm98
    %vm528 = vmand %vm512, %vm98
    %vm529 = vmand %vm513, %vm98
    %vm530 = vmand %vm514, %vm98
    %vm531 = vmand %vm515, %vm98
    %vm532 = vmand %vm516, %vm98
    %vm533 = vmand %vm517, %vm98
    %vm534 = vmand %vm518, %vm98
    %vm535 = vmand %vm519, %vm98
    %vm536 = vmand %vm520, %vm98
    %vm537 = vmand %vm521, %vm98
    %vm538 = vmand %vm522, %vm98
    %vm539 = vmand %vm523, %vm98
    %vm540 = vmand %vm524, %vm98
    %vm541 = vmand %vm525, %vm98
    %vm542 = vmor %vm462, %vm526
    %vm543 = vmor %vm463, %vm527
    %vm544 = vmor %vm464, %vm528
    %vm545 = vmor %vm465, %vm529
    %vm546 = vmor %vm466, %vm530
    %vm547 = vmor %vm467, %vm531
    %vm548 = vmor %vm468, %vm532
    %vm549 = vmor %vm469, %vm533
    %vm550 = vmor %vm470, %vm534
    %vm551 = vmor %vm471, %vm535
    %vm552 = vmor %vm472, %vm536
    %vm553 = vmor %vm473, %vm537
    %vm554 = vmor %vm474, %vm538
    %vm555 = vmor %vm475, %vm539
    %vm556 = vmor %vm476, %vm540
    %vm557 = vmor %vm477, %vm541
    %v558 = vsel %vm542, 1, 0
    %v559 = vsel %vm543, 1, 0
    %v560 = vsel %vm544, 1, 0
    %v561 = vsel %vm545, 1, 0
    %v562 = vsel %vm546, 1, 0
    %v563 = vsel %vm547, 1, 0
    %v564 = vsel %vm548, 1, 0
    %v565 = vsel %vm549, 1, 0
    %v566 = vsel %vm550, 1, 0
    %v567 = vsel %vm551, 1, 0
    %v568 = vsel %vm552, 1, 0
    %v569 = vsel %vm553, 1, 0
    %v570 = vsel %vm554, 1, 0
    %v571 = vsel %vm555, 1, 0
    %v572 = vsel %vm556, 1, 0
    %v573 = vsel %vm557, 1, 0
    %v574 = vcvt.s32.f32 %v558
    %v575 = vcvt.s32.f32 %v559
    %v576 = vcvt.s32.f32 %v560
    %v577 = vcvt.s32.f32 %v561
    %v578 = vcvt.s32.f32 %v562
    %v579 = vcvt.s32.f32 %v563
    %v580 = vcvt.s32.f32 %v564
    %v581 = vcvt.s32.f32 %v565
    %v582 = vcvt.s32.f32 %v566
    %v583 = vcvt.s32.f32 %v567
    %v584 = vcvt.s32.f32 %v568
    %v585 = vcvt.s32.f32 %v569
    %v586 = vcvt.s32.f32 %v570
    %v587 = vcvt.s32.f32 %v571
    %v588 = vcvt.s32.f32 %v572
    %v589 = vcvt.s32.f32 %v573
    %v590 = vld [vmem:[#allocation5] sm:$0xff]
    %v591 = vld [vmem:[#allocation5 + $0x8] sm:$0xff]
    %v592 = vld [vmem:[#allocation5 + $0x10] sm:$0xff]
    %v593 = vld [vmem:[#allocation5 + $0x18] sm:$0xff]
    %v594 = vld [vmem:[#allocation5 + $0x20] sm:$0xff]
    %v595 = vld [vmem:[#allocation5 + $0x28] sm:$0xff]
    %v596 = vld [vmem:[#allocation5 + $0x30] sm:$0xff]
    %v597 = vld [vmem:[#allocation5 + $0x38] sm:$0xff]
    %v598 = vld [vmem:[#allocation5 + $0x40] sm:$0xff]
    %v599 = vld [vmem:[#allocation5 + $0x48] sm:$0xff]
    %v600 = vld [vmem:[#allocation5 + $0x50] sm:$0xff]
    %v601 = vld [vmem:[#allocation5 + $0x58] sm:$0xff]
    %v602 = vld [vmem:[#allocation5 + $0x60] sm:$0xff]
    %v603 = vld [vmem:[#allocation5 + $0x68] sm:$0xff]
    %v604 = vld [vmem:[#allocation5 + $0x70] sm:$0xff]
    %v605 = vld [vmem:[#allocation5 + $0x78] sm:$0xff]
    %v606 = vld [vmem:[#allocation5 + $0x80] sm:$0xff]
    %v607 = vld [vmem:[#allocation5 + $0x88] sm:$0xff]
    %v608 = vld [vmem:[#allocation5 + $0x90] sm:$0xff]
    %v609 = vld [vmem:[#allocation5 + $0x98] sm:$0xff]
    %v610 = vld [vmem:[#allocation5 + $0xa0] sm:$0xff]
    %v611 = vld [vmem:[#allocation5 + $0xa8] sm:$0xff]
    %v612 = vld [vmem:[#allocation5 + $0xb0] sm:$0xff]
    %v613 = vld [vmem:[#allocation5 + $0xb8] sm:$0xff]
    %v614 = vld [vmem:[#allocation5 + $0xc0] sm:$0xff]
    %v615 = vld [vmem:[#allocation5 + $0xc8] sm:$0xff]
    %v616 = vld [vmem:[#allocation5 + $0xd0] sm:$0xff]
    %v617 = vld [vmem:[#allocation5 + $0xd8] sm:$0xff]
    %v618 = vld [vmem:[#allocation5 + $0xe0] sm:$0xff]
    %v619 = vld [vmem:[#allocation5 + $0xe8] sm:$0xff]
    %v620 = vld [vmem:[#allocation5 + $0xf0] sm:$0xff]
    %v621 = vld [vmem:[#allocation5 + $0xf8] sm:$0xff]
    %v622 = vld [vmem:[#allocation5 + $0x100] sm:$0xff]
    %v623 = vld [vmem:[#allocation5 + $0x108] sm:$0xff]
    %v624 = vld [vmem:[#allocation5 + $0x110] sm:$0xff]
    %v625 = vld [vmem:[#allocation5 + $0x118] sm:$0xff]
    %v626 = vld [vmem:[#allocation5 + $0x120] sm:$0xff]
    %v627 = vld [vmem:[#allocation5 + $0x128] sm:$0xff]
    %v628 = vld [vmem:[#allocation5 + $0x130] sm:$0xff]
    %v629 = vld [vmem:[#allocation5 + $0x138] sm:$0xff]
    %v630 = vld [vmem:[#allocation5 + $0x140] sm:$0xff]
    %v631 = vld [vmem:[#allocation5 + $0x148] sm:$0xff]
    %v632 = vld [vmem:[#allocation5 + $0x150] sm:$0xff]
    %v633 = vld [vmem:[#allocation5 + $0x158] sm:$0xff]
    %v634 = vld [vmem:[#allocation5 + $0x160] sm:$0xff]
    %v635 = vld [vmem:[#allocation5 + $0x168] sm:$0xff]
    %v636 = vld [vmem:[#allocation5 + $0x170] sm:$0xff]
    %v637 = vld [vmem:[#allocation5 + $0x178] sm:$0xff]
    %v638 = vld [vmem:[#allocation7] sm:$0xff]
    %v639 = vld [vmem:[#allocation7 + $0x8] sm:$0xff]
    %v640 = vld [vmem:[#allocation7 + $0x10] sm:$0xff]
    %v641 = vld [vmem:[#allocation7 + $0x18] sm:$0xff]
    %v642 = vld [vmem:[#allocation7 + $0x20] sm:$0xff]
    %v643 = vld [vmem:[#allocation7 + $0x28] sm:$0xff]
    %v644 = vld [vmem:[#allocation7 + $0x30] sm:$0xff]
    %v645 = vld [vmem:[#allocation7 + $0x38] sm:$0xff]
    %v646 = vld [vmem:[#allocation7 + $0x40] sm:$0xff]
    %v647 = vld [vmem:[#allocation7 + $0x48] sm:$0xff]
    %v648 = vld [vmem:[#allocation7 + $0x50] sm:$0xff]
    %v649 = vld [vmem:[#allocation7 + $0x58] sm:$0xff]
    %v650 = vld [vmem:[#allocation7 + $0x60] sm:$0xff]
    %v651 = vld [vmem:[#allocation7 + $0x68] sm:$0xff]
    %v652 = vld [vmem:[#allocation7 + $0x70] sm:$0xff]
    %v653 = vld [vmem:[#allocation7 + $0x78] sm:$0xff]
    %v654 = vld [vmem:[#allocation7 + $0x80] sm:$0xff]
    %v655 = vld [vmem:[#allocation7 + $0x88] sm:$0xff]
    %v656 = vld [vmem:[#allocation7 + $0x90] sm:$0xff]
    %v657 = vld [vmem:[#allocation7 + $0x98] sm:$0xff]
    %v658 = vld [vmem:[#allocation7 + $0xa0] sm:$0xff]
    %v659 = vld [vmem:[#allocation7 + $0xa8] sm:$0xff]
    %v660 = vld [vmem:[#allocation7 + $0xb0] sm:$0xff]
    %v661 = vld [vmem:[#allocation7 + $0xb8] sm:$0xff]
    %v662 = vld [vmem:[#allocation7 + $0xc0] sm:$0xff]
    %v663 = vld [vmem:[#allocation7 + $0xc8] sm:$0xff]
    %v664 = vld [vmem:[#allocation7 + $0xd0] sm:$0xff]
    %v665 = vld [vmem:[#allocation7 + $0xd8] sm:$0xff]
    %v666 = vld [vmem:[#allocation7 + $0xe0] sm:$0xff]
    %v667 = vld [vmem:[#allocation7 + $0xe8] sm:$0xff]
    %v668 = vld [vmem:[#allocation7 + $0xf0] sm:$0xff]
    %v669 = vld [vmem:[#allocation7 + $0xf8] sm:$0xff]
    %v670 = vld [vmem:[#allocation7 + $0x100] sm:$0xff]
    %v671 = vld [vmem:[#allocation7 + $0x108] sm:$0xff]
    %v672 = vld [vmem:[#allocation7 + $0x110] sm:$0xff]
    %v673 = vld [vmem:[#allocation7 + $0x118] sm:$0xff]
    %v674 = vld [vmem:[#allocation7 + $0x120] sm:$0xff]
    %v675 = vld [vmem:[#allocation7 + $0x128] sm:$0xff]
    %v676 = vld [vmem:[#allocation7 + $0x130] sm:$0xff]
    %v677 = vld [vmem:[#allocation7 + $0x138] sm:$0xff]
    %v678 = vld [vmem:[#allocation7 + $0x140] sm:$0xff]
    %v679 = vld [vmem:[#allocation7 + $0x148] sm:$0xff]
    %v680 = vld [vmem:[#allocation7 + $0x150] sm:$0xff]
    %v681 = vld [vmem:[#allocation7 + $0x158] sm:$0xff]
    %v682 = vld [vmem:[#allocation7 + $0x160] sm:$0xff]
    %v683 = vld [vmem:[#allocation7 + $0x168] sm:$0xff]
    %v684 = vld [vmem:[#allocation7 + $0x170] sm:$0xff]
    %v685 = vld [vmem:[#allocation7 + $0x178] sm:$0xff]
    %v686 = vld [vmem:[#allocation8] sm:$0x1]
    %v687 = vld [vmem:[#allocation8 + $0x1] sm:$0x1]
    %v688 = vld [vmem:[#allocation8 + $0x2] sm:$0x1]
    %v689 = vld [vmem:[#allocation8 + $0x3] sm:$0x1]
    %v690 = vld [vmem:[#allocation8 + $0x4] sm:$0x1]
    %v691 = vld [vmem:[#allocation8 + $0x5] sm:$0x1]
    %v692 = vld [vmem:[#allocation8 + $0x6] sm:$0x1]
    %v693 = vld [vmem:[#allocation8 + $0x7] sm:$0x1]
    %v694 = vld [vmem:[#allocation8 + $0x8] sm:$0x1]
    %v695 = vld [vmem:[#allocation8 + $0x9] sm:$0x1]
    %696 = vmatprep.subr.mxu0 %v591
    %697 = vmatpush1.msra.mxu0 %v590
    %698 = vmatprep.subr.mxu0 %v594
    %699 = vmatpush1.msra.mxu0 %v593
    %700 = vmatprep.subr.mxu0 %v597
    %701 = vmatpush1.msra.mxu0 %v596
    %702 = vmatprep.subr.mxu0 %v600
    %703 = vmatpush1.msra.mxu0 %v599
    %704 = vmatprep.subr.mxu0 %v603
    %705 = vmatpush1.msra.mxu0 %v602
    %706 = vmatprep.subr.mxu0 %v606
    %707 = vmatpush1.msra.mxu0 %v605
    %708 = vmatprep.subr.mxu0 %v609
    %709 = vmatpush1.msra.mxu0 %v608
    %710 = vmatprep.subr.mxu0 %v612
    %711 = vmatpush1.msra.mxu0 %v611
    %712 = vmatprep.subr.mxu0 %v615
    %713 = vmatpush1.msra.mxu0 %v614
    %714 = vmatprep.subr.mxu0 %v618
    %715 = vmatpush1.msra.mxu0 %v617
    %716 = vmatprep.subr.mxu0 %v621
    %717 = vmatpush1.msra.mxu0 %v620
    %718 = vmatprep.subr.mxu0 %v624
    %719 = vmatpush1.msra.mxu0 %v623
    %720 = vmatprep.subr.mxu0 %v627
    %721 = vmatpush1.msra.mxu0 %v626
    %722 = vmatprep.subr.mxu0 %v630
    %723 = vmatpush1.msra.mxu0 %v629
    %724 = vmatprep.subr.mxu0 %v633
    %725 = vmatpush1.msra.mxu0 %v632
    %726 = vmatprep.subr.mxu0 %v636
    %727 = vmatpush1.msra.mxu0 %v635
    %728 = vmatprep.subr.mxu0 0.0
    %729 = vmatpush1.msra.mxu0 0.0
    %730 = vmatprep.subr.mxu0 0.0
    %731 = vmatpush1.msra.mxu0 0.0
    %732 = vmatprep.subr.mxu0 0.0
    %733 = vmatpush1.msra.mxu0 0.0
    %734 = vmatprep.subr.mxu0 0.0
    %735 = vmatpush1.msra.mxu0 0.0
    %736 = vmatprep.subr.mxu0 0.0
    %737 = vmatpush1.msra.mxu0 0.0
    %738 = vmatprep.subr.mxu0 0.0
    %739 = vmatpush1.msra.mxu0 0.0
    %740 = vmatprep.subr.mxu0 0.0
    %741 = vmatpush1.msra.mxu0 0.0
    %742 = vmatprep.subr.mxu0 0.0
    %743 = vmatpush1.msra.mxu0 0.0
    %744 = vmatprep.subr.mxu0 0.0
    %745 = vmatpush1.msra.mxu0 0.0
    %746 = vmatprep.subr.mxu0 0.0
    %747 = vmatpush1.msra.mxu0 0.0
    %748 = vmatprep.subr.mxu0 0.0
    %749 = vmatpush1.msra.mxu0 0.0
    %750 = vmatprep.subr.mxu0 0.0
    %751 = vmatpush1.msra.mxu0 0.0
    %752 = vmatprep.subr.mxu0 0.0
    %753 = vmatpush1.msra.mxu0 0.0
    %754 = vmatprep.subr.mxu0 0.0
    %755 = vmatpush1.msra.mxu0 0.0
    %756 = vmatprep.subr.mxu0 0.0
    %757 = vmatpush1.msra.mxu0 0.0
    %758 = vmatprep.subr.mxu0 0.0
    %759 = vmatpush1.msra.mxu0 0.0
    %760 = vmatprep.mubr.f32.mxu0 0.0
    %761 = vmatmul.mubr.f32.gmra.mrb[0].mxu0 %v73
    %v762 = vpop.f32.mrb[0].mxu0
    %v763 = vadd.f32 0.0, %v762
    %v764 = vpop.f32.mrb[0].mxu0
    %v765 = vadd.f32 0.0, %v764
    %766 = vmatprep.mubr.f32.mxu0 0.0
    %767 = vmatmul.mubr.f32.gmra.mrb[0].mxu0 %v74
    %v768 = vpop.f32.mrb[0].mxu0
    %v769 = vadd.f32 0.0, %v768
    %v770 = vpop.f32.mrb[0].mxu0
    %v771 = vadd.f32 0.0, %v770
    %772 = vmatprep.mubr.f32.mxu0 0.0
    %773 = vmatmul.mubr.f32.gmra.mrb[0].mxu0 %v75
    %v774 = vpop.f32.mrb[0].mxu0
    %v775 = vadd.f32 0.0, %v774
    %v776 = vpop.f32.mrb[0].mxu0
    %v777 = vadd.f32 0.0, %v776
    %778 = vmatprep.mubr.f32.mxu0 0.0
    %779 = vmatmul.mubr.f32.gmra.mrb[0].mxu0 %v76
    %v780 = vpop.f32.mrb[0].mxu0
    %v781 = vadd.f32 0.0, %v780
    %v782 = vpop.f32.mrb[0].mxu0
    %v783 = vadd.f32 0.0, %v782
    %784 = vdwg.mxu0
    %785 = vmatprep.subr.mxu0 0.0
    %786 = vmatpush1.msra.mxu0 %v592
    %787 = vmatprep.subr.mxu0 0.0
    %788 = vmatpush1.msra.mxu0 %v595
    %789 = vmatprep.subr.mxu0 0.0
    %790 = vmatpush1.msra.mxu0 %v598
    %791 = vmatprep.subr.mxu0 0.0
    %792 = vmatpush1.msra.mxu0 %v601
    %793 = vmatprep.subr.mxu0 0.0
    %794 = vmatpush1.msra.mxu0 %v604
    %795 = vmatprep.subr.mxu0 0.0
    %796 = vmatpush1.msra.mxu0 %v607
    %797 = vmatprep.subr.mxu0 0.0
    %798 = vmatpush1.msra.mxu0 %v610
    %799 = vmatprep.subr.mxu0 0.0
    %800 = vmatpush1.msra.mxu0 %v613
    %801 = vmatprep.subr.mxu0 0.0
    %802 = vmatpush1.msra.mxu0 %v616
    %803 = vmatprep.subr.mxu0 0.0
    %804 = vmatpush1.msra.mxu0 %v619
    %805 = vmatprep.subr.mxu0 0.0
    %806 = vmatpush1.msra.mxu0 %v622
    %807 = vmatprep.subr.mxu0 0.0
    %808 = vmatpush1.msra.mxu0 %v625
    %809 = vmatprep.subr.mxu0 0.0
    %810 = vmatpush1.msra.mxu0 %v628
    %811 = vmatprep.subr.mxu0 0.0
    %812 = vmatpush1.msra.mxu0 %v631
    %813 = vmatprep.subr.mxu0 0.0
    %814 = vmatpush1.msra.mxu0 %v634
    %815 = vmatprep.subr.mxu0 0.0
    %816 = vmatpush1.msra.mxu0 %v637
    %817 = vmatprep.subr.mxu0 0.0
    %818 = vmatpush1.msra.mxu0 0.0
    %819 = vmatprep.subr.mxu0 0.0
    %820 = vmatpush1.msra.mxu0 0.0
    %821 = vmatprep.subr.mxu0 0.0
    %822 = vmatpush1.msra.mxu0 0.0
    %823 = vmatprep.subr.mxu0 0.0
    %824 = vmatpush1.msra.mxu0 0.0
    %825 = vmatprep.subr.mxu0 0.0
    %826 = vmatpush1.msra.mxu0 0.0
    %827 = vmatprep.subr.mxu0 0.0
    %828 = vmatpush1.msra.mxu0 0.0
    %829 = vmatprep.subr.mxu0 0.0
    %830 = vmatpush1.msra.mxu0 0.0
    %831 = vmatprep.subr.mxu0 0.0
    %832 = vmatpush1.msra.mxu0 0.0
    %833 = vmatprep.subr.mxu0 0.0
    %834 = vmatpush1.msra.mxu0 0.0
    %835 = vmatprep.subr.mxu0 0.0
    %836 = vmatpush1.msra.mxu0 0.0
    %837 = vmatprep.subr.mxu0 0.0
    %838 = vmatpush1.msra.mxu0 0.0
    %839 = vmatprep.subr.mxu0 0.0
    %840 = vmatpush1.msra.mxu0 0.0
    %841 = vmatprep.subr.mxu0 0.0
    %842 = vmatpush1.msra.mxu0 0.0
    %843 = vmatprep.subr.mxu0 0.0
    %844 = vmatpush1.msra.mxu0 0.0
    %845 = vmatprep.subr.mxu0 0.0
    %846 = vmatpush1.msra.mxu0 0.0
    %847 = vmatprep.subr.mxu0 0.0
    %848 = vmatpush1.msra.mxu0 0.0
    %849 = vmatprep.mubr.f32.mxu0 0.0
    %850 = vmatmul.mubr.f32.gmra.mrb[0].mxu0 %v73
    %v851 = vpop.f32.mrb[0].mxu0
    %v852 = vadd.f32 0.0, %v851
    %v853 = vpop.f32.mrb[0].mxu0
    %854 = vmatprep.mubr.f32.mxu0 0.0
    %855 = vmatmul.mubr.f32.gmra.mrb[0].mxu0 %v74
    %v856 = vpop.f32.mrb[0].mxu0
    %v857 = vadd.f32 0.0, %v856
    %v858 = vpop.f32.mrb[0].mxu0
    %859 = vmatprep.mubr.f32.mxu0 0.0
    %860 = vmatmul.mubr.f32.gmra.mrb[0].mxu0 %v75
    %v861 = vpop.f32.mrb[0].mxu0
    %v862 = vadd.f32 0.0, %v861
    %v863 = vpop.f32.mrb[0].mxu0
    %864 = vmatprep.mubr.f32.mxu0 0.0
    %865 = vmatmul.mubr.f32.gmra.mrb[0].mxu0 %v76
    %v866 = vpop.f32.mrb[0].mxu0
    %v867 = vadd.f32 0.0, %v866
    %v868 = vpop.f32.mrb[0].mxu0
    %869 = vdwg.mxu0
    %v870 = vlaneseq
    %v871 = vshrl.u32 %v870, 7
    %v872 = vsub.s32 0, %v871
    %v873 = vrot.slane %v686, %v872
    %v874 = vadd.f32 %v763, %v873
    %v875 = vadd.f32 %v769, %v873
    %v876 = vadd.f32 %v775, %v873
    %v877 = vadd.f32 %v781, %v873
    %v878 = vlaneseq
    %v879 = vshrl.u32 %v878, 7
    %v880 = vsub.s32 0, %v879
    %v881 = vrot.slane %v687, %v880
    %v882 = vadd.f32 %v765, %v881
    %v883 = vadd.f32 %v771, %v881
    %v884 = vadd.f32 %v777, %v881
    %v885 = vadd.f32 %v783, %v881
    %v886 = vlaneseq
    %v887 = vshrl.u32 %v886, 7
    %v888 = vsub.s32 0, %v887
    %v889 = vrot.slane %v688, %v888
    %v890 = vadd.f32 %v852, %v889
    %v891 = vadd.f32 %v857, %v889
    %v892 = vadd.f32 %v862, %v889
    %v893 = vadd.f32 %v867, %v889
    %v894 = vmul.f32 %v882, %v86
    %v895 = vmul.f32 %v883, %v86
    %v896 = vmul.f32 %v884, %v86
    %v897 = vmul.f32 %v885, %v86
    %v898 = vmul.f32 %v882, %v91
    %v899 = vmul.f32 %v883, %v91
    %v900 = vmul.f32 %v884, %v91
    %v901 = vmul.f32 %v885, %v91
    %v902 = vmul.f32 %v882, %v96
    %v903 = vmul.f32 %v883, %v96
    %v904 = vmul.f32 %v884, %v96
    %v905 = vmul.f32 %v885, %v96
    %v906 = vmul.f32 %v882, %v100
    %v907 = vmul.f32 %v883, %v100
    %v908 = vmul.f32 %v884, %v100
    %v909 = vmul.f32 %v885, %v100
    %v910 = vmul.f32 %v890, %v86
    %v911 = vmul.f32 %v891, %v86
    %v912 = vmul.f32 %v892, %v86
    %v913 = vmul.f32 %v893, %v86
    %v914 = vmul.f32 %v890, %v91
    %v915 = vmul.f32 %v891, %v91
    %v916 = vmul.f32 %v892, %v91
    %v917 = vmul.f32 %v893, %v91
    %v918 = vmul.f32 %v890, %v96
    %v919 = vmul.f32 %v891, %v96
    %v920 = vmul.f32 %v892, %v96
    %v921 = vmul.f32 %v893, %v96
    %v922 = vmul.f32 %v890, %v100
    %v923 = vmul.f32 %v891, %v100
    %v924 = vmul.f32 %v892, %v100
    %v925 = vmul.f32 %v893, %v100
    %926 = vmatprep.subr.mxu0 0.0
    %927 = vmatpush1.xpose.msra.mxu0 %v894
    %928 = vmatprep.subr.mxu0 0.0
    %929 = vmatpush1.xpose.msra.mxu0 %v895
    %930 = vmatprep.subr.mxu0 0.0
    %931 = vmatpush1.xpose.msra.mxu0 %v896
    %932 = vmatprep.subr.mxu0 0.0
    %933 = vmatpush1.xpose.msra.mxu0 %v897
    %934 = vmatprep.subr.mxu0 0.0
    %935 = vmatpush1.xpose.msra.mxu0 %v898
    %936 = vmatprep.subr.mxu0 0.0
    %937 = vmatpush1.xpose.msra.mxu0 %v899
    %938 = vmatprep.subr.mxu0 0.0
    %939 = vmatpush1.xpose.msra.mxu0 %v900
    %940 = vmatprep.subr.mxu0 0.0
    %941 = vmatpush1.xpose.msra.mxu0 %v901
    %942 = vmatprep.subr.mxu0 0.0
    %943 = vmatpush1.xpose.msra.mxu0 %v902
    %944 = vmatprep.subr.mxu0 0.0
    %945 = vmatpush1.xpose.msra.mxu0 %v903
    %946 = vmatprep.subr.mxu0 0.0
    %947 = vmatpush1.xpose.msra.mxu0 %v904
    %948 = vmatprep.subr.mxu0 0.0
    %949 = vmatpush1.xpose.msra.mxu0 %v905
    %950 = vmatprep.subr.mxu0 0.0
    %951 = vmatpush1.xpose.msra.mxu0 %v906
    %952 = vmatprep.subr.mxu0 0.0
    %953 = vmatpush1.xpose.msra.mxu0 %v907
    %954 = vmatprep.subr.mxu0 0.0
    %955 = vmatpush1.xpose.msra.mxu0 %v908
    %956 = vmatprep.subr.mxu0 0.0
    %957 = vmatpush1.xpose.msra.mxu0 %v909
    %958 = vmatprep.subr.mxu0 0.0
    %959 = vmatpush1.xpose.msra.mxu0 0.0
    %960 = vmatprep.subr.mxu0 0.0
    %961 = vmatpush1.xpose.msra.mxu0 0.0
    %962 = vmatprep.subr.mxu0 0.0
    %963 = vmatpush1.xpose.msra.mxu0 0.0
    %964 = vmatprep.subr.mxu0 0.0
    %965 = vmatpush1.xpose.msra.mxu0 0.0
    %966 = vmatprep.subr.mxu0 0.0
    %967 = vmatpush1.xpose.msra.mxu0 0.0
    %968 = vmatprep.subr.mxu0 0.0
    %969 = vmatpush1.xpose.msra.mxu0 0.0
    %970 = vmatprep.subr.mxu0 0.0
    %971 = vmatpush1.xpose.msra.mxu0 0.0
    %972 = vmatprep.subr.mxu0 0.0
    %973 = vmatpush1.xpose.msra.mxu0 0.0
    %974 = vmatprep.subr.mxu0 0.0
    %975 = vmatpush1.xpose.msra.mxu0 0.0
    %976 = vmatprep.subr.mxu0 0.0
    %977 = vmatpush1.xpose.msra.mxu0 0.0
    %978 = vmatprep.subr.mxu0 0.0
    %979 = vmatpush1.xpose.msra.mxu0 0.0
    %980 = vmatprep.subr.mxu0 0.0
    %981 = vmatpush1.xpose.msra.mxu0 0.0
    %982 = vmatprep.subr.mxu0 0.0
    %983 = vmatpush1.xpose.msra.mxu0 0.0
    %984 = vmatprep.subr.mxu0 0.0
    %985 = vmatpush1.xpose.msra.mxu0 0.0
    %986 = vmatprep.subr.mxu0 0.0
    %987 = vmatpush1.xpose.msra.mxu0 0.0
    %988 = vmatprep.subr.mxu0 0.0
    %989 = vmatpush1.xpose.msra.mxu0 0.0
    %990 = vmatprep.mubr.f32.mxu0 0.0
    %991 = vmatmul.mubr.f32.gmra.mrb[0].mxu0 %v874
    %v992 = vpop.f32.mrb[0].mxu0
    %v993 = vadd.f32 0.0, %v992
    %v994 = vpop.f32.mrb[0].mxu0
    %995 = vmatprep.mubr.f32.mxu0 0.0
    %996 = vmatmul.mubr.f32.gmra.mrb[0].mxu0 %v875
    %v997 = vpop.f32.mrb[0].mxu0
    %v998 = vadd.f32 0.0, %v997
    %v999 = vpop.f32.mrb[0].mxu0
    %1000 = vmatprep.mubr.f32.mxu0 0.0
    %1001 = vmatmul.mubr.f32.gmra.mrb[0].mxu0 %v876
    %v1002 = vpop.f32.mrb[0].mxu0
    %v1003 = vadd.f32 0.0, %v1002
    %v1004 = vpop.f32.mrb[0].mxu0
    %1005 = vmatprep.mubr.f32.mxu0 0.0
    %1006 = vmatmul.mubr.f32.gmra.mrb[0].mxu0 %v877
    %v1007 = vpop.f32.mrb[0].mxu0
    %v1008 = vadd.f32 0.0, %v1007
    %v1009 = vpop.f32.mrb[0].mxu0
    %1010 = vdwg.mxu0
    %v1011 = vmul.f32 %v993, 0.35355338
    %v1012 = vmul.f32 %v998, 0.35355338
    %v1013 = vmul.f32 %v1003, 0.35355338
    %v1014 = vmul.f32 %v1008, 0.35355338
    %v1015 = vadd.f32 %v1011, %v230
    %v1016 = vadd.f32 %v1012, %v231
    %v1017 = vadd.f32 %v1013, %v232
    %v1018 = vadd.f32 %v1014, %v233
    %1019 = vmax.xlane.f32.xlu0 %v1015
    %v1020 = vpop.xlane.xlu0 %1019
    %1021 = vmax.xlane.f32.xlu0 %v1016
    %v1022 = vpop.xlane.xlu0 %1021
    %1023 = vmax.xlane.f32.xlu0 %v1017
    %v1024 = vpop.xlane.xlu0 %1023
    %1025 = vmax.xlane.f32.xlu0 %v1018
    %v1026 = vpop.xlane.xlu0 %1025
    %v1027 = vsub.f32 %v1015, %v1020
    %v1028 = vsub.f32 %v1016, %v1022
    %v1029 = vsub.f32 %v1017, %v1024
    %v1030 = vsub.f32 %v1018, %v1026
    %v1031 = vmul.f32 %v1027, 1.442695
    %v1032 = vpow.pop %v1031
    %v1033 = vmul.f32 %v1028, 1.442695
    %v1034 = vpow.pop %v1033
    %v1035 = vmul.f32 %v1029, 1.442695
    %v1036 = vpow.pop %v1035
    %v1037 = vmul.f32 %v1030, 1.442695
    %v1038 = vpow.pop %v1037
    %1039 = vmatprep.subr.mxu0 0.0
    %1040 = vmatpush1.msra.mxu0 %v910
    %1041 = vmatprep.subr.mxu0 0.0
    %1042 = vmatpush1.msra.mxu0 %v911
    %1043 = vmatprep.subr.mxu0 0.0
    %1044 = vmatpush1.msra.mxu0 %v912
    %1045 = vmatprep.subr.mxu0 0.0
    %1046 = vmatpush1.msra.mxu0 %v913
    %1047 = vmatprep.subr.mxu0 0.0
    %1048 = vmatpush1.msra.mxu0 %v914
    %1049 = vmatprep.subr.mxu0 0.0
    %1050 = vmatpush1.msra.mxu0 %v915
    %1051 = vmatprep.subr.mxu0 0.0
    %1052 = vmatpush1.msra.mxu0 %v916
    %1053 = vmatprep.subr.mxu0 0.0
    %1054 = vmatpush1.msra.mxu0 %v917
    %1055 = vmatprep.subr.mxu0 0.0
    %1056 = vmatpush1.msra.mxu0 %v918
    %1057 = vmatprep.subr.mxu0 0.0
    %1058 = vmatpush1.msra.mxu0 %v919
    %1059 = vmatprep.subr.mxu0 0.0
    %1060 = vmatpush1.msra.mxu0 %v920
    %1061 = vmatprep.subr.mxu0 0.0
    %1062 = vmatpush1.msra.mxu0 %v921
    %1063 = vmatprep.subr.mxu0 0.0
    %1064 = vmatpush1.msra.mxu0 %v922
    %1065 = vmatprep.subr.mxu0 0.0
    %1066 = vmatpush1.msra.mxu0 %v923
    %1067 = vmatprep.subr.mxu0 0.0
    %1068 = vmatpush1.msra.mxu0 %v924
    %1069 = vmatprep.subr.mxu0 0.0
    %1070 = vmatpush1.msra.mxu0 %v925
    %1071 = vmatprep.subr.mxu0 0.0
    %1072 = vmatpush1.msra.mxu0 0.0
    %1073 = vmatprep.subr.mxu0 0.0
    %1074 = vmatpush1.msra.mxu0 0.0
    %1075 = vmatprep.subr.mxu0 0.0
    %1076 = vmatpush1.msra.mxu0 0.0
    %1077 = vmatprep.subr.mxu0 0.0
    %1078 = vmatpush1.msra.mxu0 0.0
    %1079 = vmatprep.subr.mxu0 0.0
    %1080 = vmatpush1.msra.mxu0 0.0
    %1081 = vmatprep.subr.mxu0 0.0
    %1082 = vmatpush1.msra.mxu0 0.0
    %1083 = vmatprep.subr.mxu0 0.0
    %1084 = vmatpush1.msra.mxu0 0.0
    %1085 = vmatprep.subr.mxu0 0.0
    %1086 = vmatpush1.msra.mxu0 0.0
    %1087 = vmatprep.subr.mxu0 0.0
    %1088 = vmatpush1.msra.mxu0 0.0
    %1089 = vmatprep.subr.mxu0 0.0
    %1090 = vmatpush1.msra.mxu0 0.0
    %1091 = vmatprep.subr.mxu0 0.0
    %1092 = vmatpush1.msra.mxu0 0.0
    %1093 = vmatprep.subr.mxu0 0.0
    %1094 = vmatpush1.msra.mxu0 0.0
    %1095 = vmatprep.subr.mxu0 0.0
    %1096 = vmatpush1.msra.mxu0 0.0
    %1097 = vmatprep.subr.mxu0 0.0
    %1098 = vmatpush1.msra.mxu0 0.0
    %1099 = vmatprep.subr.mxu0 0.0
    %1100 = vmatpush1.msra.mxu0 0.0
    %1101 = vmatprep.subr.mxu0 0.0
    %1102 = vmatpush1.msra.mxu0 0.0
    %1103 = vmatprep.mubr.f32.mxu0 0.0
    %1104 = vmatmul.mubr.f32.gmra.mrb[0].mxu0 %v1032
    %v1105 = vpop.f32.mrb[0].mxu0
    %v1106 = vadd.f32 0.0, %v1105
    %v1107 = vpop.f32.mrb[0].mxu0
    %1108 = vmatprep.mubr.f32.mxu0 0.0
    %1109 = vmatmul.mubr.f32.gmra.mrb[0].mxu0 %v1034
    %v1110 = vpop.f32.mrb[0].mxu0
    %v1111 = vadd.f32 0.0, %v1110
    %v1112 = vpop.f32.mrb[0].mxu0
    %1113 = vmatprep.mubr.f32.mxu0 0.0
    %1114 = vmatmul.mubr.f32.gmra.mrb[0].mxu0 %v1036
    %v1115 = vpop.f32.mrb[0].mxu0
    %v1116 = vadd.f32 0.0, %v1115
    %v1117 = vpop.f32.mrb[0].mxu0
    %1118 = vmatprep.mubr.f32.mxu0 0.0
    %1119 = vmatmul.mubr.f32.gmra.mrb[0].mxu0 %v1038
    %v1120 = vpop.f32.mrb[0].mxu0
    %v1121 = vadd.f32 0.0, %v1120
    %v1122 = vpop.f32.mrb[0].mxu0
    %1123 = vdwg.mxu0
    %1124 = vmatprep.subr.mxu0 0.0
    %1125 = vmatpush1.msra.mxu0 %v574
    %1126 = vmatprep.subr.mxu0 0.0
    %1127 = vmatpush1.msra.mxu0 %v575
    %1128 = vmatprep.subr.mxu0 0.0
    %1129 = vmatpush1.msra.mxu0 %v576
    %1130 = vmatprep.subr.mxu0 0.0
    %1131 = vmatpush1.msra.mxu0 %v577
    %1132 = vmatprep.subr.mxu0 0.0
    %1133 = vmatpush1.msra.mxu0 %v578
    %1134 = vmatprep.subr.mxu0 0.0
    %1135 = vmatpush1.msra.mxu0 %v579
    %1136 = vmatprep.subr.mxu0 0.0
    %1137 = vmatpush1.msra.mxu0 %v580
    %1138 = vmatprep.subr.mxu0 0.0
    %1139 = vmatpush1.msra.mxu0 %v581
    %1140 = vmatprep.subr.mxu0 0.0
    %1141 = vmatpush1.msra.mxu0 %v582
    %1142 = vmatprep.subr.mxu0 0.0
    %1143 = vmatpush1.msra.mxu0 %v583
    %1144 = vmatprep.subr.mxu0 0.0
    %1145 = vmatpush1.msra.mxu0 %v584
    %1146 = vmatprep.subr.mxu0 0.0
    %1147 = vmatpush1.msra.mxu0 %v585
    %1148 = vmatprep.subr.mxu0 0.0
    %1149 = vmatpush1.msra.mxu0 %v586
    %1150 = vmatprep.subr.mxu0 0.0
    %1151 = vmatpush1.msra.mxu0 %v587
    %1152 = vmatprep.subr.mxu0 0.0
    %1153 = vmatpush1.msra.mxu0 %v588
    %1154 = vmatprep.subr.mxu0 0.0
    %1155 = vmatpush1.msra.mxu0 %v589
    %1156 = vmatprep.subr.mxu0 0.0
    %1157 = vmatpush1.msra.mxu0 0.0
    %1158 = vmatprep.subr.mxu0 0.0
    %1159 = vmatpush1.msra.mxu0 0.0
    %1160 = vmatprep.subr.mxu0 0.0
    %1161 = vmatpush1.msra.mxu0 0.0
    %1162 = vmatprep.subr.mxu0 0.0
    %1163 = vmatpush1.msra.mxu0 0.0
    %1164 = vmatprep.subr.mxu0 0.0
    %1165 = vmatpush1.msra.mxu0 0.0
    %1166 = vmatprep.subr.mxu0 0.0
    %1167 = vmatpush1.msra.mxu0 0.0
    %1168 = vmatprep.subr.mxu0 0.0
    %1169 = vmatpush1.msra.mxu0 0.0
    %1170 = vmatprep.subr.mxu0 0.0
    %1171 = vmatpush1.msra.mxu0 0.0
    %1172 = vmatprep.subr.mxu0 0.0
    %1173 = vmatpush1.msra.mxu0 0.0
    %1174 = vmatprep.subr.mxu0 0.0
    %1175 = vmatpush1.msra.mxu0 0.0
    %1176 = vmatprep.subr.mxu0 0.0
    %1177 = vmatpush1.msra.mxu0 0.0
    %1178 = vmatprep.subr.mxu0 0.0
    %1179 = vmatpush1.msra.mxu0 0.0
    %1180 = vmatprep.subr.mxu0 0.0
    %1181 = vmatpush1.msra.mxu0 0.0
    %1182 = vmatprep.subr.mxu0 0.0
    %1183 = vmatpush1.msra.mxu0 0.0
    %1184 = vmatprep.subr.mxu0 0.0
    %1185 = vmatpush1.msra.mxu0 0.0
    %1186 = vmatprep.subr.mxu0 0.0
    %1187 = vmatpush1.msra.mxu0 0.0
    %1188 = vmatprep.mubr.f32.mxu0 0.0
    %1189 = vmatmul.mubr.f32.gmra.mrb[0].mxu0 %v1032
    %v1190 = vpop.f32.mrb[0].mxu0
    %v1191 = vadd.f32 0.0, %v1190
    %v1192 = vpop.f32.mrb[0].mxu0
    %1193 = vmatprep.mubr.f32.mxu0 0.0
    %1194 = vmatmul.mubr.f32.gmra.mrb[0].mxu0 %v1034
    %v1195 = vpop.f32.mrb[0].mxu0
    %v1196 = vadd.f32 0.0, %v1195
    %v1197 = vpop.f32.mrb[0].mxu0
    %1198 = vmatprep.mubr.f32.mxu0 0.0
    %1199 = vmatmul.mubr.f32.gmra.mrb[0].mxu0 %v1036
    %v1200 = vpop.f32.mrb[0].mxu0
    %v1201 = vadd.f32 0.0, %v1200
    %v1202 = vpop.f32.mrb[0].mxu0
    %1203 = vmatprep.mubr.f32.mxu0 0.0
    %1204 = vmatmul.mubr.f32.gmra.mrb[0].mxu0 %v1038
    %v1205 = vpop.f32.mrb[0].mxu0
    %v1206 = vadd.f32 0.0, %v1205
    %v1207 = vpop.f32.mrb[0].mxu0
    %1208 = vdwg.mxu0
    %v1209 = vrcp.pop %v1191
    %v1210 = vrcp.pop %v1196
    %v1211 = vrcp.pop %v1201
    %v1212 = vrcp.pop %v1206
    %v1213 = vmul.f32 %v1106, %v1209
    %v1214 = vmul.f32 %v1111, %v1210
    %v1215 = vmul.f32 %v1116, %v1211
    %v1216 = vmul.f32 %v1121, %v1212
    %v1217 = vlaneseq
    %v1218 = vshrl.u32 %v1217, 7
    %v1219 = vsub.s32 0, %v1218
    %v1220 = vrot.slane %v689, %v1219
    %1221 = vmatprep.subr.mxu0 0.0
    %1222 = vmatpush1.msra.mxu0 %v638
    %1223 = vmatprep.subr.mxu0 0.0
    %1224 = vmatpush1.msra.mxu0 %v639
    %1225 = vmatprep.subr.mxu0 0.0
    %1226 = vmatpush1.msra.mxu0 %v640
    %1227 = vmatprep.subr.mxu0 0.0
    %1228 = vmatpush1.msra.mxu0 %v641
    %1229 = vmatprep.subr.mxu0 0.0
    %1230 = vmatpush1.msra.mxu0 %v642
    %1231 = vmatprep.subr.mxu0 0.0
    %1232 = vmatpush1.msra.mxu0 %v643
    %1233 = vmatprep.subr.mxu0 0.0
    %1234 = vmatpush1.msra.mxu0 %v644
    %1235 = vmatprep.subr.mxu0 0.0
    %1236 = vmatpush1.msra.mxu0 %v645
    %1237 = vmatprep.subr.mxu0 0.0
    %1238 = vmatpush1.msra.mxu0 %v646
    %1239 = vmatprep.subr.mxu0 0.0
    %1240 = vmatpush1.msra.mxu0 %v647
    %1241 = vmatprep.subr.mxu0 0.0
    %1242 = vmatpush1.msra.mxu0 %v648
    %1243 = vmatprep.subr.mxu0 0.0
    %1244 = vmatpush1.msra.mxu0 %v649
    %1245 = vmatprep.subr.mxu0 0.0
    %1246 = vmatpush1.msra.mxu0 %v650
    %1247 = vmatprep.subr.mxu0 0.0
    %1248 = vmatpush1.msra.mxu0 %v651
    %1249 = vmatprep.subr.mxu0 0.0
    %1250 = vmatpush1.msra.mxu0 %v652
    %1251 = vmatprep.subr.mxu0 0.0
    %1252 = vmatpush1.msra.mxu0 %v653
    %1253 = vmatprep.subr.mxu0 0.0
    %1254 = vmatpush1.msra.mxu0 0.0
    %1255 = vmatprep.subr.mxu0 0.0
    %1256 = vmatpush1.msra.mxu0 0.0
    %1257 = vmatprep.subr.mxu0 0.0
    %1258 = vmatpush1.msra.mxu0 0.0
    %1259 = vmatprep.subr.mxu0 0.0
    %1260 = vmatpush1.msra.mxu0 0.0
    %1261 = vmatprep.subr.mxu0 0.0
    %1262 = vmatpush1.msra.mxu0 0.0
    %1263 = vmatprep.subr.mxu0 0.0
    %1264 = vmatpush1.msra.mxu0 0.0
    %1265 = vmatprep.subr.mxu0 0.0
    %1266 = vmatpush1.msra.mxu0 0.0
    %1267 = vmatprep.subr.mxu0 0.0
    %1268 = vmatpush1.msra.mxu0 0.0
    %1269 = vmatprep.subr.mxu0 0.0
    %1270 = vmatpush1.msra.mxu0 0.0
    %1271 = vmatprep.subr.mxu0 0.0
    %1272 = vmatpush1.msra.mxu0 0.0
    %1273 = vmatprep.subr.mxu0 0.0
    %1274 = vmatpush1.msra.mxu0 0.0
    %1275 = vmatprep.subr.mxu0 0.0
    %1276 = vmatpush1.msra.mxu0 0.0
    %1277 = vmatprep.subr.mxu0 0.0
    %1278 = vmatpush1.msra.mxu0 0.0
    %1279 = vmatprep.subr.mxu0 0.0
    %1280 = vmatpush1.msra.mxu0 0.0
    %1281 = vmatprep.subr.mxu0 0.0
    %1282 = vmatpush1.msra.mxu0 0.0
    %1283 = vmatprep.subr.mxu0 0.0
    %1284 = vmatpush1.msra.mxu0 0.0
    %1285 = vmatprep.mubr.f32.mxu0 0.0
    %1286 = vmatmul.mubr.f32.gmra.mrb[0].mxu0 %v1213
    %v1287 = vpop.f32.mrb[0].mxu0
    %v1288 = vadd.f32 %v1220, %v1287
    %v1289 = vpop.f32.mrb[0].mxu0
    %1290 = vmatprep.mubr.f32.mxu0 0.0
    %1291 = vmatmul.mubr.f32.gmra.mrb[0].mxu0 %v1214
    %v1292 = vpop.f32.mrb[0].mxu0
    %v1293 = vadd.f32 %v1220, %v1292
    %v1294 = vpop.f32.mrb[0].mxu0
    %1295 = vmatprep.mubr.f32.mxu0 0.0
    %1296 = vmatmul.mubr.f32.gmra.mrb[0].mxu0 %v1215
    %v1297 = vpop.f32.mrb[0].mxu0
    %v1298 = vadd.f32 %v1220, %v1297
    %v1299 = vpop.f32.mrb[0].mxu0
    %1300 = vmatprep.mubr.f32.mxu0 0.0
    %1301 = vmatmul.mubr.f32.gmra.mrb[0].mxu0 %v1216
    %v1302 = vpop.f32.mrb[0].mxu0
    %v1303 = vadd.f32 %v1220, %v1302
    %v1304 = vpop.f32.mrb[0].mxu0
    %1305 = vdwg.mxu0
    %v1306 = vadd.f32 %v73, %v1288
    %v1307 = vadd.f32 %v74, %v1293
    %v1308 = vadd.f32 %v75, %v1298
    %v1309 = vadd.f32 %v76, %v1303
    %v1310 = vmul.f32 %v1306, %v81
    %v1311 = vmul.f32 %v1307, %v81
    %v1312 = vmul.f32 %v1308, %v81
    %v1313 = vmul.f32 %v1309, %v81
    %1314 = vadd.xlane.f32.xlu0 %v1310
    %v1315 = vpop.xlane.xlu0 %1314
    %1316 = vadd.xlane.f32.xlu0 %v1311
    %v1317 = vpop.xlane.xlu0 %1316
    %1318 = vadd.xlane.f32.xlu0 %v1312
    %v1319 = vpop.xlane.xlu0 %1318
    %1320 = vadd.xlane.f32.xlu0 %v1313
    %v1321 = vpop.xlane.xlu0 %1320
    %v1322 = vmul.f32 %v1315, 0.03125
    %v1323 = vmul.f32 %v1317, 0.03125
    %v1324 = vmul.f32 %v1319, 0.03125
    %v1325 = vmul.f32 %v1321, 0.03125
    %v1326 = vsub.f32 %v1306, %v1322
    %v1327 = vsub.f32 %v1307, %v1323
    %v1328 = vsub.f32 %v1308, %v1324
    %v1329 = vsub.f32 %v1309, %v1325
    %v1330 = vmul.f32 %v1326, %v81
    %v1331 = vmul.f32 %v1327, %v81
    %v1332 = vmul.f32 %v1328, %v81
    %v1333 = vmul.f32 %v1329, %v81
    %v1334 = vmul.f32 %v1330, %v1330
    %v1335 = vmul.f32 %v1331, %v1331
    %v1336 = vmul.f32 %v1332, %v1332
    %v1337 = vmul.f32 %v1333, %v1333
    %1338 = vadd.xlane.f32.xlu0 %v1334
    %v1339 = vpop.xlane.xlu0 %1338
    %1340 = vadd.xlane.f32.xlu0 %v1335
    %v1341 = vpop.xlane.xlu0 %1340
    %1342 = vadd.xlane.f32.xlu0 %v1336
    %v1343 = vpop.xlane.xlu0 %1342
    %1344 = vadd.xlane.f32.xlu0 %v1337
    %v1345 = vpop.xlane.xlu0 %1344
    %v1346 = vmul.f32 %v1339, 0.03125
    %v1347 = vmul.f32 %v1341, 0.03125
    %v1348 = vmul.f32 %v1343, 0.03125
    %v1349 = vmul.f32 %v1345, 0.03125
    %v1350 = vadd.f32 %v1346, 1e-05
    %v1351 = vadd.f32 %v1347, 1e-05
    %v1352 = vadd.f32 %v1348, 1e-05
    %v1353 = vadd.f32 %v1349, 1e-05
    %v1354 = vrsqrt.pop %v1350
    %v1355 = vrsqrt.pop %v1351
    %v1356 = vrsqrt.pop %v1352
    %v1357 = vrsqrt.pop %v1353
    %v1358 = vmul.f32 %v1330, %v1354
    %v1359 = vmul.f32 %v1331, %v1355
    %v1360 = vmul.f32 %v1332, %v1356
    %v1361 = vmul.f32 %v1333, %v1357
    %v1362 = vlaneseq
    %v1363 = vshrl.u32 %v1362, 7
    %v1364 = vsub.s32 0, %v1363
    %v1365 = vrot.slane %v692, %v1364
    %v1366 = vmul.f32 %v1358, %v1365
    %v1367 = vmul.f32 %v1359, %v1365
    %v1368 = vmul.f32 %v1360, %v1365
    %v1369 = vmul.f32 %v1361, %v1365
    %v1370 = vlaneseq
    %v1371 = vshrl.u32 %v1370, 7
    %v1372 = vsub.s32 0, %v1371
    %v1373 = vrot.slane %v693, %v1372
    %v1374 = vadd.f32 %v1366, %v1373
    %v1375 = vadd.f32 %v1367, %v1373
    %v1376 = vadd.f32 %v1368, %v1373
    %v1377 = vadd.f32 %v1369, %v1373
    %v1378 = vlaneseq
    %v1379 = vshrl.u32 %v1378, 7
    %v1380 = vsub.s32 0, %v1379
    %v1381 = vrot.slane %v690, %v1380
    %1382 = vmatprep.subr.mxu0 0.0
    %1383 = vmatpush1.msra.mxu0 %v654
    %1384 = vmatprep.subr.mxu0 0.0
    %1385 = vmatpush1.msra.mxu0 %v655
    %1386 = vmatprep.subr.mxu0 0.0
    %1387 = vmatpush1.msra.mxu0 %v656
    %1388 = vmatprep.subr.mxu0 0.0
    %1389 = vmatpush1.msra.mxu0 %v657
    %1390 = vmatprep.subr.mxu0 0.0
    %1391 = vmatpush1.msra.mxu0 %v658
    %1392 = vmatprep.subr.mxu0 0.0
    %1393 = vmatpush1.msra.mxu0 %v659
    %1394 = vmatprep.subr.mxu0 0.0
    %1395 = vmatpush1.msra.mxu0 %v660
    %1396 = vmatprep.subr.mxu0 0.0
    %1397 = vmatpush1.msra.mxu0 %v661
    %1398 = vmatprep.subr.mxu0 0.0
    %1399 = vmatpush1.msra.mxu0 %v662
    %1400 = vmatprep.subr.mxu0 0.0
    %1401 = vmatpush1.msra.mxu0 %v663
    %1402 = vmatprep.subr.mxu0 0.0
    %1403 = vmatpush1.msra.mxu0 %v664
    %1404 = vmatprep.subr.mxu0 0.0
    %1405 = vmatpush1.msra.mxu0 %v665
    %1406 = vmatprep.subr.mxu0 0.0
    %1407 = vmatpush1.msra.mxu0 %v666
    %1408 = vmatprep.subr.mxu0 0.0
    %1409 = vmatpush1.msra.mxu0 %v667
    %1410 = vmatprep.subr.mxu0 0.0
    %1411 = vmatpush1.msra.mxu0 %v668
    %1412 = vmatprep.subr.mxu0 0.0
    %1413 = vmatpush1.msra.mxu0 %v669
    %1414 = vmatprep.subr.mxu0 0.0
    %1415 = vmatpush1.msra.mxu0 0.0
    %1416 = vmatprep.subr.mxu0 0.0
    %1417 = vmatpush1.msra.mxu0 0.0
    %1418 = vmatprep.subr.mxu0 0.0
    %1419 = vmatpush1.msra.mxu0 0.0
    %1420 = vmatprep.subr.mxu0 0.0
    %1421 = vmatpush1.msra.mxu0 0.0
    %1422 = vmatprep.subr.mxu0 0.0
    %1423 = vmatpush1.msra.mxu0 0.0
    %1424 = vmatprep.subr.mxu0 0.0
    %1425 = vmatpush1.msra.mxu0 0.0
    %1426 = vmatprep.subr.mxu0 0.0
    %1427 = vmatpush1.msra.mxu0 0.0
    %1428 = vmatprep.subr.mxu0 0.0
    %1429 = vmatpush1.msra.mxu0 0.0
    %1430 = vmatprep.subr.mxu0 0.0
    %1431 = vmatpush1.msra.mxu0 0.0
    %1432 = vmatprep.subr.mxu0 0.0
    %1433 = vmatpush1.msra.mxu0 0.0
    %1434 = vmatprep.subr.mxu0 0.0
    %1435 = vmatpush1.msra.mxu0 0.0
    %1436 = vmatprep.subr.mxu0 0.0
    %1437 = vmatpush1.msra.mxu0 0.0
    %1438 = vmatprep.subr.mxu0 0.0
    %1439 = vmatpush1.msra.mxu0 0.0
    %1440 = vmatprep.subr.mxu0 0.0
    %1441 = vmatpush1.msra.mxu0 0.0
    %1442 = vmatprep.subr.mxu0 0.0
    %1443 = vmatpush1.msra.mxu0 0.0
    %1444 = vmatprep.subr.mxu0 0.0
    %1445 = vmatpush1.msra.mxu0 0.0
    %1446 = vmatprep.mubr.f32.mxu0 0.0
    %1447 = vmatmul.mubr.f32.gmra.mrb[0].mxu0 %v1374
    %v1448 = vpop.f32.mrb[0].mxu0
    %v1449 = vadd.f32 %v1381, %v1448
    %v1450 = vpop.f32.mrb[0].mxu0
    %1451 = vmatprep.mubr.f32.mxu0 0.0
    %1452 = vmatmul.mubr.f32.gmra.mrb[0].mxu0 %v1375
    %v1453 = vpop.f32.mrb[0].mxu0
    %v1454 = vadd.f32 %v1381, %v1453
    %v1455 = vpop.f32.mrb[0].mxu0
    %1456 = vmatprep.mubr.f32.mxu0 0.0
    %1457 = vmatmul.mubr.f32.gmra.mrb[0].mxu0 %v1376
    %v1458 = vpop.f32.mrb[0].mxu0
    %v1459 = vadd.f32 %v1381, %v1458
    %v1460 = vpop.f32.mrb[0].mxu0
    %1461 = vmatprep.mubr.f32.mxu0 0.0
    %1462 = vmatmul.mubr.f32.gmra.mrb[0].mxu0 %v1377
    %v1463 = vpop.f32.mrb[0].mxu0
    %v1464 = vadd.f32 %v1381, %v1463
    %v1465 = vpop.f32.mrb[0].mxu0
    %1466 = vdwg.mxu0
    %v1467 = vmax.f32 %v1449, 0.0
    %v1468 = vmax.f32 %v1454, 0.0
    %v1469 = vmax.f32 %v1459, 0.0
    %v1470 = vmax.f32 %v1464, 0.0
    %v1471 = vlaneseq
    %v1472 = vshrl.u32 %v1471, 7
    %v1473 = vsub.s32 0, %v1472
    %v1474 = vrot.slane %v691, %v1473
    %1475 = vmatprep.subr.mxu0 0.0
    %1476 = vmatpush1.msra.mxu0 %v670
    %1477 = vmatprep.subr.mxu0 0.0
    %1478 = vmatpush1.msra.mxu0 %v671
    %1479 = vmatprep.subr.mxu0 0.0
    %1480 = vmatpush1.msra.mxu0 %v672
    %1481 = vmatprep.subr.mxu0 0.0
    %1482 = vmatpush1.msra.mxu0 %v673
    %1483 = vmatprep.subr.mxu0 0.0
    %1484 = vmatpush1.msra.mxu0 %v674
    %1485 = vmatprep.subr.mxu0 0.0
    %1486 = vmatpush1.msra.mxu0 %v675
    %1487 = vmatprep.subr.mxu0 0.0
    %1488 = vmatpush1.msra.mxu0 %v676
    %1489 = vmatprep.subr.mxu0 0.0
    %1490 = vmatpush1.msra.mxu0 %v677
    %1491 = vmatprep.subr.mxu0 0.0
    %1492 = vmatpush1.msra.mxu0 %v678
    %1493 = vmatprep.subr.mxu0 0.0
    %1494 = vmatpush1.msra.mxu0 %v679
    %1495 = vmatprep.subr.mxu0 0.0
    %1496 = vmatpush1.msra.mxu0 %v680
    %1497 = vmatprep.subr.mxu0 0.0
    %1498 = vmatpush1.msra.mxu0 %v681
    %1499 = vmatprep.subr.mxu0 0.0
    %1500 = vmatpush1.msra.mxu0 %v682
    %1501 = vmatprep.subr.mxu0 0.0
    %1502 = vmatpush1.msra.mxu0 %v683
    %1503 = vmatprep.subr.mxu0 0.0
    %1504 = vmatpush1.msra.mxu0 %v684
    %1505 = vmatprep.subr.mxu0 0.0
    %1506 = vmatpush1.msra.mxu0 %v685
    %1507 = vmatprep.subr.mxu0 0.0
    %1508 = vmatpush1.msra.mxu0 0.0
    %1509 = vmatprep.subr.mxu0 0.0
    %1510 = vmatpush1.msra.mxu0 0.0
    %1511 = vmatprep.subr.mxu0 0.0
    %1512 = vmatpush1.msra.mxu0 0.0
    %1513 = vmatprep.subr.mxu0 0.0
    %1514 = vmatpush1.msra.mxu0 0.0
    %1515 = vmatprep.subr.mxu0 0.0
    %1516 = vmatpush1.msra.mxu0 0.0
    %1517 = vmatprep.subr.mxu0 0.0
    %1518 = vmatpush1.msra.mxu0 0.0
    %1519 = vmatprep.subr.mxu0 0.0
    %1520 = vmatpush1.msra.mxu0 0.0
    %1521 = vmatprep.subr.mxu0 0.0
    %1522 = vmatpush1.msra.mxu0 0.0
    %1523 = vmatprep.subr.mxu0 0.0
    %1524 = vmatpush1.msra.mxu0 0.0
    %1525 = vmatprep.subr.mxu0 0.0
    %1526 = vmatpush1.msra.mxu0 0.0
    %1527 = vmatprep.subr.mxu0 0.0
    %1528 = vmatpush1.msra.mxu0 0.0
    %1529 = vmatprep.subr.mxu0 0.0
    %1530 = vmatpush1.msra.mxu0 0.0
    %1531 = vmatprep.subr.mxu0 0.0
    %1532 = vmatpush1.msra.mxu0 0.0
    %1533 = vmatprep.subr.mxu0 0.0
    %1534 = vmatpush1.msra.mxu0 0.0
    %1535 = vmatprep.subr.mxu0 0.0
    %1536 = vmatpush1.msra.mxu0 0.0
    %1537 = vmatprep.subr.mxu0 0.0
    %1538 = vmatpush1.msra.mxu0 0.0
    %1539 = vmatprep.mubr.f32.mxu0 0.0
    %1540 = vmatmul.mubr.f32.gmra.mrb[0].mxu0 %v1467
    %v1541 = vpop.f32.mrb[0].mxu0
    %v1542 = vadd.f32 %v1474, %v1541
    %v1543 = vpop.f32.mrb[0].mxu0
    %1544 = vmatprep.mubr.f32.mxu0 0.0
    %1545 = vmatmul.mubr.f32.gmra.mrb[0].mxu0 %v1468
    %v1546 = vpop.f32.mrb[0].mxu0
    %v1547 = vadd.f32 %v1474, %v1546
    %v1548 = vpop.f32.mrb[0].mxu0
    %1549 = vmatprep.mubr.f32.mxu0 0.0
    %1550 = vmatmul.mubr.f32.gmra.mrb[0].mxu0 %v1469
    %v1551 = vpop.f32.mrb[0].mxu0
    %v1552 = vadd.f32 %v1474, %v1551
    %v1553 = vpop.f32.mrb[0].mxu0
    %1554 = vmatprep.mubr.f32.mxu0 0.0
    %1555 = vmatmul.mubr.f32.gmra.mrb[0].mxu0 %v1470
    %v1556 = vpop.f32.mrb[0].mxu0
    %v1557 = vadd.f32 %v1474, %v1556
    %v1558 = vpop.f32.mrb[0].mxu0
    %1559 = vdwg.mxu0
    %v1560 = vadd.f32 %v1374, %v1542
    %v1561 = vadd.f32 %v1375, %v1547
    %v1562 = vadd.f32 %v1376, %v1552
    %v1563 = vadd.f32 %v1377, %v1557
    %v1564 = vmul.f32 %v1560, %v81
    %v1565 = vmul.f32 %v1561, %v81
    %v1566 = vmul.f32 %v1562, %v81
    %v1567 = vmul.f32 %v1563, %v81
    %1568 = vadd.xlane.f32.xlu0 %v1564
    %v1569 = vpop.xlane.xlu0 %1568
    %1570 = vadd.xlane.f32.xlu0 %v1565
    %v1571 = vpop.xlane.xlu0 %1570
    %1572 = vadd.xlane.f32.xlu0 %v1566
    %v1573 = vpop.xlane.xlu0 %1572
    %1574 = vadd.xlane.f32.xlu0 %v1567
    %v1575 = vpop.xlane.xlu0 %1574
    %v1576 = vmul.f32 %v1569, 0.03125
    %v1577 = vmul.f32 %v1571, 0.03125
    %v1578 = vmul.f32 %v1573, 0.03125
    %v1579 = vmul.f32 %v1575, 0.03125
    %v1580 = vsub.f32 %v1560, %v1576
    %v1581 = vsub.f32 %v1561, %v1577
    %v1582 = vsub.f32 %v1562, %v1578
    %v1583 = vsub.f32 %v1563, %v1579
    %v1584 = vmul.f32 %v1580, %v81
    %v1585 = vmul.f32 %v1581, %v81
    %v1586 = vmul.f32 %v1582, %v81
    %v1587 = vmul.f32 %v1583, %v81
    %v1588 = vmul.f32 %v1584, %v1584
    %v1589 = vmul.f32 %v1585, %v1585
    %v1590 = vmul.f32 %v1586, %v1586
    %v1591 = vmul.f32 %v1587, %v1587
    %1592 = vadd.xlane.f32.xlu0 %v1588
    %v1593 = vpop.xlane.xlu0 %1592
    %1594 = vadd.xlane.f32.xlu0 %v1589
    %v1595 = vpop.xlane.xlu0 %1594
    %1596 = vadd.xlane.f32.xlu0 %v1590
    %v1597 = vpop.xlane.xlu0 %1596
    %1598 = vadd.xlane.f32.xlu0 %v1591
    %v1599 = vpop.xlane.xlu0 %1598
    %v1600 = vmul.f32 %v1593, 0.03125
    %v1601 = vmul.f32 %v1595, 0.03125
    %v1602 = vmul.f32 %v1597, 0.03125
    %v1603 = vmul.f32 %v1599, 0.03125
    %v1604 = vadd.f32 %v1600, 1e-05
    %v1605 = vadd.f32 %v1601, 1e-05
    %v1606 = vadd.f32 %v1602, 1e-05
    %v1607 = vadd.f32 %v1603, 1e-05
    %v1608 = vrsqrt.pop %v1604
    %v1609 = vrsqrt.pop %v1605
    %v1610 = vrsqrt.pop %v1606
    %v1611 = vrsqrt.pop %v1607
    %v1612 = vmul.f32 %v1584, %v1608
    %v1613 = vmul.f32 %v1585, %v1609
    %v1614 = vmul.f32 %v1586, %v1610
    %v1615 = vmul.f32 %v1587, %v1611
    %v1616 = vlaneseq
    %v1617 = vshrl.u32 %v1616, 7
    %v1618 = vsub.s32 0, %v1617
    %v1619 = vrot.slane %v694, %v1618
    %v1620 = vmul.f32 %v1612, %v1619
    %v1621 = vmul.f32 %v1613, %v1619
    %v1622 = vmul.f32 %v1614, %v1619
    %v1623 = vmul.f32 %v1615, %v1619
    %v1624 = vlaneseq
    %v1625 = vshrl.u32 %v1624, 7
    %v1626 = vsub.s32 0, %v1625
    %v1627 = vrot.slane %v695, %v1626
    %v1628 = vadd.f32 %v1620, %v1627
    %v1629 = vadd.f32 %v1621, %v1627
    %v1630 = vadd.f32 %v1622, %v1627
    %v1631 = vadd.f32 %v1623, %v1627
    %v1632 = vld [vmem:[#allocation5 + $0x180] sm:$0xff]
    %v1633 = vld [vmem:[#allocation5 + $0x188] sm:$0xff]
    %v1634 = vld [vmem:[#allocation5 + $0x190] sm:$0xff]
    %v1635 = vld [vmem:[#allocation5 + $0x198] sm:$0xff]
    %v1636 = vld [vmem:[#allocation5 + $0x1a0] sm:$0xff]
    %v1637 = vld [vmem:[#allocation5 + $0x1a8] sm:$0xff]
    %v1638 = vld [vmem:[#allocation5 + $0x1b0] sm:$0xff]
    %v1639 = vld [vmem:[#allocation5 + $0x1b8] sm:$0xff]
    %v1640 = vld [vmem:[#allocation5 + $0x1c0] sm:$0xff]
    %v1641 = vld [vmem:[#allocation5 + $0x1c8] sm:$0xff]
    %v1642 = vld [vmem:[#allocation5 + $0x1d0] sm:$0xff]
    %v1643 = vld [vmem:[#allocation5 + $0x1d8] sm:$0xff]
    %v1644 = vld [vmem:[#allocation5 + $0x1e0] sm:$0xff]
    %v1645 = vld [vmem:[#allocation5 + $0x1e8] sm:$0xff]
    %v1646 = vld [vmem:[#allocation5 + $0x1f0] sm:$0xff]
    %v1647 = vld [vmem:[#allocation5 + $0x1f8] sm:$0xff]
    %v1648 = vld [vmem:[#allocation5 + $0x200] sm:$0xff]
    %v1649 = vld [vmem:[#allocation5 + $0x208] sm:$0xff]
    %v1650 = vld [vmem:[#allocation5 + $0x210] sm:$0xff]
    %v1651 = vld [vmem:[#allocation5 + $0x218] sm:$0xff]
    %v1652 = vld [vmem:[#allocation5 + $0x220] sm:$0xff]
    %v1653 = vld [vmem:[#allocation5 + $0x228] sm:$0xff]
    %v1654 = vld [vmem:[#allocation5 + $0x230] sm:$0xff]
    %v1655 = vld [vmem:[#allocation5 + $0x238] sm:$0xff]
    %v1656 = vld [vmem:[#allocation5 + $0x240] sm:$0xff]
    %v1657 = vld [vmem:[#allocation5 + $0x248] sm:$0xff]
    %v1658 = vld [vmem:[#allocation5 + $0x250] sm:$0xff]
    %v1659 = vld [vmem:[#allocation5 + $0x258] sm:$0xff]
    %v1660 = vld [vmem:[#allocation5 + $0x260] sm:$0xff]
    %v1661 = vld [vmem:[#allocation5 + $0x268] sm:$0xff]
    %v1662 = vld [vmem:[#allocation5 + $0x270] sm:$0xff]
    %v1663 = vld [vmem:[#allocation5 + $0x278] sm:$0xff]
    %v1664 = vld [vmem:[#allocation5 + $0x280] sm:$0xff]
    %v1665 = vld [vmem:[#allocation5 + $0x288] sm:$0xff]
    %v1666 = vld [vmem:[#allocation5 + $0x290] sm:$0xff]
    %v1667 = vld [vmem:[#allocation5 + $0x298] sm:$0xff]
    %v1668 = vld [vmem:[#allocation5 + $0x2a0] sm:$0xff]
    %v1669 = vld [vmem:[#allocation5 + $0x2a8] sm:$0xff]
    %v1670 = vld [vmem:[#allocation5 + $0x2b0] sm:$0xff]
    %v1671 = vld [vmem:[#allocation5 + $0x2b8] sm:$0xff]
    %v1672 = vld [vmem:[#allocation5 + $0x2c0] sm:$0xff]
    %v1673 = vld [vmem:[#allocation5 + $0x2c8] sm:$0xff]
    %v1674 = vld [vmem:[#allocation5 + $0x2d0] sm:$0xff]
    %v1675 = vld [vmem:[#allocation5 + $0x2d8] sm:$0xff]
    %v1676 = vld [vmem:[#allocation5 + $0x2e0] sm:$0xff]
    %v1677 = vld [vmem:[#allocation5 + $0x2e8] sm:$0xff]
    %v1678 = vld [vmem:[#allocation5 + $0x2f0] sm:$0xff]
    %v1679 = vld [vmem:[#allocation5 + $0x2f8] sm:$0xff]
    %v1680 = vld [vmem:[#allocation7 + $0x180] sm:$0xff]
    %v1681 = vld [vmem:[#allocation7 + $0x188] sm:$0xff]
    %v1682 = vld [vmem:[#allocation7 + $0x190] sm:$0xff]
    %v1683 = vld [vmem:[#allocation7 + $0x198] sm:$0xff]
    %v1684 = vld [vmem:[#allocation7 + $0x1a0] sm:$0xff]
    %v1685 = vld [vmem:[#allocation7 + $0x1a8] sm:$0xff]
    %v1686 = vld [vmem:[#allocation7 + $0x1b0] sm:$0xff]
    %v1687 = vld [vmem:[#allocation7 + $0x1b8] sm:$0xff]
    %v1688 = vld [vmem:[#allocation7 + $0x1c0] sm:$0xff]
    %v1689 = vld [vmem:[#allocation7 + $0x1c8] sm:$0xff]
    %v1690 = vld [vmem:[#allocation7 + $0x1d0] sm:$0xff]
    %v1691 = vld [vmem:[#allocation7 + $0x1d8] sm:$0xff]
    %v1692 = vld [vmem:[#allocation7 + $0x1e0] sm:$0xff]
    %v1693 = vld [vmem:[#allocation7 + $0x1e8] sm:$0xff]
    %v1694 = vld [vmem:[#allocation7 + $0x1f0] sm:$0xff]
    %v1695 = vld [vmem:[#allocation7 + $0x1f8] sm:$0xff]
    %v1696 = vld [vmem:[#allocation7 + $0x200] sm:$0xff]
    %v1697 = vld [vmem:[#allocation7 + $0x208] sm:$0xff]
    %v1698 = vld [vmem:[#allocation7 + $0x210] sm:$0xff]
    %v1699 = vld [vmem:[#allocation7 + $0x218] sm:$0xff]
    %v1700 = vld [vmem:[#allocation7 + $0x220] sm:$0xff]
    %v1701 = vld [vmem:[#allocation7 + $0x228] sm:$0xff]
    %v1702 = vld [vmem:[#allocation7 + $0x230] sm:$0xff]
    %v1703 = vld [vmem:[#allocation7 + $0x238] sm:$0xff]
    %v1704 = vld [vmem:[#allocation7 + $0x240] sm:$0xff]
    %v1705 = vld [vmem:[#allocation7 + $0x248] sm:$0xff]
    %v1706 = vld [vmem:[#allocation7 + $0x250] sm:$0xff]
    %v1707 = vld [vmem:[#allocation7 + $0x258] sm:$0xff]
    %v1708 = vld [vmem:[#allocation7 + $0x260] sm:$0xff]
    %v1709 = vld [vmem:[#allocation7 + $0x268] sm:$0xff]
    %v1710 = vld [vmem:[#allocation7 + $0x270] sm:$0xff]
    %v1711 = vld [vmem:[#allocation7 + $0x278] sm:$0xff]
    %v1712 = vld [vmem:[#allocation7 + $0x280] sm:$0xff]
    %v1713 = vld [vmem:[#allocation7 + $0x288] sm:$0xff]
    %v1714 = vld [vmem:[#allocation7 + $0x290] sm:$0xff]
    %v1715 = vld [vmem:[#allocation7 + $0x298] sm:$0xff]
    %v1716 = vld [vmem:[#allocation7 + $0x2a0] sm:$0xff]
    %v1717 = vld [vmem:[#allocation7 + $0x2a8] sm:$0xff]
    %v1718 = vld [vmem:[#allocation7 + $0x2b0] sm:$0xff]
    %v1719 = vld [vmem:[#allocation7 + $0x2b8] sm:$0xff]
    %v1720 = vld [vmem:[#allocation7 + $0x2c0] sm:$0xff]
    %v1721 = vld [vmem:[#allocation7 + $0x2c8] sm:$0xff]
    %v1722 = vld [vmem:[#allocation7 + $0x2d0] sm:$0xff]
    %v1723 = vld [vmem:[#allocation7 + $0x2d8] sm:$0xff]
    %v1724 = vld [vmem:[#allocation7 + $0x2e0] sm:$0xff]
    %v1725 = vld [vmem:[#allocation7 + $0x2e8] sm:$0xff]
    %v1726 = vld [vmem:[#allocation7 + $0x2f0] sm:$0xff]
    %v1727 = vld [vmem:[#allocation7 + $0x2f8] sm:$0xff]
    %v1728 = vld [vmem:[#allocation8 + $0x10] sm:$0x1]
    %v1729 = vld [vmem:[#allocation8 + $0x11] sm:$0x1]
    %v1730 = vld [vmem:[#allocation8 + $0x12] sm:$0x1]
    %v1731 = vld [vmem:[#allocation8 + $0x13] sm:$0x1]
    %v1732 = vld [vmem:[#allocation8 + $0x14] sm:$0x1]
    %v1733 = vld [vmem:[#allocation8 + $0x15] sm:$0x1]
    %v1734 = vld [vmem:[#allocation8 + $0x16] sm:$0x1]
    %v1735 = vld [vmem:[#allocation8 + $0x17] sm:$0x1]
    %v1736 = vld [vmem:[#allocation8 + $0x18] sm:$0x1]
    %v1737 = vld [vmem:[#allocation8 + $0x19] sm:$0x1]
    %1738 = vmatprep.subr.mxu0 %v1633
    %1739 = vmatpush1.msra.mxu0 %v1632
    %1740 = vmatprep.subr.mxu0 %v1636
    %1741 = vmatpush1.msra.mxu0 %v1635
    %1742 = vmatprep.subr.mxu0 %v1639
    %1743 = vmatpush1.msra.mxu0 %v1638
    %1744 = vmatprep.subr.mxu0 %v1642
    %1745 = vmatpush1.msra.mxu0 %v1641
    %1746 = vmatprep.subr.mxu0 %v1645
    %1747 = vmatpush1.msra.mxu0 %v1644
    %1748 = vmatprep.subr.mxu0 %v1648
    %1749 = vmatpush1.msra.mxu0 %v1647
    %1750 = vmatprep.subr.mxu0 %v1651
    %1751 = vmatpush1.msra.mxu0 %v1650
    %1752 = vmatprep.subr.mxu0 %v1654
    %1753 = vmatpush1.msra.mxu0 %v1653
    %1754 = vmatprep.subr.mxu0 %v1657
    %1755 = vmatpush1.msra.mxu0 %v1656
    %1756 = vmatprep.subr.mxu0 %v1660
    %1757 = vmatpush1.msra.mxu0 %v1659
    %1758 = vmatprep.subr.mxu0 %v1663
    %1759 = vmatpush1.msra.mxu0 %v1662
    %1760 = vmatprep.subr.mxu0 %v1666
    %1761 = vmatpush1.msra.mxu0 %v1665
    %1762 = vmatprep.subr.mxu0 %v1669
    %1763 = vmatpush1.msra.mxu0 %v1668
    %1764 = vmatprep.subr.mxu0 %v1672
    %1765 = vmatpush1.msra.mxu0 %v1671
    %1766 = vmatprep.subr.mxu0 %v1675
    %1767 = vmatpush1.msra.mxu0 %v1674
    %1768 = vmatprep.subr.mxu0 %v1678
    %1769 = vmatpush1.msra.mxu0 %v1677
    %1770 = vmatprep.subr.mxu0 0.0
    %1771 = vmatpush1.msra.mxu0 0.0
    %1772 = vmatprep.subr.mxu0 0.0
    %1773 = vmatpush1.msra.mxu0 0.0
    %1774 = vmatprep.subr.mxu0 0.0
    %1775 = vmatpush1.msra.mxu0 0.0
    %1776 = vmatprep.subr.mxu0 0.0
    %1777 = vmatpush1.msra.mxu0 0.0
    %1778 = vmatprep.subr.mxu0 0.0
    %1779 = vmatpush1.msra.mxu0 0.0
    %1780 = vmatprep.subr.mxu0 0.0
    %1781 = vmatpush1.msra.mxu0 0.0
    %1782 = vmatprep.subr.mxu0 0.0
    %1783 = vmatpush1.msra.mxu0 0.0
    %1784 = vmatprep.subr.mxu0 0.0
    %1785 = vmatpush1.msra.mxu0 0.0
    %1786 = vmatprep.subr.mxu0 0.0
    %1787 = vmatpush1.msra.mxu0 0.0
    %1788 = vmatprep.subr.mxu0 0.0
    %1789 = vmatpush1.msra.mxu0 0.0
    %1790 = vmatprep.subr.mxu0 0.0
    %1791 = vmatpush1.msra.mxu0 0.0
    %1792 = vmatprep.subr.mxu0 0.0
    %1793 = vmatpush1.msra.mxu0 0.0
    %1794 = vmatprep.subr.mxu0 0.0
    %1795 = vmatpush1.msra.mxu0 0.0
    %1796 = vmatprep.subr.mxu0 0.0
    %1797 = vmatpush1.msra.mxu0 0.0
    %1798 = vmatprep.subr.mxu0 0.0
    %1799 = vmatpush1.msra.mxu0 0.0
    %1800 = vmatprep.subr.mxu0 0.0
    %1801 = vmatpush1.msra.mxu0 0.0
    %1802 = vmatprep.mubr.f32.mxu0 0.0
    %1803 = vmatmul.mubr.f32.gmra.mrb[0].mxu0 %v1628
    %v1804 = vpop.f32.mrb[0].mxu0
    %v1805 = vadd.f32 0.0, %v1804
    %v1806 = vpop.f32.mrb[0].mxu0
    %v1807 = vadd.f32 0.0, %v1806
    %1808 = vmatprep.mubr.f32.mxu0 0.0
    %1809 = vmatmul.mubr.f32.gmra.mrb[0].mxu0 %v1629
    %v1810 = vpop.f32.mrb[0].mxu0
    %v1811 = vadd.f32 0.0, %v1810
    %v1812 = vpop.f32.mrb[0].mxu0
    %v1813 = vadd.f32 0.0, %v1812
    %1814 = vmatprep.mubr.f32.mxu0 0.0
    %1815 = vmatmul.mubr.f32.gmra.mrb[0].mxu0 %v1630
    %v1816 = vpop.f32.mrb[0].mxu0
    %v1817 = vadd.f32 0.0, %v1816
    %v1818 = vpop.f32.mrb[0].mxu0
    %v1819 = vadd.f32 0.0, %v1818
    %1820 = vmatprep.mubr.f32.mxu0 0.0
    %1821 = vmatmul.mubr.f32.gmra.mrb[0].mxu0 %v1631
    %v1822 = vpop.f32.mrb[0].mxu0
    %v1823 = vadd.f32 0.0, %v1822
    %v1824 = vpop.f32.mrb[0].mxu0
    %v1825 = vadd.f32 0.0, %v1824
    %1826 = vdwg.mxu0
    %1827 = vmatprep.subr.mxu0 0.0
    %1828 = vmatpush1.msra.mxu0 %v1634
    %1829 = vmatprep.subr.mxu0 0.0
    %1830 = vmatpush1.msra.mxu0 %v1637
    %1831 = vmatprep.subr.mxu0 0.0
    %1832 = vmatpush1.msra.mxu0 %v1640
    %1833 = vmatprep.subr.mxu0 0.0
    %1834 = vmatpush1.msra.mxu0 %v1643
    %1835 = vmatprep.subr.mxu0 0.0
    %1836 = vmatpush1.msra.mxu0 %v1646
    %1837 = vmatprep.subr.mxu0 0.0
    %1838 = vmatpush1.msra.mxu0 %v1649
    %1839 = vmatprep.subr.mxu0 0.0
    %1840 = vmatpush1.msra.mxu0 %v1652
    %1841 = vmatprep.subr.mxu0 0.0
    %1842 = vmatpush1.msra.mxu0 %v1655
    %1843 = vmatprep.subr.mxu0 0.0
    %1844 = vmatpush1.msra.mxu0 %v1658
    %1845 = vmatprep.subr.mxu0 0.0
    %1846 = vmatpush1.msra.mxu0 %v1661
    %1847 = vmatprep.subr.mxu0 0.0
    %1848 = vmatpush1.msra.mxu0 %v1664
    %1849 = vmatprep.subr.mxu0 0.0
    %1850 = vmatpush1.msra.mxu0 %v1667
    %1851 = vmatprep.subr.mxu0 0.0
    %1852 = vmatpush1.msra.mxu0 %v1670
    %1853 = vmatprep.subr.mxu0 0.0
    %1854 = vmatpush1.msra.mxu0 %v1673
    %1855 = vmatprep.subr.mxu0 0.0
    %1856 = vmatpush1.msra.mxu0 %v1676
    %1857 = vmatprep.subr.mxu0 0.0
    %1858 = vmatpush1.msra.mxu0 %v1679
    %1859 = vmatprep.subr.mxu0 0.0
    %1860 = vmatpush1.msra.mxu0 0.0
    %1861 = vmatprep.subr.mxu0 0.0
    %1862 = vmatpush1.msra.mxu0 0.0
    %1863 = vmatprep.subr.mxu0 0.0
    %1864 = vmatpush1.msra.mxu0 0.0
    %1865 = vmatprep.subr.mxu0 0.0
    %1866 = vmatpush1.msra.mxu0 0.0
    %1867 = vmatprep.subr.mxu0 0.0
    %1868 = vmatpush1.msra.mxu0 0.0
    %1869 = vmatprep.subr.mxu0 0.0
    %1870 = vmatpush1.msra.mxu0 0.0
    %1871 = vmatprep.subr.mxu0 0.0
    %1872 = vmatpush1.msra.mxu0 0.0
    %1873 = vmatprep.subr.mxu0 0.0
    %1874 = vmatpush1.msra.mxu0 0.0
    %1875 = vmatprep.subr.mxu0 0.0
    %1876 = vmatpush1.msra.mxu0 0.0
    %1877 = vmatprep.subr.mxu0 0.0
    %1878 = vmatpush1.msra.mxu0 0.0
    %1879 = vmatprep.subr.mxu0 0.0
    %1880 = vmatpush1.msra.mxu0 0.0
    %1881 = vmatprep.subr.mxu0 0.0
    %1882 = vmatpush1.msra.mxu0 0.0
    %1883 = vmatprep.subr.mxu0 0.0
    %1884 = vmatpush1.msra.mxu0 0.0
    %1885 = vmatprep.subr.mxu0 0.0
    %1886 = vmatpush1.msra.mxu0 0.0
    %1887 = vmatprep.subr.mxu0 0.0
    %1888 = vmatpush1.msra.mxu0 0.0
    %1889 = vmatprep.subr.mxu0 0.0
    %1890 = vmatpush1.msra.mxu0 0.0
    %1891 = vmatprep.mubr.f32.mxu0 0.0
    %1892 = vmatmul.mubr.f32.gmra.mrb[0].mxu0 %v1628
    %v1893 = vpop.f32.mrb[0].mxu0
    %v1894 = vadd.f32 0.0, %v1893
    %v1895 = vpop.f32.mrb[0].mxu0
    %1896 = vmatprep.mubr.f32.mxu0 0.0
    %1897 = vmatmul.mubr.f32.gmra.mrb[0].mxu0 %v1629
    %v1898 = vpop.f32.mrb[0].mxu0
    %v1899 = vadd.f32 0.0, %v1898
    %v1900 = vpop.f32.mrb[0].mxu0
    %1901 = vmatprep.mubr.f32.mxu0 0.0
    %1902 = vmatmul.mubr.f32.gmra.mrb[0].mxu0 %v1630
    %v1903 = vpop.f32.mrb[0].mxu0
    %v1904 = vadd.f32 0.0, %v1903
    %v1905 = vpop.f32.mrb[0].mxu0
    %1906 = vmatprep.mubr.f32.mxu0 0.0
    %1907 = vmatmul.mubr.f32.gmra.mrb[0].mxu0 %v1631
    %v1908 = vpop.f32.mrb[0].mxu0
    %v1909 = vadd.f32 0.0, %v1908
    %v1910 = vpop.f32.mrb[0].mxu0
    %1911 = vdwg.mxu0
    %v1912 = vlaneseq
    %v1913 = vshrl.u32 %v1912, 7
    %v1914 = vsub.s32 0, %v1913
    %v1915 = vrot.slane %v1728, %v1914
    %v1916 = vadd.f32 %v1805, %v1915
    %v1917 = vadd.f32 %v1811, %v1915
    %v1918 = vadd.f32 %v1817, %v1915
    %v1919 = vadd.f32 %v1823, %v1915
    %v1920 = vlaneseq
    %v1921 = vshrl.u32 %v1920, 7
    %v1922 = vsub.s32 0, %v1921
    %v1923 = vrot.slane %v1729, %v1922
    %v1924 = vadd.f32 %v1807, %v1923
    %v1925 = vadd.f32 %v1813, %v1923
    %v1926 = vadd.f32 %v1819, %v1923
    %v1927 = vadd.f32 %v1825, %v1923
    %v1928 = vlaneseq
    %v1929 = vshrl.u32 %v1928, 7
    %v1930 = vsub.s32 0, %v1929
    %v1931 = vrot.slane %v1730, %v1930
    %v1932 = vadd.f32 %v1894, %v1931
    %v1933 = vadd.f32 %v1899, %v1931
    %v1934 = vadd.f32 %v1904, %v1931
    %v1935 = vadd.f32 %v1909, %v1931
    %v1936 = vmul.f32 %v1924, %v86
    %v1937 = vmul.f32 %v1925, %v86
    %v1938 = vmul.f32 %v1926, %v86
    %v1939 = vmul.f32 %v1927, %v86
    %v1940 = vmul.f32 %v1924, %v91
    %v1941 = vmul.f32 %v1925, %v91
    %v1942 = vmul.f32 %v1926, %v91
    %v1943 = vmul.f32 %v1927, %v91
    %v1944 = vmul.f32 %v1924, %v96
    %v1945 = vmul.f32 %v1925, %v96
    %v1946 = vmul.f32 %v1926, %v96
    %v1947 = vmul.f32 %v1927, %v96
    %v1948 = vmul.f32 %v1924, %v100
    %v1949 = vmul.f32 %v1925, %v100
    %v1950 = vmul.f32 %v1926, %v100
    %v1951 = vmul.f32 %v1927, %v100
    %v1952 = vmul.f32 %v1932, %v86
    %v1953 = vmul.f32 %v1933, %v86
    %v1954 = vmul.f32 %v1934, %v86
    %v1955 = vmul.f32 %v1935, %v86
    %v1956 = vmul.f32 %v1932, %v91
    %v1957 = vmul.f32 %v1933, %v91
    %v1958 = vmul.f32 %v1934, %v91
    %v1959 = vmul.f32 %v1935, %v91
    %v1960 = vmul.f32 %v1932, %v96
    %v1961 = vmul.f32 %v1933, %v96
    %v1962 = vmul.f32 %v1934, %v96
    %v1963 = vmul.f32 %v1935, %v96
    %v1964 = vmul.f32 %v1932, %v100
    %v1965 = vmul.f32 %v1933, %v100
    %v1966 = vmul.f32 %v1934, %v100
    %v1967 = vmul.f32 %v1935, %v100
    %1968 = vmatprep.subr.mxu0 0.0
    %1969 = vmatpush1.xpose.msra.mxu0 %v1936
    %1970 = vmatprep.subr.mxu0 0.0
    %1971 = vmatpush1.xpose.msra.mxu0 %v1937
    %1972 = vmatprep.subr.mxu0 0.0
    %1973 = vmatpush1.xpose.msra.mxu0 %v1938
    %1974 = vmatprep.subr.mxu0 0.0
    %1975 = vmatpush1.xpose.msra.mxu0 %v1939
    %1976 = vmatprep.subr.mxu0 0.0
    %1977 = vmatpush1.xpose.msra.mxu0 %v1940
    %1978 = vmatprep.subr.mxu0 0.0
    %1979 = vmatpush1.xpose.msra.mxu0 %v1941
    %1980 = vmatprep.subr.mxu0 0.0
    %1981 = vmatpush1.xpose.msra.mxu0 %v1942
    %1982 = vmatprep.subr.mxu0 0.0
    %1983 = vmatpush1.xpose.msra.mxu0 %v1943
    %1984 = vmatprep.subr.mxu0 0.0
    %1985 = vmatpush1.xpose.msra.mxu0 %v1944
    %1986 = vmatprep.subr.mxu0 0.0
    %1987 = vmatpush1.xpose.msra.mxu0 %v1945
    %1988 = vmatprep.subr.mxu0 0.0
    %1989 = vmatpush1.xpose.msra.mxu0 %v1946
    %1990 = vmatprep.subr.mxu0 0.0
    %1991 = vmatpush1.xpose.msra.mxu0 %v1947
    %1992 = vmatprep.subr.mxu0 0.0
    %1993 = vmatpush1.xpose.msra.mxu0 %v1948
    %1994 = vmatprep.subr.mxu0 0.0
    %1995 = vmatpush1.xpose.msra.mxu0 %v1949
    %1996 = vmatprep.subr.mxu0 0.0
    %1997 = vmatpush1.xpose.msra.mxu0 %v1950
    %1998 = vmatprep.subr.mxu0 0.0
    %1999 = vmatpush1.xpose.msra.mxu0 %v1951
    %2000 = vmatprep.subr.mxu0 0.0
    %2001 = vmatpush1.xpose.msra.mxu0 0.0
    %2002 = vmatprep.subr.mxu0 0.0
    %2003 = vmatpush1.xpose.msra.mxu0 0.0
    %2004 = vmatprep.subr.mxu0 0.0
    %2005 = vmatpush1.xpose.msra.mxu0 0.0
    %2006 = vmatprep.subr.mxu0 0.0
    %2007 = vmatpush1.xpose.msra.mxu0 0.0
    %2008 = vmatprep.subr.mxu0 0.0
    %2009 = vmatpush1.xpose.msra.mxu0 0.0
    %2010 = vmatprep.subr.mxu0 0.0
    %2011 = vmatpush1.xpose.msra.mxu0 0.0
    %2012 = vmatprep.subr.mxu0 0.0
    %2013 = vmatpush1.xpose.msra.mxu0 0.0
    %2014 = vmatprep.subr.mxu0 0.0
    %2015 = vmatpush1.xpose.msra.mxu0 0.0
    %2016 = vmatprep.subr.mxu0 0.0
    %2017 = vmatpush1.xpose.msra.mxu0 0.0
    %2018 = vmatprep.subr.mxu0 0.0
    %2019 = vmatpush1.xpose.msra.mxu0 0.0
    %2020 = vmatprep.subr.mxu0 0.0
    %2021 = vmatpush1.xpose.msra.mxu0 0.0
    %2022 = vmatprep.subr.mxu0 0.0
    %2023 = vmatpush1.xpose.msra.mxu0 0.0
    %2024 = vmatprep.subr.mxu0 0.0
    %2025 = vmatpush1.xpose.msra.mxu0 0.0
    %2026 = vmatprep.subr.mxu0 0.0
    %2027 = vmatpush1.xpose.msra.mxu0 0.0
    %2028 = vmatprep.subr.mxu0 0.0
    %2029 = vmatpush1.xpose.msra.mxu0 0.0
    %2030 = vmatprep.subr.mxu0 0.0
    %2031 = vmatpush1.xpose.msra.mxu0 0.0
    %2032 = vmatprep.mubr.f32.mxu0 0.0
    %2033 = vmatmul.mubr.f32.gmra.mrb[0].mxu0 %v1916
    %v2034 = vpop.f32.mrb[0].mxu0
    %v2035 = vadd.f32 0.0, %v2034
    %v2036 = vpop.f32.mrb[0].mxu0
    %2037 = vmatprep.mubr.f32.mxu0 0.0
    %2038 = vmatmul.mubr.f32.gmra.mrb[0].mxu0 %v1917
    %v2039 = vpop.f32.mrb[0].mxu0
    %v2040 = vadd.f32 0.0, %v2039
    %v2041 = vpop.f32.mrb[0].mxu0
    %2042 = vmatprep.mubr.f32.mxu0 0.0
    %2043 = vmatmul.mubr.f32.gmra.mrb[0].mxu0 %v1918
    %v2044 = vpop.f32.mrb[0].mxu0
    %v2045 = vadd.f32 0.0, %v2044
    %v2046 = vpop.f32.mrb[0].mxu0
    %2047 = vmatprep.mubr.f32.mxu0 0.0
    %2048 = vmatmul.mubr.f32.gmra.mrb[0].mxu0 %v1919
    %v2049 = vpop.f32.mrb[0].mxu0
    %v2050 = vadd.f32 0.0, %v2049
    %v2051 = vpop.f32.mrb[0].mxu0
    %2052 = vdwg.mxu0
    %v2053 = vmul.f32 %v2035, 0.35355338
    %v2054 = vmul.f32 %v2040, 0.35355338
    %v2055 = vmul.f32 %v2045, 0.35355338
    %v2056 = vmul.f32 %v2050, 0.35355338
    %v2057 = vadd.f32 %v2053, %v230
    %v2058 = vadd.f32 %v2054, %v231
    %v2059 = vadd.f32 %v2055, %v232
    %v2060 = vadd.f32 %v2056, %v233
    %2061 = vmax.xlane.f32.xlu0 %v2057
    %v2062 = vpop.xlane.xlu0 %2061
    %2063 = vmax.xlane.f32.xlu0 %v2058
    %v2064 = vpop.xlane.xlu0 %2063
    %2065 = vmax.xlane.f32.xlu0 %v2059
    %v2066 = vpop.xlane.xlu0 %2065
    %2067 = vmax.xlane.f32.xlu0 %v2060
    %v2068 = vpop.xlane.xlu0 %2067
    %v2069 = vsub.f32 %v2057, %v2062
    %v2070 = vsub.f32 %v2058, %v2064
    %v2071 = vsub.f32 %v2059, %v2066
    %v2072 = vsub.f32 %v2060, %v2068
    %v2073 = vmul.f32 %v2069, 1.442695
    %v2074 = vpow.pop %v2073
    %v2075 = vmul.f32 %v2070, 1.442695
    %v2076 = vpow.pop %v2075
    %v2077 = vmul.f32 %v2071, 1.442695
    %v2078 = vpow.pop %v2077
    %v2079 = vmul.f32 %v2072, 1.442695
    %v2080 = vpow.pop %v2079
    %2081 = vmatprep.subr.mxu0 0.0
    %2082 = vmatpush1.msra.mxu0 %v1952
    %2083 = vmatprep.subr.mxu0 0.0
    %2084 = vmatpush1.msra.mxu0 %v1953
    %2085 = vmatprep.subr.mxu0 0.0
    %2086 = vmatpush1.msra.mxu0 %v1954
    %2087 = vmatprep.subr.mxu0 0.0
    %2088 = vmatpush1.msra.mxu0 %v1955
    %2089 = vmatprep.subr.mxu0 0.0
    %2090 = vmatpush1.msra.mxu0 %v1956
    %2091 = vmatprep.subr.mxu0 0.0
    %2092 = vmatpush1.msra.mxu0 %v1957
    %2093 = vmatprep.subr.mxu0 0.0
    %2094 = vmatpush1.msra.mxu0 %v1958
    %2095 = vmatprep.subr.mxu0 0.0
    %2096 = vmatpush1.msra.mxu0 %v1959
    %2097 = vmatprep.subr.mxu0 0.0
    %2098 = vmatpush1.msra.mxu0 %v1960
    %2099 = vmatprep.subr.mxu0 0.0
    %2100 = vmatpush1.msra.mxu0 %v1961
    %2101 = vmatprep.subr.mxu0 0.0
    %2102 = vmatpush1.msra.mxu0 %v1962
    %2103 = vmatprep.subr.mxu0 0.0
    %2104 = vmatpush1.msra.mxu0 %v1963
    %2105 = vmatprep.subr.mxu0 0.0
    %2106 = vmatpush1.msra.mxu0 %v1964
    %2107 = vmatprep.subr.mxu0 0.0
    %2108 = vmatpush1.msra.mxu0 %v1965
    %2109 = vmatprep.subr.mxu0 0.0
    %2110 = vmatpush1.msra.mxu0 %v1966
    %2111 = vmatprep.subr.mxu0 0.0
    %2112 = vmatpush1.msra.mxu0 %v1967
    %2113 = vmatprep.subr.mxu0 0.0
    %2114 = vmatpush1.msra.mxu0 0.0
    %2115 = vmatprep.subr.mxu0 0.0
    %2116 = vmatpush1.msra.mxu0 0.0
    %2117 = vmatprep.subr.mxu0 0.0
    %2118 = vmatpush1.msra.mxu0 0.0
    %2119 = vmatprep.subr.mxu0 0.0
    %2120 = vmatpush1.msra.mxu0 0.0
    %2121 = vmatprep.subr.mxu0 0.0
    %2122 = vmatpush1.msra.mxu0 0.0
    %2123 = vmatprep.subr.mxu0 0.0
    %2124 = vmatpush1.msra.mxu0 0.0
    %2125 = vmatprep.subr.mxu0 0.0
    %2126 = vmatpush1.msra.mxu0 0.0
    %2127 = vmatprep.subr.mxu0 0.0
    %2128 = vmatpush1.msra.mxu0 0.0
    %2129 = vmatprep.subr.mxu0 0.0
    %2130 = vmatpush1.msra.mxu0 0.0
    %2131 = vmatprep.subr.mxu0 0.0
    %2132 = vmatpush1.msra.mxu0 0.0
    %2133 = vmatprep.subr.mxu0 0.0
    %2134 = vmatpush1.msra.mxu0 0.0
    %2135 = vmatprep.subr.mxu0 0.0
    %2136 = vmatpush1.msra.mxu0 0.0
    %2137 = vmatprep.subr.mxu0 0.0
    %2138 = vmatpush1.msra.mxu0 0.0
    %2139 = vmatprep.subr.mxu0 0.0
    %2140 = vmatpush1.msra.mxu0 0.0
    %2141 = vmatprep.subr.mxu0 0.0
    %2142 = vmatpush1.msra.mxu0 0.0
    %2143 = vmatprep.subr.mxu0 0.0
    %2144 = vmatpush1.msra.mxu0 0.0
    %2145 = vmatprep.mubr.f32.mxu0 0.0
    %2146 = vmatmul.mubr.f32.gmra.mrb[0].mxu0 %v2074
    %v2147 = vpop.f32.mrb[0].mxu0
    %v2148 = vadd.f32 0.0, %v2147
    %v2149 = vpop.f32.mrb[0].mxu0
    %2150 = vmatprep.mubr.f32.mxu0 0.0
    %2151 = vmatmul.mubr.f32.gmra.mrb[0].mxu0 %v2076
    %v2152 = vpop.f32.mrb[0].mxu0
    %v2153 = vadd.f32 0.0, %v2152
    %v2154 = vpop.f32.mrb[0].mxu0
    %2155 = vmatprep.mubr.f32.mxu0 0.0
    %2156 = vmatmul.mubr.f32.gmra.mrb[0].mxu0 %v2078
    %v2157 = vpop.f32.mrb[0].mxu0
    %v2158 = vadd.f32 0.0, %v2157
    %v2159 = vpop.f32.mrb[0].mxu0
    %2160 = vmatprep.mubr.f32.mxu0 0.0
    %2161 = vmatmul.mubr.f32.gmra.mrb[0].mxu0 %v2080
    %v2162 = vpop.f32.mrb[0].mxu0
    %v2163 = vadd.f32 0.0, %v2162
    %v2164 = vpop.f32.mrb[0].mxu0
    %2165 = vdwg.mxu0
    %2166 = vmatprep.subr.mxu0 0.0
    %2167 = vmatpush1.msra.mxu0 %v574
    %2168 = vmatprep.subr.mxu0 0.0
    %2169 = vmatpush1.msra.mxu0 %v575
    %2170 = vmatprep.subr.mxu0 0.0
    %2171 = vmatpush1.msra.mxu0 %v576
    %2172 = vmatprep.subr.mxu0 0.0
    %2173 = vmatpush1.msra.mxu0 %v577
    %2174 = vmatprep.subr.mxu0 0.0
    %2175 = vmatpush1.msra.mxu0 %v578
    %2176 = vmatprep.subr.mxu0 0.0
    %2177 = vmatpush1.msra.mxu0 %v579
    %2178 = vmatprep.subr.mxu0 0.0
    %2179 = vmatpush1.msra.mxu0 %v580
    %2180 = vmatprep.subr.mxu0 0.0
    %2181 = vmatpush1.msra.mxu0 %v581
    %2182 = vmatprep.subr.mxu0 0.0
    %2183 = vmatpush1.msra.mxu0 %v582
    %2184 = vmatprep.subr.mxu0 0.0
    %2185 = vmatpush1.msra.mxu0 %v583
    %2186 = vmatprep.subr.mxu0 0.0
    %2187 = vmatpush1.msra.mxu0 %v584
    %2188 = vmatprep.subr.mxu0 0.0
    %2189 = vmatpush1.msra.mxu0 %v585
    %2190 = vmatprep.subr.mxu0 0.0
    %2191 = vmatpush1.msra.mxu0 %v586
    %2192 = vmatprep.subr.mxu0 0.0
    %2193 = vmatpush1.msra.mxu0 %v587
    %2194 = vmatprep.subr.mxu0 0.0
    %2195 = vmatpush1.msra.mxu0 %v588
    %2196 = vmatprep.subr.mxu0 0.0
    %2197 = vmatpush1.msra.mxu0 %v589
    %2198 = vmatprep.subr.mxu0 0.0
    %2199 = vmatpush1.msra.mxu0 0.0
    %2200 = vmatprep.subr.mxu0 0.0
    %2201 = vmatpush1.msra.mxu0 0.0
    %2202 = vmatprep.subr.mxu0 0.0
    %2203 = vmatpush1.msra.mxu0 0.0
    %2204 = vmatprep.subr.mxu0 0.0
    %2205 = vmatpush1.msra.mxu0 0.0
    %2206 = vmatprep.subr.mxu0 0.0
    %2207 = vmatpush1.msra.mxu0 0.0
    %2208 = vmatprep.subr.mxu0 0.0
    %2209 = vmatpush1.msra.mxu0 0.0
    %2210 = vmatprep.subr.mxu0 0.0
    %2211 = vmatpush1.msra.mxu0 0.0
    %2212 = vmatprep.subr.mxu0 0.0
    %2213 = vmatpush1.msra.mxu0 0.0
    %2214 = vmatprep.subr.mxu0 0.0
    %2215 = vmatpush1.msra.mxu0 0.0
    %2216 = vmatprep.subr.mxu0 0.0
    %2217 = vmatpush1.msra.mxu0 0.0
    %2218 = vmatprep.subr.mxu0 0.0
    %2219 = vmatpush1.msra.mxu0 0.0
    %2220 = vmatprep.subr.mxu0 0.0
    %2221 = vmatpush1.msra.mxu0 0.0
    %2222 = vmatprep.subr.mxu0 0.0
    %2223 = vmatpush1.msra.mxu0 0.0
    %2224 = vmatprep.subr.mxu0 0.0
    %2225 = vmatpush1.msra.mxu0 0.0
    %2226 = vmatprep.subr.mxu0 0.0
    %2227 = vmatpush1.msra.mxu0 0.0
    %2228 = vmatprep.subr.mxu0 0.0
    %2229 = vmatpush1.msra.mxu0 0.0
    %2230 = vmatprep.mubr.f32.mxu0 0.0
    %2231 = vmatmul.mubr.f32.gmra.mrb[0].mxu0 %v2074
    %v2232 = vpop.f32.mrb[0].mxu0
    %v2233 = vadd.f32 0.0, %v2232
    %v2234 = vpop.f32.mrb[0].mxu0
    %2235 = vmatprep.mubr.f32.mxu0 0.0
    %2236 = vmatmul.mubr.f32.gmra.mrb[0].mxu0 %v2076
    %v2237 = vpop.f32.mrb[0].mxu0
    %v2238 = vadd.f32 0.0, %v2237
    %v2239 = vpop.f32.mrb[0].mxu0
    %2240 = vmatprep.mubr.f32.mxu0 0.0
    %2241 = vmatmul.mubr.f32.gmra.mrb[0].mxu0 %v2078
    %v2242 = vpop.f32.mrb[0].mxu0
    %v2243 = vadd.f32 0.0, %v2242
    %v2244 = vpop.f32.mrb[0].mxu0
    %2245 = vmatprep.mubr.f32.mxu0 0.0
    %2246 = vmatmul.mubr.f32.gmra.mrb[0].mxu0 %v2080
    %v2247 = vpop.f32.mrb[0].mxu0
    %v2248 = vadd.f32 0.0, %v2247
    %v2249 = vpop.f32.mrb[0].mxu0
    %2250 = vdwg.mxu0
    %v2251 = vrcp.pop %v2233
    %v2252 = vrcp.pop %v2238
    %v2253 = vrcp.pop %v2243
    %v2254 = vrcp.pop %v2248
    %v2255 = vmul.f32 %v2148, %v2251
    %v2256 = vmul.f32 %v2153, %v2252
    %v2257 = vmul.f32 %v2158, %v2253
    %v2258 = vmul.f32 %v2163, %v2254
    %v2259 = vlaneseq
    %v2260 = vshrl.u32 %v2259, 7
    %v2261 = vsub.s32 0, %v2260
    %v2262 = vrot.slane %v1731, %v2261
    %2263 = vmatprep.subr.mxu0 0.0
    %2264 = vmatpush1.msra.mxu0 %v1680
    %2265 = vmatprep.subr.mxu0 0.0
    %2266 = vmatpush1.msra.mxu0 %v1681
    %2267 = vmatprep.subr.mxu0 0.0
    %2268 = vmatpush1.msra.mxu0 %v1682
    %2269 = vmatprep.subr.mxu0 0.0
    %2270 = vmatpush1.msra.mxu0 %v1683
    %2271 = vmatprep.subr.mxu0 0.0
    %2272 = vmatpush1.msra.mxu0 %v1684
    %2273 = vmatprep.subr.mxu0 0.0
    %2274 = vmatpush1.msra.mxu0 %v1685
    %2275 = vmatprep.subr.mxu0 0.0
    %2276 = vmatpush1.msra.mxu0 %v1686
    %2277 = vmatprep.subr.mxu0 0.0
    %2278 = vmatpush1.msra.mxu0 %v1687
    %2279 = vmatprep.subr.mxu0 0.0
    %2280 = vmatpush1.msra.mxu0 %v1688
    %2281 = vmatprep.subr.mxu0 0.0
    %2282 = vmatpush1.msra.mxu0 %v1689
    %2283 = vmatprep.subr.mxu0 0.0
    %2284 = vmatpush1.msra.mxu0 %v1690
    %2285 = vmatprep.subr.mxu0 0.0
    %2286 = vmatpush1.msra.mxu0 %v1691
    %2287 = vmatprep.subr.mxu0 0.0
    %2288 = vmatpush1.msra.mxu0 %v1692
    %2289 = vmatprep.subr.mxu0 0.0
    %2290 = vmatpush1.msra.mxu0 %v1693
    %2291 = vmatprep.subr.mxu0 0.0
    %2292 = vmatpush1.msra.mxu0 %v1694
    %2293 = vmatprep.subr.mxu0 0.0
    %2294 = vmatpush1.msra.mxu0 %v1695
    %2295 = vmatprep.subr.mxu0 0.0
    %2296 = vmatpush1.msra.mxu0 0.0
    %2297 = vmatprep.subr.mxu0 0.0
    %2298 = vmatpush1.msra.mxu0 0.0
    %2299 = vmatprep.subr.mxu0 0.0
    %2300 = vmatpush1.msra.mxu0 0.0
    %2301 = vmatprep.subr.mxu0 0.0
    %2302 = vmatpush1.msra.mxu0 0.0
    %2303 = vmatprep.subr.mxu0 0.0
    %2304 = vmatpush1.msra.mxu0 0.0
    %2305 = vmatprep.subr.mxu0 0.0
    %2306 = vmatpush1.msra.mxu0 0.0
    %2307 = vmatprep.subr.mxu0 0.0
    %2308 = vmatpush1.msra.mxu0 0.0
    %2309 = vmatprep.subr.mxu0 0.0
    %2310 = vmatpush1.msra.mxu0 0.0
    %2311 = vmatprep.subr.mxu0 0.0
    %2312 = vmatpush1.msra.mxu0 0.0
    %2313 = vmatprep.subr.mxu0 0.0
    %2314 = vmatpush1.msra.mxu0 0.0
    %2315 = vmatprep.subr.mxu0 0.0
    %2316 = vmatpush1.msra.mxu0 0.0
    %2317 = vmatprep.subr.mxu0 0.0
    %2318 = vmatpush1.msra.mxu0 0.0
    %2319 = vmatprep.subr.mxu0 0.0
    %2320 = vmatpush1.msra.mxu0 0.0
    %2321 = vmatprep.subr.mxu0 0.0
    %2322 = vmatpush1.msra.mxu0 0.0
    %2323 = vmatprep.subr.mxu0 0.0
    %2324 = vmatpush1.msra.mxu0 0.0
    %2325 = vmatprep.subr.mxu0 0.0
    %2326 = vmatpush1.msra.mxu0 0.0
    %2327 = vmatprep.mubr.f32.mxu0 0.0
    %2328 = vmatmul.mubr.f32.gmra.mrb[0].mxu0 %v2255
    %v2329 = vpop.f32.mrb[0].mxu0
    %v2330 = vadd.f32 %v2262, %v2329
    %v2331 = vpop.f32.mrb[0].mxu0
    %2332 = vmatprep.mubr.f32.mxu0 0.0
    %2333 = vmatmul.mubr.f32.gmra.mrb[0].mxu0 %v2256
    %v2334 = vpop.f32.mrb[0].mxu0
    %v2335 = vadd.f32 %v2262, %v2334
    %v2336 = vpop.f32.mrb[0].mxu0
    %2337 = vmatprep.mubr.f32.mxu0 0.0
    %2338 = vmatmul.mubr.f32.gmra.mrb[0].mxu0 %v2257
    %v2339 = vpop.f32.mrb[0].mxu0
    %v2340 = vadd.f32 %v2262, %v2339
    %v2341 = vpop.f32.mrb[0].mxu0
    %2342 = vmatprep.mubr.f32.mxu0 0.0
    %2343 = vmatmul.mubr.f32.gmra.mrb[0].mxu0 %v2258
    %v2344 = vpop.f32.mrb[0].mxu0
    %v2345 = vadd.f32 %v2262, %v2344
    %v2346 = vpop.f32.mrb[0].mxu0
    %2347 = vdwg.mxu0
    %v2348 = vadd.f32 %v1628, %v2330
    %v2349 = vadd.f32 %v1629, %v2335
    %v2350 = vadd.f32 %v1630, %v2340
    %v2351 = vadd.f32 %v1631, %v2345
    %v2352 = vmul.f32 %v2348, %v81
    %v2353 = vmul.f32 %v2349, %v81
    %v2354 = vmul.f32 %v2350, %v81
    %v2355 = vmul.f32 %v2351, %v81
    %2356 = vadd.xlane.f32.xlu0 %v2352
    %v2357 = vpop.xlane.xlu0 %2356
    %2358 = vadd.xlane.f32.xlu0 %v2353
    %v2359 = vpop.xlane.xlu0 %2358
    %2360 = vadd.xlane.f32.xlu0 %v2354
    %v2361 = vpop.xlane.xlu0 %2360
    %2362 = vadd.xlane.f32.xlu0 %v2355
    %v2363 = vpop.xlane.xlu0 %2362
    %v2364 = vmul.f32 %v2357, 0.03125
    %v2365 = vmul.f32 %v2359, 0.03125
    %v2366 = vmul.f32 %v2361, 0.03125
    %v2367 = vmul.f32 %v2363, 0.03125
    %v2368 = vsub.f32 %v2348, %v2364
    %v2369 = vsub.f32 %v2349, %v2365
    %v2370 = vsub.f32 %v2350, %v2366
    %v2371 = vsub.f32 %v2351, %v2367
    %v2372 = vmul.f32 %v2368, %v81
    %v2373 = vmul.f32 %v2369, %v81
    %v2374 = vmul.f32 %v2370, %v81
    %v2375 = vmul.f32 %v2371, %v81
    %v2376 = vmul.f32 %v2372, %v2372
    %v2377 = vmul.f32 %v2373, %v2373
    %v2378 = vmul.f32 %v2374, %v2374
    %v2379 = vmul.f32 %v2375, %v2375
    %2380 = vadd.xlane.f32.xlu0 %v2376
    %v2381 = vpop.xlane.xlu0 %2380
    %2382 = vadd.xlane.f32.xlu0 %v2377
    %v2383 = vpop.xlane.xlu0 %2382
    %2384 = vadd.xlane.f32.xlu0 %v2378
    %v2385 = vpop.xlane.xlu0 %2384
    %2386 = vadd.xlane.f32.xlu0 %v2379
    %v2387 = vpop.xlane.xlu0 %2386
    %v2388 = vmul.f32 %v2381, 0.03125
    %v2389 = vmul.f32 %v2383, 0.03125
    %v2390 = vmul.f32 %v2385, 0.03125
    %v2391 = vmul.f32 %v2387, 0.03125
    %v2392 = vadd.f32 %v2388, 1e-05
    %v2393 = vadd.f32 %v2389, 1e-05
    %v2394 = vadd.f32 %v2390, 1e-05
    %v2395 = vadd.f32 %v2391, 1e-05
    %v2396 = vrsqrt.pop %v2392
    %v2397 = vrsqrt.pop %v2393
    %v2398 = vrsqrt.pop %v2394
    %v2399 = vrsqrt.pop %v2395
    %v2400 = vmul.f32 %v2372, %v2396
    %v2401 = vmul.f32 %v2373, %v2397
    %v2402 = vmul.f32 %v2374, %v2398
    %v2403 = vmul.f32 %v2375, %v2399
    %v2404 = vlaneseq
    %v2405 = vshrl.u32 %v2404, 7
    %v2406 = vsub.s32 0, %v2405
    %v2407 = vrot.slane %v1734, %v2406
    %v2408 = vmul.f32 %v2400, %v2407
    %v2409 = vmul.f32 %v2401, %v2407
    %v2410 = vmul.f32 %v2402, %v2407
    %v2411 = vmul.f32 %v2403, %v2407
    %v2412 = vlaneseq
    %v2413 = vshrl.u32 %v2412, 7
    %v2414 = vsub.s32 0, %v2413
    %v2415 = vrot.slane %v1735, %v2414
    %v2416 = vadd.f32 %v2408, %v2415
    %v2417 = vadd.f32 %v2409, %v2415
    %v2418 = vadd.f32 %v2410, %v2415
    %v2419 = vadd.f32 %v2411, %v2415
    %v2420 = vlaneseq
    %v2421 = vshrl.u32 %v2420, 7
    %v2422 = vsub.s32 0, %v2421
    %v2423 = vrot.slane %v1732, %v2422
    %2424 = vmatprep.subr.mxu0 0.0
    %2425 = vmatpush1.msra.mxu0 %v1696
    %2426 = vmatprep.subr.mxu0 0.0
    %2427 = vmatpush1.msra.mxu0 %v1697
    %2428 = vmatprep.subr.mxu0 0.0
    %2429 = vmatpush1.msra.mxu0 %v1698
    %2430 = vmatprep.subr.mxu0 0.0
    %2431 = vmatpush1.msra.mxu0 %v1699
    %2432 = vmatprep.subr.mxu0 0.0
    %2433 = vmatpush1.msra.mxu0 %v1700
    %2434 = vmatprep.subr.mxu0 0.0
    %2435 = vmatpush1.msra.mxu0 %v1701
    %2436 = vmatprep.subr.mxu0 0.0
    %2437 = vmatpush1.msra.mxu0 %v1702
    %2438 = vmatprep.subr.mxu0 0.0
    %2439 = vmatpush1.msra.mxu0 %v1703
    %2440 = vmatprep.subr.mxu0 0.0
    %2441 = vmatpush1.msra.mxu0 %v1704
    %2442 = vmatprep.subr.mxu0 0.0
    %2443 = vmatpush1.msra.mxu0 %v1705
    %2444 = vmatprep.subr.mxu0 0.0
    %2445 = vmatpush1.msra.mxu0 %v1706
    %2446 = vmatprep.subr.mxu0 0.0
    %2447 = vmatpush1.msra.mxu0 %v1707
    %2448 = vmatprep.subr.mxu0 0.0
    %2449 = vmatpush1.msra.mxu0 %v1708
    %2450 = vmatprep.subr.mxu0 0.0
    %2451 = vmatpush1.msra.mxu0 %v1709
    %2452 = vmatprep.subr.mxu0 0.0
    %2453 = vmatpush1.msra.mxu0 %v1710
    %2454 = vmatprep.subr.mxu0 0.0
    %2455 = vmatpush1.msra.mxu0 %v1711
    %2456 = vmatprep.subr.mxu0 0.0
    %2457 = vmatpush1.msra.mxu0 0.0
    %2458 = vmatprep.subr.mxu0 0.0
    %2459 = vmatpush1.msra.mxu0 0.0
    %2460 = vmatprep.subr.mxu0 0.0
    %2461 = vmatpush1.msra.mxu0 0.0
    %2462 = vmatprep.subr.mxu0 0.0
    %2463 = vmatpush1.msra.mxu0 0.0
    %2464 = vmatprep.subr.mxu0 0.0
    %2465 = vmatpush1.msra.mxu0 0.0
    %2466 = vmatprep.subr.mxu0 0.0
    %2467 = vmatpush1.msra.mxu0 0.0
    %2468 = vmatprep.subr.mxu0 0.0
    %2469 = vmatpush1.msra.mxu0 0.0
    %2470 = vmatprep.subr.mxu0 0.0
    %2471 = vmatpush1.msra.mxu0 0.0
    %2472 = vmatprep.subr.mxu0 0.0
    %2473 = vmatpush1.msra.mxu0 0.0
    %2474 = vmatprep.subr.mxu0 0.0
    %2475 = vmatpush1.msra.mxu0 0.0
    %2476 = vmatprep.subr.mxu0 0.0
    %2477 = vmatpush1.msra.mxu0 0.0
    %2478 = vmatprep.subr.mxu0 0.0
    %2479 = vmatpush1.msra.mxu0 0.0
    %2480 = vmatprep.subr.mxu0 0.0
    %2481 = vmatpush1.msra.mxu0 0.0
    %2482 = vmatprep.subr.mxu0 0.0
    %2483 = vmatpush1.msra.mxu0 0.0
    %2484 = vmatprep.subr.mxu0 0.0
    %2485 = vmatpush1.msra.mxu0 0.0
    %2486 = vmatprep.subr.mxu0 0.0
    %2487 = vmatpush1.msra.mxu0 0.0
    %2488 = vmatprep.mubr.f32.mxu0 0.0
    %2489 = vmatmul.mubr.f32.gmra.mrb[0].mxu0 %v2416
    %v2490 = vpop.f32.mrb[0].mxu0
    %v2491 = vadd.f32 %v2423, %v2490
    %v2492 = vpop.f32.mrb[0].mxu0
    %2493 = vmatprep.mubr.f32.mxu0 0.0
    %2494 = vmatmul.mubr.f32.gmra.mrb[0].mxu0 %v2417
    %v2495 = vpop.f32.mrb[0].mxu0
    %v2496 = vadd.f32 %v2423, %v2495
    %v2497 = vpop.f32.mrb[0].mxu0
    %2498 = vmatprep.mubr.f32.mxu0 0.0
    %2499 = vmatmul.mubr.f32.gmra.mrb[0].mxu0 %v2418
    %v2500 = vpop.f32.mrb[0].mxu0
    %v2501 = vadd.f32 %v2423, %v2500
    %v2502 = vpop.f32.mrb[0].mxu0
    %2503 = vmatprep.mubr.f32.mxu0 0.0
    %2504 = vmatmul.mubr.f32.gmra.mrb[0].mxu0 %v2419
    %v2505 = vpop.f32.mrb[0].mxu0
    %v2506 = vadd.f32 %v2423, %v2505
    %v2507 = vpop.f32.mrb[0].mxu0
    %2508 = vdwg.mxu0
    %v2509 = vmax.f32 %v2491, 0.0
    %v2510 = vmax.f32 %v2496, 0.0
    %v2511 = vmax.f32 %v2501, 0.0
    %v2512 = vmax.f32 %v2506, 0.0
    %v2513 = vlaneseq
    %v2514 = vshrl.u32 %v2513, 7
    %v2515 = vsub.s32 0, %v2514
    %v2516 = vrot.slane %v1733, %v2515
    %2517 = vmatprep.subr.mxu0 0.0
    %2518 = vmatpush1.msra.mxu0 %v1712
    %2519 = vmatprep.subr.mxu0 0.0
    %2520 = vmatpush1.msra.mxu0 %v1713
    %2521 = vmatprep.subr.mxu0 0.0
    %2522 = vmatpush1.msra.mxu0 %v1714
    %2523 = vmatprep.subr.mxu0 0.0
    %2524 = vmatpush1.msra.mxu0 %v1715
    %2525 = vmatprep.subr.mxu0 0.0
    %2526 = vmatpush1.msra.mxu0 %v1716
    %2527 = vmatprep.subr.mxu0 0.0
    %2528 = vmatpush1.msra.mxu0 %v1717
    %2529 = vmatprep.subr.mxu0 0.0
    %2530 = vmatpush1.msra.mxu0 %v1718
    %2531 = vmatprep.subr.mxu0 0.0
    %2532 = vmatpush1.msra.mxu0 %v1719
    %2533 = vmatprep.subr.mxu0 0.0
    %2534 = vmatpush1.msra.mxu0 %v1720
    %2535 = vmatprep.subr.mxu0 0.0
    %2536 = vmatpush1.msra.mxu0 %v1721
    %2537 = vmatprep.subr.mxu0 0.0
    %2538 = vmatpush1.msra.mxu0 %v1722
    %2539 = vmatprep.subr.mxu0 0.0
    %2540 = vmatpush1.msra.mxu0 %v1723
    %2541 = vmatprep.subr.mxu0 0.0
    %2542 = vmatpush1.msra.mxu0 %v1724
    %2543 = vmatprep.subr.mxu0 0.0
    %2544 = vmatpush1.msra.mxu0 %v1725
    %2545 = vmatprep.subr.mxu0 0.0
    %2546 = vmatpush1.msra.mxu0 %v1726
    %2547 = vmatprep.subr.mxu0 0.0
    %2548 = vmatpush1.msra.mxu0 %v1727
    %2549 = vmatprep.subr.mxu0 0.0
    %2550 = vmatpush1.msra.mxu0 0.0
    %2551 = vmatprep.subr.mxu0 0.0
    %2552 = vmatpush1.msra.mxu0 0.0
    %2553 = vmatprep.subr.mxu0 0.0
    %2554 = vmatpush1.msra.mxu0 0.0
    %2555 = vmatprep.subr.mxu0 0.0
    %2556 = vmatpush1.msra.mxu0 0.0
    %2557 = vmatprep.subr.mxu0 0.0
    %2558 = vmatpush1.msra.mxu0 0.0
    %2559 = vmatprep.subr.mxu0 0.0
    %2560 = vmatpush1.msra.mxu0 0.0
    %2561 = vmatprep.subr.mxu0 0.0
    %2562 = vmatpush1.msra.mxu0 0.0
    %2563 = vmatprep.subr.mxu0 0.0
    %2564 = vmatpush1.msra.mxu0 0.0
    %2565 = vmatprep.subr.mxu0 0.0
    %2566 = vmatpush1.msra.mxu0 0.0
    %2567 = vmatprep.subr.mxu0 0.0
    %2568 = vmatpush1.msra.mxu0 0.0
    %2569 = vmatprep.subr.mxu0 0.0
    %2570 = vmatpush1.msra.mxu0 0.0
    %2571 = vmatprep.subr.mxu0 0.0
    %2572 = vmatpush1.msra.mxu0 0.0
    %2573 = vmatprep.subr.mxu0 0.0
    %2574 = vmatpush1.msra.mxu0 0.0
    %2575 = vmatprep.subr.mxu0 0.0
    %2576 = vmatpush1.msra.mxu0 0.0
    %2577 = vmatprep.subr.mxu0 0.0
    %2578 = vmatpush1.msra.mxu0 0.0
    %2579 = vmatprep.subr.mxu0 0.0
    %2580 = vmatpush1.msra.mxu0 0.0
    %2581 = vmatprep.mubr.f32.mxu0 0.0
    %2582 = vmatmul.mubr.f32.gmra.mrb[0].mxu0 %v2509
    %v2583 = vpop.f32.mrb[0].mxu0
    %v2584 = vadd.f32 %v2516, %v2583
    %v2585 = vpop.f32.mrb[0].mxu0
    %2586 = vmatprep.mubr.f32.mxu0 0.0
    %2587 = vmatmul.mubr.f32.gmra.mrb[0].mxu0 %v2510
    %v2588 = vpop.f32.mrb[0].mxu0
    %v2589 = vadd.f32 %v2516, %v2588
    %v2590 = vpop.f32.mrb[0].mxu0
    %2591 = vmatprep.mubr.f32.mxu0 0.0
    %2592 = vmatmul.mubr.f32.gmra.mrb[0].mxu0 %v2511
    %v2593 = vpop.f32.mrb[0].mxu0
    %v2594 = vadd.f32 %v2516, %v2593
    %v2595 = vpop.f32.mrb[0].mxu0
    %2596 = vmatprep.mubr.f32.mxu0 0.0
    %2597 = vmatmul.mubr.f32.gmra.mrb[0].mxu0 %v2512
    %v2598 = vpop.f32.mrb[0].mxu0
    %v2599 = vadd.f32 %v2516, %v2598
    %v2600 = vpop.f32.mrb[0].mxu0
    %2601 = vdwg.mxu0
    %v2602 = vadd.f32 %v2416, %v2584
    %v2603 = vadd.f32 %v2417, %v2589
    %v2604 = vadd.f32 %v2418, %v2594
    %v2605 = vadd.f32 %v2419, %v2599
    %v2606 = vmul.f32 %v2602, %v81
    %v2607 = vmul.f32 %v2603, %v81
    %v2608 = vmul.f32 %v2604, %v81
    %v2609 = vmul.f32 %v2605, %v81
    %2610 = vadd.xlane.f32.xlu0 %v2606
    %v2611 = vpop.xlane.xlu0 %2610
    %2612 = vadd.xlane.f32.xlu0 %v2607
    %v2613 = vpop.xlane.xlu0 %2612
    %2614 = vadd.xlane.f32.xlu0 %v2608
    %v2615 = vpop.xlane.xlu0 %2614
    %2616 = vadd.xlane.f32.xlu0 %v2609
    %v2617 = vpop.xlane.xlu0 %2616
    %v2618 = vmul.f32 %v2611, 0.03125
    %v2619 = vmul.f32 %v2613, 0.03125
    %v2620 = vmul.f32 %v2615, 0.03125
    %v2621 = vmul.f32 %v2617, 0.03125
    %v2622 = vsub.f32 %v2602, %v2618
    %v2623 = vsub.f32 %v2603, %v2619
    %v2624 = vsub.f32 %v2604, %v2620
    %v2625 = vsub.f32 %v2605, %v2621
    %v2626 = vmul.f32 %v2622, %v81
    %v2627 = vmul.f32 %v2623, %v81
    %v2628 = vmul.f32 %v2624, %v81
    %v2629 = vmul.f32 %v2625, %v81
    %v2630 = vmul.f32 %v2626, %v2626
    %v2631 = vmul.f32 %v2627, %v2627
    %v2632 = vmul.f32 %v2628, %v2628
    %v2633 = vmul.f32 %v2629, %v2629
    %2634 = vadd.xlane.f32.xlu0 %v2630
    %v2635 = vpop.xlane.xlu0 %2634
    %2636 = vadd.xlane.f32.xlu0 %v2631
    %v2637 = vpop.xlane.xlu0 %2636
    %2638 = vadd.xlane.f32.xlu0 %v2632
    %v2639 = vpop.xlane.xlu0 %2638
    %2640 = vadd.xlane.f32.xlu0 %v2633
    %v2641 = vpop.xlane.xlu0 %2640
    %v2642 = vmul.f32 %v2635, 0.03125
    %v2643 = vmul.f32 %v2637, 0.03125
    %v2644 = vmul.f32 %v2639, 0.03125
    %v2645 = vmul.f32 %v2641, 0.03125
    %v2646 = vadd.f32 %v2642, 1e-05
    %v2647 = vadd.f32 %v2643, 1e-05
    %v2648 = vadd.f32 %v2644, 1e-05
    %v2649 = vadd.f32 %v2645, 1e-05
    %v2650 = vrsqrt.pop %v2646
    %v2651 = vrsqrt.pop %v2647
    %v2652 = vrsqrt.pop %v2648
    %v2653 = vrsqrt.pop %v2649
    %v2654 = vmul.f32 %v2626, %v2650
    %v2655 = vmul.f32 %v2627, %v2651
    %v2656 = vmul.f32 %v2628, %v2652
    %v2657 = vmul.f32 %v2629, %v2653
    %v2658 = vlaneseq
    %v2659 = vshrl.u32 %v2658, 7
    %v2660 = vsub.s32 0, %v2659
    %v2661 = vrot.slane %v1736, %v2660
    %v2662 = vmul.f32 %v2654, %v2661
    %v2663 = vmul.f32 %v2655, %v2661
    %v2664 = vmul.f32 %v2656, %v2661
    %v2665 = vmul.f32 %v2657, %v2661
    %v2666 = vlaneseq
    %v2667 = vshrl.u32 %v2666, 7
    %v2668 = vsub.s32 0, %v2667
    %v2669 = vrot.slane %v1737, %v2668
    %v2670 = vadd.f32 %v2662, %v2669
    %v2671 = vadd.f32 %v2663, %v2669
    %v2672 = vadd.f32 %v2664, %v2669
    %v2673 = vadd.f32 %v2665, %v2669
    %2674 = vst [vmem:[#allocation10] sm:$0xff] %v2670
    %2675 = vst [vmem:[#allocation10 + $0x8] sm:$0xff] %v2671
    %2676 = vst [vmem:[#allocation10 + $0x10] sm:$0xff] %v2672
    %2677 = vst [vmem:[#allocation10 + $0x18] sm:$0xff] %v2673
    // Predicated region
    $region34: #{tpu_custom_call.1} parent=1 // pred_check
      _
    $region35: #{tpu_custom_call.1} parent=1 // pred_check_branch
      %2679 = sbr.rel (0) target = $region37
    $region36: #{tpu_custom_call.1} parent=1 // pred_region
      %s2681 = ssub.s32 512, 512
      %2682 = vsyncadd [#allocation4], %s2681
      %s2683 = sshll.u32 [#allocation10], 4
      %s2684 = int_to_ptr.vmem [resolvable:$true] %s2683
      %2689 = dma.vmem_to_hbm [thread:$0]  %s2684, 512, %s4, [#allocation4], 128, 128, 8
    $region37: #{tpu_custom_call.1} parent=1 // pred_fallthru
      _
    // Predicated region
    $region38: #{tpu_custom_call.1} parent=1 // pred_check
      _
    $region39: #{tpu_custom_call.1} parent=1 // pred_check_branch
      %2691 = sbr.rel (0) target = $region41
    $region40: #{tpu_custom_call.1} parent=1 // pred_region
      %2692 = dma.done [#allocation4], 512
    $region41: #{tpu_custom_call.1} parent=1 // pred_fallthru
      _
    %2693 = vsyncpa [#allocation3], 1
    %2694 = vsyncpa [#allocation6], 1
    %2695 = vsyncpa [#allocation9], 1
    %2696 = vsyncpa [#allocation4], 1

</llo_original>
